<compile_context>
chip_gen: v5e
topology: v5e:2x2
jax: 0.10.0
libtpu: 0.0.40
codegen_flags: <defaults>
</compile_context>

<pallas_src>
import jax
import jax.numpy as jnp
from jax.experimental import pallas as pl
from jax.experimental.pallas import tpu as pltpu

VOCAB = 30000
DIM_EMB = 32
DIM_HID = 100
HID_PAD = 128          # lane-dense hidden width


def lstm_bidir_kernel(emb_ref, mask_ref,
                      wx1_ref, wh1_ref, b1_ref,
                      wx2_ref, wh2_ref, b2_ref,
                      out_ref):
    # emb_ref : (T, B, E) f32, time-major embedded tokens
    # mask_ref: (T, B, 1) f32, 1.0 = row updates at this step, 0.0 = keep state
    # wx*_ref : (E,  4*Hp)  stacked gate weights [f|i|o|c] applied to x
    # wh*_ref : (Hp, 4*Hp)  stacked gate weights applied to h
    # b*_ref  : (1,  4*Hp)  stacked gate biases (zero in padded lanes)
    # out_ref : (B, 2*Hp)   [h1 | h2], lane dense
    T, B, _ = emb_ref.shape
    Hp = wh1_ref.shape[0]

    wx1 = wx1_ref[...]
    wh1 = wh1_ref[...]
    wx2 = wx2_ref[...]
    wh2 = wh2_ref[...]
    # Hoist bias broadcasts out of the unrolled loop (JAX does not CSE them).
    b1 = jnp.broadcast_to(b1_ref[...], (B, 4 * Hp))
    b2 = jnp.broadcast_to(b2_ref[...], (B, 4 * Hp))

    def lstm_step(x, m, h, c, wx, wh, b):
        pre = (jnp.dot(x, wx, preferred_element_type=jnp.float32)
               + jnp.dot(h, wh, preferred_element_type=jnp.float32)
               + b)                                   # (B, 4*Hp)
        f = jax.nn.sigmoid(pre[:, 0 * Hp:1 * Hp])
        i = jax.nn.sigmoid(pre[:, 1 * Hp:2 * Hp])
        o = jax.nn.sigmoid(pre[:, 2 * Hp:3 * Hp])
        g = jnp.tanh(pre[:, 3 * Hp:4 * Hp])
        c_new = c * f + i * g
        h_new = o * jnp.tanh(c_new)
        upd = m > 0.5                                 # (B, 1), broadcast over lanes
        return jnp.where(upd, h_new, h), jnp.where(upd, c_new, c)

    def step(j, carry):
        h1, c1, h2, c2 = carry
        # forward direction at time j
        h1, c1 = lstm_step(emb_ref[j], mask_ref[j], h1, c1, wx1, wh1, b1)
        # backward direction at time T-1-j (interleaved so both chains overlap)
        jb = T - 1 - j
        h2, c2 = lstm_step(emb_ref[jb], mask_ref[jb], h2, c2, wx2, wh2, b2)
        return h1, c1, h2, c2

    z = jnp.zeros((B, Hp), jnp.float32)
    h1, _, h2, _ = jax.lax.fori_loop(0, T, step, (z, z, z, z), unroll=True)
    out_ref[...] = jnp.concatenate([h1, h2], axis=-1)


def _pack_direction(Wf, bf, Wi, bi, Wo_, bo_, Wc, bc):
    """Split each (E+H, H) gate weight into x/h parts, zero-pad H->Hp and stack
    the four gates [f|i|o|c] along the output (lane) dimension."""
    E, H, Hp = DIM_EMB, DIM_HID, HID_PAD

    def pad_w(W):
        wx = jnp.zeros((E, Hp), jnp.float32).at[:, :H].set(W[:E])
        wh = jnp.zeros((Hp, Hp), jnp.float32).at[:H, :H].set(W[E:])
        return wx, wh

    def pad_b(b):
        return jnp.zeros((Hp,), jnp.float32).at[:H].set(b)

    parts = [pad_w(W) for W in (Wf, Wi, Wo_, Wc)]
    wx = jnp.concatenate([p[0] for p in parts], axis=1)               # (E, 4*Hp)
    wh = jnp.concatenate([p[1] for p in parts], axis=1)               # (Hp, 4*Hp)
    b = jnp.concatenate([pad_b(v) for v in (bf, bi, bo_, bc)]).reshape(1, 4 * Hp)
    return wx, wh, b


def lstm_bidir_forward(data, params):
    """data: int32 token ids (B, T). Returns sigmoid logits (B, 1) float32."""
    B, T = data.shape

    # Time-major embedding gather (no separate transpose of the activation).
    emb = params["emb"][data.T]                                       # (T, B, E)
    # Change mask computed once from token IDs (exact, off the serial path).
    mask = (data != data[:, -1:]).astype(jnp.float32).T[:, :, None]   # (T, B, 1)

    wx1, wh1, b1 = _pack_direction(params["Wfh1"], params["bfh1"],
                                   params["Wih1"], params["bih1"],
                                   params["Woh1"], params["boh1"],
                                   params["Wch1"], params["bch1"])
    wx2, wh2, b2 = _pack_direction(params["Wfh2"], params["bfh2"],
                                   params["Wih2"], params["bih2"],
                                   params["Woh2"], params["boh2"],
                                   params["Wch2"], params["bch2"])

    vmem = pl.BlockSpec(memory_space=pltpu.MemorySpace.VMEM)
    h_cat = pl.pallas_call(
        lstm_bidir_kernel,
        out_shape=jax.ShapeDtypeStruct((B, 2 * HID_PAD), jnp.float32),
        in_specs=[vmem] * 8,
        out_specs=vmem,
    )(emb, mask, wx1, wh1, b1, wx2, wh2, b2)

    # Lane-dense kernel output; the 1-wide projection + bo + sigmoid stay here.
    h1 = h_cat[:, :DIM_HID]
    h2 = h_cat[:, HID_PAD:HID_PAD + DIM_HID]
    return jax.nn.sigmoid(
        jnp.concatenate([h1, h2], axis=1) @ params["Wo"] + params["bo"])


if __name__ == "__main__":
    key = jax.random.PRNGKey(0)
    keys = jax.random.split(key, 20)

    B, T = 8, 8
    E, H = DIM_EMB, DIM_HID

    def mk_w(k):
        return 0.1 * jax.random.normal(k, (E + H, H), jnp.float32)

    def mk_b(k):
        return jax.random.normal(k, (H,), jnp.float32)

    params = {
        "emb": jax.random.normal(keys[0], (VOCAB, E), jnp.float32),
        "Wfh1": mk_w(keys[1]), "bfh1": mk_b(keys[2]),
        "Wih1": mk_w(keys[3]), "bih1": mk_b(keys[4]),
        "Woh1": mk_w(keys[5]), "boh1": mk_b(keys[6]),
        "Wch1": mk_w(keys[7]), "bch1": mk_b(keys[8]),
        "Wfh2": mk_w(keys[9]), "bfh2": mk_b(keys[10]),
        "Wih2": mk_w(keys[11]), "bih2": mk_b(keys[12]),
        "Woh2": mk_w(keys[13]), "boh2": mk_b(keys[14]),
        "Wch2": mk_w(keys[15]), "bch2": mk_b(keys[16]),
        "Wo": 0.1 * jax.random.normal(keys[17], (2 * H, 1), jnp.float32),
        "bo": jax.random.normal(keys[18], (1,), jnp.float32),
    }

    data = jax.random.randint(keys[19], (B, T), 0, VOCAB, dtype=jnp.int32)
    # Make the second-to-last token equal the last one (padding-like) so the
    # change_mask exercises both branches during the run.
    data = data.at[:, -2].set(data[:, -1])

    out = jax.block_until_ready(lstm_bidir_forward(data, params))

    # Pure-JAX reference mirroring the PyTorch loop exactly.
    def ref_forward(tok):
        emb = params["emb"][tok]                       # (B, T, E)
        x_last = emb[:, T - 1, :]
        h1 = jnp.zeros((B, H), jnp.float32)
        c1 = jnp.zeros((B, H), jnp.float32)
        h2 = jnp.zeros((B, H), jnp.float32)
        c2 = jnp.zeros((B, H), jnp.float32)

        def gate(xh, Wn, bn):
            return xh @ params[Wn] + params[bn]

        for i in range(T):
            x = emb[:, i, :]
            m = jnp.any(x != x_last, axis=1, keepdims=True)
            xh = jnp.concatenate([x, h1], axis=1)
            f = jax.nn.sigmoid(gate(xh, "Wfh1", "bfh1"))
            ig = jax.nn.sigmoid(gate(xh, "Wih1", "bih1"))
            o = jax.nn.sigmoid(gate(xh, "Woh1", "boh1"))
            g = jnp.tanh(gate(xh, "Wch1", "bch1"))
            c1n = c1 * f + ig * g
            h1n = o * jnp.tanh(c1n)
            c1 = jnp.where(m, c1n, c1)
            h1 = jnp.where(m, h1n, h1)
        for i in range(T - 1, -1, -1):
            x = emb[:, i, :]
            m = jnp.any(x != x_last, axis=1, keepdims=True)
            xh = jnp.concatenate([x, h2], axis=1)
            f = jax.nn.sigmoid(gate(xh, "Wfh2", "bfh2"))
            ig = jax.nn.sigmoid(gate(xh, "Wih2", "bih2"))
            o = jax.nn.sigmoid(gate(xh, "Woh2", "boh2"))
            g = jnp.tanh(gate(xh, "Wch2", "bch2"))
            c2n = c2 * f + ig * g
            h2n = o * jnp.tanh(c2n)
            c2 = jnp.where(m, c2n, c2)
            h2 = jnp.where(m, h2n, h2)
        return jax.nn.sigmoid(
            jnp.concatenate([h1, h2], axis=1) @ params["Wo"] + params["bo"])

    ref = ref_forward(data)
    assert out.shape == (B, 1), out.shape
    assert jnp.allclose(out, ref, atol=1e-4, rtol=1e-4), (out, ref)
    print("KERNEL_OK")
</pallas_src>

<mosaic_0001>
module attributes {stable_mosaic.version = 11 : i64} {
  func.func @lstm_bidir_kernel(%arg0: memref<8x8x32xf32, #tpu.memory_space<vmem>>, %arg1: memref<8x8x1xf32, #tpu.memory_space<vmem>>, %arg2: memref<32x512xf32, #tpu.memory_space<vmem>>, %arg3: memref<128x512xf32, #tpu.memory_space<vmem>>, %arg4: memref<1x512xf32, #tpu.memory_space<vmem>>, %arg5: memref<32x512xf32, #tpu.memory_space<vmem>>, %arg6: memref<128x512xf32, #tpu.memory_space<vmem>>, %arg7: memref<1x512xf32, #tpu.memory_space<vmem>>, %arg8: memref<8x256xf32, #tpu.memory_space<vmem>>) attributes {dimension_semantics = [], scalar_prefetch = 0 : i64, scratch_operands = 0 : i64, tpu.core_type = #tpu.core_type<tc>} {
    %c0 = arith.constant 0 : index
    %c0_0 = arith.constant 0 : index
    %0 = vector.load %arg2[%c0, %c0_0] : memref<32x512xf32, #tpu.memory_space<vmem>>, vector<32x512xf32>
    %c0_1 = arith.constant 0 : index
    %c0_2 = arith.constant 0 : index
    %1 = vector.load %arg3[%c0_1, %c0_2] : memref<128x512xf32, #tpu.memory_space<vmem>>, vector<128x512xf32>
    %c0_3 = arith.constant 0 : index
    %c0_4 = arith.constant 0 : index
    %2 = vector.load %arg5[%c0_3, %c0_4] : memref<32x512xf32, #tpu.memory_space<vmem>>, vector<32x512xf32>
    %c0_5 = arith.constant 0 : index
    %c0_6 = arith.constant 0 : index
    %3 = vector.load %arg6[%c0_5, %c0_6] : memref<128x512xf32, #tpu.memory_space<vmem>>, vector<128x512xf32>
    %c0_7 = arith.constant 0 : index
    %c0_8 = arith.constant 0 : index
    %4 = vector.load %arg4[%c0_7, %c0_8] : memref<1x512xf32, #tpu.memory_space<vmem>>, vector<1x512xf32>
    %5 = vector.shape_cast %4 : vector<1x512xf32> to vector<1x512xf32>
    %6 = vector.broadcast %5 : vector<1x512xf32> to vector<8x512xf32>
    %c0_9 = arith.constant 0 : index
    %c0_10 = arith.constant 0 : index
    %7 = vector.load %arg7[%c0_9, %c0_10] : memref<1x512xf32, #tpu.memory_space<vmem>>, vector<1x512xf32>
    %8 = vector.shape_cast %7 : vector<1x512xf32> to vector<1x512xf32>
    %9 = vector.broadcast %8 : vector<1x512xf32> to vector<8x512xf32>
    %cst = arith.constant 0.000000e+00 : f32
    %10 = vector.broadcast %cst : f32 to vector<8x128xf32>
    %c0_i32 = arith.constant 0 : i32
    %11 = arith.index_cast %c0_i32 : i32 to index
    %c0_11 = arith.constant 0 : index
    %c0_12 = arith.constant 0 : index
    %12 = vector.load %arg0[%11, %c0_11, %c0_12] : memref<8x8x32xf32, #tpu.memory_space<vmem>>, vector<1x8x32xf32>
    %13 = vector.shape_cast %12 : vector<1x8x32xf32> to vector<8x32xf32>
    %14 = arith.index_cast %c0_i32 : i32 to index
    %c0_13 = arith.constant 0 : index
    %c0_14 = arith.constant 0 : index
    %15 = vector.load %arg1[%14, %c0_13, %c0_14] : memref<8x8x1xf32, #tpu.memory_space<vmem>>, vector<1x8x1xf32>
    %16 = vector.shape_cast %15 : vector<1x8x1xf32> to vector<8x1xf32>
    %cst_15 = arith.constant dense<0.000000e+00> : vector<8x512xf32>
    %17 = tpu.matmul %13, %0, %cst_15 {dimension_numbers = #tpu.dot_dimension_numbers<[1], [0], [0], [1], [0, 0, 1, 1], [], []>} : vector<8x32xf32>, vector<32x512xf32>, vector<8x512xf32> -> vector<8x512xf32>
    %cst_16 = arith.constant dense<0.000000e+00> : vector<8x512xf32>
    %18 = tpu.matmul %10, %1, %cst_16 {dimension_numbers = #tpu.dot_dimension_numbers<[1], [0], [0], [1], [0, 0, 1, 1], [], []>} : vector<8x128xf32>, vector<128x512xf32>, vector<8x512xf32> -> vector<8x512xf32>
    %19 = arith.addf %17, %18 : vector<8x512xf32>
    %20 = arith.addf %19, %6 : vector<8x512xf32>
    %21 = vector.extract_strided_slice %20 {offsets = [0, 0], sizes = [8, 128], strides = [1, 1]} : vector<8x512xf32> to vector<8x128xf32>
    %22 = arith.negf %21 : vector<8x128xf32>
    %23 = math.exp %22 : vector<8x128xf32>
    %cst_17 = arith.constant 1.000000e+00 : f32
    %24 = vector.broadcast %cst_17 : f32 to vector<8x128xf32>
    %25 = arith.addf %24, %23 : vector<8x128xf32>
    %26 = arith.divf %24, %25 : vector<8x128xf32>
    %27 = vector.extract_strided_slice %20 {offsets = [0, 128], sizes = [8, 128], strides = [1, 1]} : vector<8x512xf32> to vector<8x128xf32>
    %28 = arith.negf %27 : vector<8x128xf32>
    %29 = math.exp %28 : vector<8x128xf32>
    %cst_18 = arith.constant 1.000000e+00 : f32
    %30 = vector.broadcast %cst_18 : f32 to vector<8x128xf32>
    %31 = arith.addf %30, %29 : vector<8x128xf32>
    %32 = arith.divf %30, %31 : vector<8x128xf32>
    %33 = vector.extract_strided_slice %20 {offsets = [0, 256], sizes = [8, 128], strides = [1, 1]} : vector<8x512xf32> to vector<8x128xf32>
    %34 = arith.negf %33 : vector<8x128xf32>
    %35 = math.exp %34 : vector<8x128xf32>
    %cst_19 = arith.constant 1.000000e+00 : f32
    %36 = vector.broadcast %cst_19 : f32 to vector<8x128xf32>
    %37 = arith.addf %36, %35 : vector<8x128xf32>
    %38 = arith.divf %36, %37 : vector<8x128xf32>
    %39 = vector.extract_strided_slice %20 {offsets = [0, 384], sizes = [8, 128], strides = [1, 1]} : vector<8x512xf32> to vector<8x128xf32>
    %40 = math.tanh %39 : vector<8x128xf32>
    %41 = arith.mulf %10, %26 : vector<8x128xf32>
    %42 = arith.mulf %32, %40 : vector<8x128xf32>
    %43 = arith.addf %41, %42 : vector<8x128xf32>
    %44 = math.tanh %43 : vector<8x128xf32>
    %45 = arith.mulf %38, %44 : vector<8x128xf32>
    %cst_20 = arith.constant 5.000000e-01 : f32
    %46 = vector.broadcast %cst_20 : f32 to vector<8x1xf32>
    %47 = arith.cmpf ogt, %16, %46 : vector<8x1xf32>
    %48 = vector.shape_cast %47 : vector<8x1xi1> to vector<8x1xi1>
    %49 = vector.broadcast %48 : vector<8x1xi1> to vector<8x128xi1>
    %50 = arith.select %49, %45, %10 : vector<8x128xi1>, vector<8x128xf32>
    %51 = vector.shape_cast %47 : vector<8x1xi1> to vector<8x1xi1>
    %52 = vector.broadcast %51 : vector<8x1xi1> to vector<8x128xi1>
    %53 = arith.select %52, %43, %10 : vector<8x128xi1>, vector<8x128xf32>
    %c7_i32 = arith.constant 7 : i32
    %54 = arith.subi %c7_i32, %c0_i32 : i32
    %55 = arith.index_cast %54 : i32 to index
    %c0_21 = arith.constant 0 : index
    %c0_22 = arith.constant 0 : index
    %56 = vector.load %arg0[%55, %c0_21, %c0_22] : memref<8x8x32xf32, #tpu.memory_space<vmem>>, vector<1x8x32xf32>
    %57 = vector.shape_cast %56 : vector<1x8x32xf32> to vector<8x32xf32>
    %58 = arith.index_cast %54 : i32 to index
    %c0_23 = arith.constant 0 : index
    %c0_24 = arith.constant 0 : index
    %59 = vector.load %arg1[%58, %c0_23, %c0_24] : memref<8x8x1xf32, #tpu.memory_space<vmem>>, vector<1x8x1xf32>
    %60 = vector.shape_cast %59 : vector<1x8x1xf32> to vector<8x1xf32>
    %cst_25 = arith.constant dense<0.000000e+00> : vector<8x512xf32>
    %61 = tpu.matmul %57, %2, %cst_25 {dimension_numbers = #tpu.dot_dimension_numbers<[1], [0], [0], [1], [0, 0, 1, 1], [], []>} : vector<8x32xf32>, vector<32x512xf32>, vector<8x512xf32> -> vector<8x512xf32>
    %cst_26 = arith.constant dense<0.000000e+00> : vector<8x512xf32>
    %62 = tpu.matmul %10, %3, %cst_26 {dimension_numbers = #tpu.dot_dimension_numbers<[1], [0], [0], [1], [0, 0, 1, 1], [], []>} : vector<8x128xf32>, vector<128x512xf32>, vector<8x512xf32> -> vector<8x512xf32>
    %63 = arith.addf %61, %62 : vector<8x512xf32>
    %64 = arith.addf %63, %9 : vector<8x512xf32>
    %65 = vector.extract_strided_slice %64 {offsets = [0, 0], sizes = [8, 128], strides = [1, 1]} : vector<8x512xf32> to vector<8x128xf32>
    %66 = arith.negf %65 : vector<8x128xf32>
    %67 = math.exp %66 : vector<8x128xf32>
    %cst_27 = arith.constant 1.000000e+00 : f32
    %68 = vector.broadcast %cst_27 : f32 to vector<8x128xf32>
    %69 = arith.addf %68, %67 : vector<8x128xf32>
    %70 = arith.divf %68, %69 : vector<8x128xf32>
    %71 = vector.extract_strided_slice %64 {offsets = [0, 128], sizes = [8, 128], strides = [1, 1]} : vector<8x512xf32> to vector<8x128xf32>
    %72 = arith.negf %71 : vector<8x128xf32>
    %73 = math.exp %72 : vector<8x128xf32>
    %cst_28 = arith.constant 1.000000e+00 : f32
    %74 = vector.broadcast %cst_28 : f32 to vector<8x128xf32>
    %75 = arith.addf %74, %73 : vector<8x128xf32>
    %76 = arith.divf %74, %75 : vector<8x128xf32>
    %77 = vector.extract_strided_slice %64 {offsets = [0, 256], sizes = [8, 128], strides = [1, 1]} : vector<8x512xf32> to vector<8x128xf32>
    %78 = arith.negf %77 : vector<8x128xf32>
    %79 = math.exp %78 : vector<8x128xf32>
    %cst_29 = arith.constant 1.000000e+00 : f32
    %80 = vector.broadcast %cst_29 : f32 to vector<8x128xf32>
    %81 = arith.addf %80, %79 : vector<8x128xf32>
    %82 = arith.divf %80, %81 : vector<8x128xf32>
    %83 = vector.extract_strided_slice %64 {offsets = [0, 384], sizes = [8, 128], strides = [1, 1]} : vector<8x512xf32> to vector<8x128xf32>
    %84 = math.tanh %83 : vector<8x128xf32>
    %85 = arith.mulf %10, %70 : vector<8x128xf32>
    %86 = arith.mulf %76, %84 : vector<8x128xf32>
    %87 = arith.addf %85, %86 : vector<8x128xf32>
    %88 = math.tanh %87 : vector<8x128xf32>
    %89 = arith.mulf %82, %88 : vector<8x128xf32>
    %cst_30 = arith.constant 5.000000e-01 : f32
    %90 = vector.broadcast %cst_30 : f32 to vector<8x1xf32>
    %91 = arith.cmpf ogt, %60, %90 : vector<8x1xf32>
    %92 = vector.shape_cast %91 : vector<8x1xi1> to vector<8x1xi1>
    %93 = vector.broadcast %92 : vector<8x1xi1> to vector<8x128xi1>
    %94 = arith.select %93, %89, %10 : vector<8x128xi1>, vector<8x128xf32>
    %95 = vector.shape_cast %91 : vector<8x1xi1> to vector<8x1xi1>
    %96 = vector.broadcast %95 : vector<8x1xi1> to vector<8x128xi1>
    %97 = arith.select %96, %87, %10 : vector<8x128xi1>, vector<8x128xf32>
    %c1_i32 = arith.constant 1 : i32
    %98 = arith.index_cast %c1_i32 : i32 to index
    %c0_31 = arith.constant 0 : index
    %c0_32 = arith.constant 0 : index
    %99 = vector.load %arg0[%98, %c0_31, %c0_32] : memref<8x8x32xf32, #tpu.memory_space<vmem>>, vector<1x8x32xf32>
    %100 = vector.shape_cast %99 : vector<1x8x32xf32> to vector<8x32xf32>
    %101 = arith.index_cast %c1_i32 : i32 to index
    %c0_33 = arith.constant 0 : index
    %c0_34 = arith.constant 0 : index
    %102 = vector.load %arg1[%101, %c0_33, %c0_34] : memref<8x8x1xf32, #tpu.memory_space<vmem>>, vector<1x8x1xf32>
    %103 = vector.shape_cast %102 : vector<1x8x1xf32> to vector<8x1xf32>
    %cst_35 = arith.constant dense<0.000000e+00> : vector<8x512xf32>
    %104 = tpu.matmul %100, %0, %cst_35 {dimension_numbers = #tpu.dot_dimension_numbers<[1], [0], [0], [1], [0, 0, 1, 1], [], []>} : vector<8x32xf32>, vector<32x512xf32>, vector<8x512xf32> -> vector<8x512xf32>
    %cst_36 = arith.constant dense<0.000000e+00> : vector<8x512xf32>
    %105 = tpu.matmul %50, %1, %cst_36 {dimension_numbers = #tpu.dot_dimension_numbers<[1], [0], [0], [1], [0, 0, 1, 1], [], []>} : vector<8x128xf32>, vector<128x512xf32>, vector<8x512xf32> -> vector<8x512xf32>
    %106 = arith.addf %104, %105 : vector<8x512xf32>
    %107 = arith.addf %106, %6 : vector<8x512xf32>
    %108 = vector.extract_strided_slice %107 {offsets = [0, 0], sizes = [8, 128], strides = [1, 1]} : vector<8x512xf32> to vector<8x128xf32>
    %109 = arith.negf %108 : vector<8x128xf32>
    %110 = math.exp %109 : vector<8x128xf32>
    %cst_37 = arith.constant 1.000000e+00 : f32
    %111 = vector.broadcast %cst_37 : f32 to vector<8x128xf32>
    %112 = arith.addf %111, %110 : vector<8x128xf32>
    %113 = arith.divf %111, %112 : vector<8x128xf32>
    %114 = vector.extract_strided_slice %107 {offsets = [0, 128], sizes = [8, 128], strides = [1, 1]} : vector<8x512xf32> to vector<8x128xf32>
    %115 = arith.negf %114 : vector<8x128xf32>
    %116 = math.exp %115 : vector<8x128xf32>
    %cst_38 = arith.constant 1.000000e+00 : f32
    %117 = vector.broadcast %cst_38 : f32 to vector<8x128xf32>
    %118 = arith.addf %117, %116 : vector<8x128xf32>
    %119 = arith.divf %117, %118 : vector<8x128xf32>
    %120 = vector.extract_strided_slice %107 {offsets = [0, 256], sizes = [8, 128], strides = [1, 1]} : vector<8x512xf32> to vector<8x128xf32>
    %121 = arith.negf %120 : vector<8x128xf32>
    %122 = math.exp %121 : vector<8x128xf32>
    %cst_39 = arith.constant 1.000000e+00 : f32
    %123 = vector.broadcast %cst_39 : f32 to vector<8x128xf32>
    %124 = arith.addf %123, %122 : vector<8x128xf32>
    %125 = arith.divf %123, %124 : vector<8x128xf32>
    %126 = vector.extract_strided_slice %107 {offsets = [0, 384], sizes = [8, 128], strides = [1, 1]} : vector<8x512xf32> to vector<8x128xf32>
    %127 = math.tanh %126 : vector<8x128xf32>
    %128 = arith.mulf %53, %113 : vector<8x128xf32>
    %129 = arith.mulf %119, %127 : vector<8x128xf32>
    %130 = arith.addf %128, %129 : vector<8x128xf32>
    %131 = math.tanh %130 : vector<8x128xf32>
    %132 = arith.mulf %125, %131 : vector<8x128xf32>
    %cst_40 = arith.constant 5.000000e-01 : f32
    %133 = vector.broadcast %cst_40 : f32 to vector<8x1xf32>
    %134 = arith.cmpf ogt, %103, %133 : vector<8x1xf32>
    %135 = vector.shape_cast %134 : vector<8x1xi1> to vector<8x1xi1>
    %136 = vector.broadcast %135 : vector<8x1xi1> to vector<8x128xi1>
    %137 = arith.select %136, %132, %50 : vector<8x128xi1>, vector<8x128xf32>
    %138 = vector.shape_cast %134 : vector<8x1xi1> to vector<8x1xi1>
    %139 = vector.broadcast %138 : vector<8x1xi1> to vector<8x128xi1>
    %140 = arith.select %139, %130, %53 : vector<8x128xi1>, vector<8x128xf32>
    %c7_i32_41 = arith.constant 7 : i32
    %141 = arith.subi %c7_i32_41, %c1_i32 : i32
    %142 = arith.index_cast %141 : i32 to index
    %c0_42 = arith.constant 0 : index
    %c0_43 = arith.constant 0 : index
    %143 = vector.load %arg0[%142, %c0_42, %c0_43] : memref<8x8x32xf32, #tpu.memory_space<vmem>>, vector<1x8x32xf32>
    %144 = vector.shape_cast %143 : vector<1x8x32xf32> to vector<8x32xf32>
    %145 = arith.index_cast %141 : i32 to index
    %c0_44 = arith.constant 0 : index
    %c0_45 = arith.constant 0 : index
    %146 = vector.load %arg1[%145, %c0_44, %c0_45] : memref<8x8x1xf32, #tpu.memory_space<vmem>>, vector<1x8x1xf32>
    %147 = vector.shape_cast %146 : vector<1x8x1xf32> to vector<8x1xf32>
    %cst_46 = arith.constant dense<0.000000e+00> : vector<8x512xf32>
    %148 = tpu.matmul %144, %2, %cst_46 {dimension_numbers = #tpu.dot_dimension_numbers<[1], [0], [0], [1], [0, 0, 1, 1], [], []>} : vector<8x32xf32>, vector<32x512xf32>, vector<8x512xf32> -> vector<8x512xf32>
    %cst_47 = arith.constant dense<0.000000e+00> : vector<8x512xf32>
    %149 = tpu.matmul %94, %3, %cst_47 {dimension_numbers = #tpu.dot_dimension_numbers<[1], [0], [0], [1], [0, 0, 1, 1], [], []>} : vector<8x128xf32>, vector<128x512xf32>, vector<8x512xf32> -> vector<8x512xf32>
    %150 = arith.addf %148, %149 : vector<8x512xf32>
    %151 = arith.addf %150, %9 : vector<8x512xf32>
    %152 = vector.extract_strided_slice %151 {offsets = [0, 0], sizes = [8, 128], strides = [1, 1]} : vector<8x512xf32> to vector<8x128xf32>
    %153 = arith.negf %152 : vector<8x128xf32>
    %154 = math.exp %153 : vector<8x128xf32>
    %cst_48 = arith.constant 1.000000e+00 : f32
    %155 = vector.broadcast %cst_48 : f32 to vector<8x128xf32>
    %156 = arith.addf %155, %154 : vector<8x128xf32>
    %157 = arith.divf %155, %156 : vector<8x128xf32>
    %158 = vector.extract_strided_slice %151 {offsets = [0, 128], sizes = [8, 128], strides = [1, 1]} : vector<8x512xf32> to vector<8x128xf32>
    %159 = arith.negf %158 : vector<8x128xf32>
    %160 = math.exp %159 : vector<8x128xf32>
    %cst_49 = arith.constant 1.000000e+00 : f32
    %161 = vector.broadcast %cst_49 : f32 to vector<8x128xf32>
    %162 = arith.addf %161, %160 : vector<8x128xf32>
    %163 = arith.divf %161, %162 : vector<8x128xf32>
    %164 = vector.extract_strided_slice %151 {offsets = [0, 256], sizes = [8, 128], strides = [1, 1]} : vector<8x512xf32> to vector<8x128xf32>
    %165 = arith.negf %164 : vector<8x128xf32>
    %166 = math.exp %165 : vector<8x128xf32>
    %cst_50 = arith.constant 1.000000e+00 : f32
    %167 = vector.broadcast %cst_50 : f32 to vector<8x128xf32>
    %168 = arith.addf %167, %166 : vector<8x128xf32>
    %169 = arith.divf %167, %168 : vector<8x128xf32>
    %170 = vector.extract_strided_slice %151 {offsets = [0, 384], sizes = [8, 128], strides = [1, 1]} : vector<8x512xf32> to vector<8x128xf32>
    %171 = math.tanh %170 : vector<8x128xf32>
    %172 = arith.mulf %97, %157 : vector<8x128xf32>
    %173 = arith.mulf %163, %171 : vector<8x128xf32>
    %174 = arith.addf %172, %173 : vector<8x128xf32>
    %175 = math.tanh %174 : vector<8x128xf32>
    %176 = arith.mulf %169, %175 : vector<8x128xf32>
    %cst_51 = arith.constant 5.000000e-01 : f32
    %177 = vector.broadcast %cst_51 : f32 to vector<8x1xf32>
    %178 = arith.cmpf ogt, %147, %177 : vector<8x1xf32>
    %179 = vector.shape_cast %178 : vector<8x1xi1> to vector<8x1xi1>
    %180 = vector.broadcast %179 : vector<8x1xi1> to vector<8x128xi1>
    %181 = arith.select %180, %176, %94 : vector<8x128xi1>, vector<8x128xf32>
    %182 = vector.shape_cast %178 : vector<8x1xi1> to vector<8x1xi1>
    %183 = vector.broadcast %182 : vector<8x1xi1> to vector<8x128xi1>
    %184 = arith.select %183, %174, %97 : vector<8x128xi1>, vector<8x128xf32>
    %c2_i32 = arith.constant 2 : i32
    %185 = arith.index_cast %c2_i32 : i32 to index
    %c0_52 = arith.constant 0 : index
    %c0_53 = arith.constant 0 : index
    %186 = vector.load %arg0[%185, %c0_52, %c0_53] : memref<8x8x32xf32, #tpu.memory_space<vmem>>, vector<1x8x32xf32>
    %187 = vector.shape_cast %186 : vector<1x8x32xf32> to vector<8x32xf32>
    %188 = arith.index_cast %c2_i32 : i32 to index
    %c0_54 = arith.constant 0 : index
    %c0_55 = arith.constant 0 : index
    %189 = vector.load %arg1[%188, %c0_54, %c0_55] : memref<8x8x1xf32, #tpu.memory_space<vmem>>, vector<1x8x1xf32>
    %190 = vector.shape_cast %189 : vector<1x8x1xf32> to vector<8x1xf32>
    %cst_56 = arith.constant dense<0.000000e+00> : vector<8x512xf32>
    %191 = tpu.matmul %187, %0, %cst_56 {dimension_numbers = #tpu.dot_dimension_numbers<[1], [0], [0], [1], [0, 0, 1, 1], [], []>} : vector<8x32xf32>, vector<32x512xf32>, vector<8x512xf32> -> vector<8x512xf32>
    %cst_57 = arith.constant dense<0.000000e+00> : vector<8x512xf32>
    %192 = tpu.matmul %137, %1, %cst_57 {dimension_numbers = #tpu.dot_dimension_numbers<[1], [0], [0], [1], [0, 0, 1, 1], [], []>} : vector<8x128xf32>, vector<128x512xf32>, vector<8x512xf32> -> vector<8x512xf32>
    %193 = arith.addf %191, %192 : vector<8x512xf32>
    %194 = arith.addf %193, %6 : vector<8x512xf32>
    %195 = vector.extract_strided_slice %194 {offsets = [0, 0], sizes = [8, 128], strides = [1, 1]} : vector<8x512xf32> to vector<8x128xf32>
    %196 = arith.negf %195 : vector<8x128xf32>
    %197 = math.exp %196 : vector<8x128xf32>
    %cst_58 = arith.constant 1.000000e+00 : f32
    %198 = vector.broadcast %cst_58 : f32 to vector<8x128xf32>
    %199 = arith.addf %198, %197 : vector<8x128xf32>
    %200 = arith.divf %198, %199 : vector<8x128xf32>
    %201 = vector.extract_strided_slice %194 {offsets = [0, 128], sizes = [8, 128], strides = [1, 1]} : vector<8x512xf32> to vector<8x128xf32>
    %202 = arith.negf %201 : vector<8x128xf32>
    %203 = math.exp %202 : vector<8x128xf32>
    %cst_59 = arith.constant 1.000000e+00 : f32
    %204 = vector.broadcast %cst_59 : f32 to vector<8x128xf32>
    %205 = arith.addf %204, %203 : vector<8x128xf32>
    %206 = arith.divf %204, %205 : vector<8x128xf32>
    %207 = vector.extract_strided_slice %194 {offsets = [0, 256], sizes = [8, 128], strides = [1, 1]} : vector<8x512xf32> to vector<8x128xf32>
    %208 = arith.negf %207 : vector<8x128xf32>
    %209 = math.exp %208 : vector<8x128xf32>
    %cst_60 = arith.constant 1.000000e+00 : f32
    %210 = vector.broadcast %cst_60 : f32 to vector<8x128xf32>
    %211 = arith.addf %210, %209 : vector<8x128xf32>
    %212 = arith.divf %210, %211 : vector<8x128xf32>
    %213 = vector.extract_strided_slice %194 {offsets = [0, 384], sizes = [8, 128], strides = [1, 1]} : vector<8x512xf32> to vector<8x128xf32>
    %214 = math.tanh %213 : vector<8x128xf32>
    %215 = arith.mulf %140, %200 : vector<8x128xf32>
    %216 = arith.mulf %206, %214 : vector<8x128xf32>
    %217 = arith.addf %215, %216 : vector<8x128xf32>
    %218 = math.tanh %217 : vector<8x128xf32>
    %219 = arith.mulf %212, %218 : vector<8x128xf32>
    %cst_61 = arith.constant 5.000000e-01 : f32
    %220 = vector.broadcast %cst_61 : f32 to vector<8x1xf32>
    %221 = arith.cmpf ogt, %190, %220 : vector<8x1xf32>
    %222 = vector.shape_cast %221 : vector<8x1xi1> to vector<8x1xi1>
    %223 = vector.broadcast %222 : vector<8x1xi1> to vector<8x128xi1>
    %224 = arith.select %223, %219, %137 : vector<8x128xi1>, vector<8x128xf32>
    %225 = vector.shape_cast %221 : vector<8x1xi1> to vector<8x1xi1>
    %226 = vector.broadcast %225 : vector<8x1xi1> to vector<8x128xi1>
    %227 = arith.select %226, %217, %140 : vector<8x128xi1>, vector<8x128xf32>
    %c7_i32_62 = arith.constant 7 : i32
    %228 = arith.subi %c7_i32_62, %c2_i32 : i32
    %229 = arith.index_cast %228 : i32 to index
    %c0_63 = arith.constant 0 : index
    %c0_64 = arith.constant 0 : index
    %230 = vector.load %arg0[%229, %c0_63, %c0_64] : memref<8x8x32xf32, #tpu.memory_space<vmem>>, vector<1x8x32xf32>
    %231 = vector.shape_cast %230 : vector<1x8x32xf32> to vector<8x32xf32>
    %232 = arith.index_cast %228 : i32 to index
    %c0_65 = arith.constant 0 : index
    %c0_66 = arith.constant 0 : index
    %233 = vector.load %arg1[%232, %c0_65, %c0_66] : memref<8x8x1xf32, #tpu.memory_space<vmem>>, vector<1x8x1xf32>
    %234 = vector.shape_cast %233 : vector<1x8x1xf32> to vector<8x1xf32>
    %cst_67 = arith.constant dense<0.000000e+00> : vector<8x512xf32>
    %235 = tpu.matmul %231, %2, %cst_67 {dimension_numbers = #tpu.dot_dimension_numbers<[1], [0], [0], [1], [0, 0, 1, 1], [], []>} : vector<8x32xf32>, vector<32x512xf32>, vector<8x512xf32> -> vector<8x512xf32>
    %cst_68 = arith.constant dense<0.000000e+00> : vector<8x512xf32>
    %236 = tpu.matmul %181, %3, %cst_68 {dimension_numbers = #tpu.dot_dimension_numbers<[1], [0], [0], [1], [0, 0, 1, 1], [], []>} : vector<8x128xf32>, vector<128x512xf32>, vector<8x512xf32> -> vector<8x512xf32>
    %237 = arith.addf %235, %236 : vector<8x512xf32>
    %238 = arith.addf %237, %9 : vector<8x512xf32>
    %239 = vector.extract_strided_slice %238 {offsets = [0, 0], sizes = [8, 128], strides = [1, 1]} : vector<8x512xf32> to vector<8x128xf32>
    %240 = arith.negf %239 : vector<8x128xf32>
    %241 = math.exp %240 : vector<8x128xf32>
    %cst_69 = arith.constant 1.000000e+00 : f32
    %242 = vector.broadcast %cst_69 : f32 to vector<8x128xf32>
    %243 = arith.addf %242, %241 : vector<8x128xf32>
    %244 = arith.divf %242, %243 : vector<8x128xf32>
    %245 = vector.extract_strided_slice %238 {offsets = [0, 128], sizes = [8, 128], strides = [1, 1]} : vector<8x512xf32> to vector<8x128xf32>
    %246 = arith.negf %245 : vector<8x128xf32>
    %247 = math.exp %246 : vector<8x128xf32>
    %cst_70 = arith.constant 1.000000e+00 : f32
    %248 = vector.broadcast %cst_70 : f32 to vector<8x128xf32>
    %249 = arith.addf %248, %247 : vector<8x128xf32>
    %250 = arith.divf %248, %249 : vector<8x128xf32>
    %251 = vector.extract_strided_slice %238 {offsets = [0, 256], sizes = [8, 128], strides = [1, 1]} : vector<8x512xf32> to vector<8x128xf32>
    %252 = arith.negf %251 : vector<8x128xf32>
    %253 = math.exp %252 : vector<8x128xf32>
    %cst_71 = arith.constant 1.000000e+00 : f32
    %254 = vector.broadcast %cst_71 : f32 to vector<8x128xf32>
    %255 = arith.addf %254, %253 : vector<8x128xf32>
    %256 = arith.divf %254, %255 : vector<8x128xf32>
    %257 = vector.extract_strided_slice %238 {offsets = [0, 384], sizes = [8, 128], strides = [1, 1]} : vector<8x512xf32> to vector<8x128xf32>
    %258 = math.tanh %257 : vector<8x128xf32>
    %259 = arith.mulf %184, %244 : vector<8x128xf32>
    %260 = arith.mulf %250, %258 : vector<8x128xf32>
    %261 = arith.addf %259, %260 : vector<8x128xf32>
    %262 = math.tanh %261 : vector<8x128xf32>
    %263 = arith.mulf %256, %262 : vector<8x128xf32>
    %cst_72 = arith.constant 5.000000e-01 : f32
    %264 = vector.broadcast %cst_72 : f32 to vector<8x1xf32>
    %265 = arith.cmpf ogt, %234, %264 : vector<8x1xf32>
    %266 = vector.shape_cast %265 : vector<8x1xi1> to vector<8x1xi1>
    %267 = vector.broadcast %266 : vector<8x1xi1> to vector<8x128xi1>
    %268 = arith.select %267, %263, %181 : vector<8x128xi1>, vector<8x128xf32>
    %269 = vector.shape_cast %265 : vector<8x1xi1> to vector<8x1xi1>
    %270 = vector.broadcast %269 : vector<8x1xi1> to vector<8x128xi1>
    %271 = arith.select %270, %261, %184 : vector<8x128xi1>, vector<8x128xf32>
    %c3_i32 = arith.constant 3 : i32
    %272 = arith.index_cast %c3_i32 : i32 to index
    %c0_73 = arith.constant 0 : index
    %c0_74 = arith.constant 0 : index
    %273 = vector.load %arg0[%272, %c0_73, %c0_74] : memref<8x8x32xf32, #tpu.memory_space<vmem>>, vector<1x8x32xf32>
    %274 = vector.shape_cast %273 : vector<1x8x32xf32> to vector<8x32xf32>
    %275 = arith.index_cast %c3_i32 : i32 to index
    %c0_75 = arith.constant 0 : index
    %c0_76 = arith.constant 0 : index
    %276 = vector.load %arg1[%275, %c0_75, %c0_76] : memref<8x8x1xf32, #tpu.memory_space<vmem>>, vector<1x8x1xf32>
    %277 = vector.shape_cast %276 : vector<1x8x1xf32> to vector<8x1xf32>
    %cst_77 = arith.constant dense<0.000000e+00> : vector<8x512xf32>
    %278 = tpu.matmul %274, %0, %cst_77 {dimension_numbers = #tpu.dot_dimension_numbers<[1], [0], [0], [1], [0, 0, 1, 1], [], []>} : vector<8x32xf32>, vector<32x512xf32>, vector<8x512xf32> -> vector<8x512xf32>
    %cst_78 = arith.constant dense<0.000000e+00> : vector<8x512xf32>
    %279 = tpu.matmul %224, %1, %cst_78 {dimension_numbers = #tpu.dot_dimension_numbers<[1], [0], [0], [1], [0, 0, 1, 1], [], []>} : vector<8x128xf32>, vector<128x512xf32>, vector<8x512xf32> -> vector<8x512xf32>
    %280 = arith.addf %278, %279 : vector<8x512xf32>
    %281 = arith.addf %280, %6 : vector<8x512xf32>
    %282 = vector.extract_strided_slice %281 {offsets = [0, 0], sizes = [8, 128], strides = [1, 1]} : vector<8x512xf32> to vector<8x128xf32>
    %283 = arith.negf %282 : vector<8x128xf32>
    %284 = math.exp %283 : vector<8x128xf32>
    %cst_79 = arith.constant 1.000000e+00 : f32
    %285 = vector.broadcast %cst_79 : f32 to vector<8x128xf32>
    %286 = arith.addf %285, %284 : vector<8x128xf32>
    %287 = arith.divf %285, %286 : vector<8x128xf32>
    %288 = vector.extract_strided_slice %281 {offsets = [0, 128], sizes = [8, 128], strides = [1, 1]} : vector<8x512xf32> to vector<8x128xf32>
    %289 = arith.negf %288 : vector<8x128xf32>
    %290 = math.exp %289 : vector<8x128xf32>
    %cst_80 = arith.constant 1.000000e+00 : f32
    %291 = vector.broadcast %cst_80 : f32 to vector<8x128xf32>
    %292 = arith.addf %291, %290 : vector<8x128xf32>
    %293 = arith.divf %291, %292 : vector<8x128xf32>
    %294 = vector.extract_strided_slice %281 {offsets = [0, 256], sizes = [8, 128], strides = [1, 1]} : vector<8x512xf32> to vector<8x128xf32>
    %295 = arith.negf %294 : vector<8x128xf32>
    %296 = math.exp %295 : vector<8x128xf32>
    %cst_81 = arith.constant 1.000000e+00 : f32
    %297 = vector.broadcast %cst_81 : f32 to vector<8x128xf32>
    %298 = arith.addf %297, %296 : vector<8x128xf32>
    %299 = arith.divf %297, %298 : vector<8x128xf32>
    %300 = vector.extract_strided_slice %281 {offsets = [0, 384], sizes = [8, 128], strides = [1, 1]} : vector<8x512xf32> to vector<8x128xf32>
    %301 = math.tanh %300 : vector<8x128xf32>
    %302 = arith.mulf %227, %287 : vector<8x128xf32>
    %303 = arith.mulf %293, %301 : vector<8x128xf32>
    %304 = arith.addf %302, %303 : vector<8x128xf32>
    %305 = math.tanh %304 : vector<8x128xf32>
    %306 = arith.mulf %299, %305 : vector<8x128xf32>
    %cst_82 = arith.constant 5.000000e-01 : f32
    %307 = vector.broadcast %cst_82 : f32 to vector<8x1xf32>
    %308 = arith.cmpf ogt, %277, %307 : vector<8x1xf32>
    %309 = vector.shape_cast %308 : vector<8x1xi1> to vector<8x1xi1>
    %310 = vector.broadcast %309 : vector<8x1xi1> to vector<8x128xi1>
    %311 = arith.select %310, %306, %224 : vector<8x128xi1>, vector<8x128xf32>
    %312 = vector.shape_cast %308 : vector<8x1xi1> to vector<8x1xi1>
    %313 = vector.broadcast %312 : vector<8x1xi1> to vector<8x128xi1>
    %314 = arith.select %313, %304, %227 : vector<8x128xi1>, vector<8x128xf32>
    %c7_i32_83 = arith.constant 7 : i32
    %315 = arith.subi %c7_i32_83, %c3_i32 : i32
    %316 = arith.index_cast %315 : i32 to index
    %c0_84 = arith.constant 0 : index
    %c0_85 = arith.constant 0 : index
    %317 = vector.load %arg0[%316, %c0_84, %c0_85] : memref<8x8x32xf32, #tpu.memory_space<vmem>>, vector<1x8x32xf32>
    %318 = vector.shape_cast %317 : vector<1x8x32xf32> to vector<8x32xf32>
    %319 = arith.index_cast %315 : i32 to index
    %c0_86 = arith.constant 0 : index
    %c0_87 = arith.constant 0 : index
    %320 = vector.load %arg1[%319, %c0_86, %c0_87] : memref<8x8x1xf32, #tpu.memory_space<vmem>>, vector<1x8x1xf32>
    %321 = vector.shape_cast %320 : vector<1x8x1xf32> to vector<8x1xf32>
    %cst_88 = arith.constant dense<0.000000e+00> : vector<8x512xf32>
    %322 = tpu.matmul %318, %2, %cst_88 {dimension_numbers = #tpu.dot_dimension_numbers<[1], [0], [0], [1], [0, 0, 1, 1], [], []>} : vector<8x32xf32>, vector<32x512xf32>, vector<8x512xf32> -> vector<8x512xf32>
    %cst_89 = arith.constant dense<0.000000e+00> : vector<8x512xf32>
    %323 = tpu.matmul %268, %3, %cst_89 {dimension_numbers = #tpu.dot_dimension_numbers<[1], [0], [0], [1], [0, 0, 1, 1], [], []>} : vector<8x128xf32>, vector<128x512xf32>, vector<8x512xf32> -> vector<8x512xf32>
    %324 = arith.addf %322, %323 : vector<8x512xf32>
    %325 = arith.addf %324, %9 : vector<8x512xf32>
    %326 = vector.extract_strided_slice %325 {offsets = [0, 0], sizes = [8, 128], strides = [1, 1]} : vector<8x512xf32> to vector<8x128xf32>
    %327 = arith.negf %326 : vector<8x128xf32>
    %328 = math.exp %327 : vector<8x128xf32>
    %cst_90 = arith.constant 1.000000e+00 : f32
    %329 = vector.broadcast %cst_90 : f32 to vector<8x128xf32>
    %330 = arith.addf %329, %328 : vector<8x128xf32>
    %331 = arith.divf %329, %330 : vector<8x128xf32>
    %332 = vector.extract_strided_slice %325 {offsets = [0, 128], sizes = [8, 128], strides = [1, 1]} : vector<8x512xf32> to vector<8x128xf32>
    %333 = arith.negf %332 : vector<8x128xf32>
    %334 = math.exp %333 : vector<8x128xf32>
    %cst_91 = arith.constant 1.000000e+00 : f32
    %335 = vector.broadcast %cst_91 : f32 to vector<8x128xf32>
    %336 = arith.addf %335, %334 : vector<8x128xf32>
    %337 = arith.divf %335, %336 : vector<8x128xf32>
    %338 = vector.extract_strided_slice %325 {offsets = [0, 256], sizes = [8, 128], strides = [1, 1]} : vector<8x512xf32> to vector<8x128xf32>
    %339 = arith.negf %338 : vector<8x128xf32>
    %340 = math.exp %339 : vector<8x128xf32>
    %cst_92 = arith.constant 1.000000e+00 : f32
    %341 = vector.broadcast %cst_92 : f32 to vector<8x128xf32>
    %342 = arith.addf %341, %340 : vector<8x128xf32>
    %343 = arith.divf %341, %342 : vector<8x128xf32>
    %344 = vector.extract_strided_slice %325 {offsets = [0, 384], sizes = [8, 128], strides = [1, 1]} : vector<8x512xf32> to vector<8x128xf32>
    %345 = math.tanh %344 : vector<8x128xf32>
    %346 = arith.mulf %271, %331 : vector<8x128xf32>
    %347 = arith.mulf %337, %345 : vector<8x128xf32>
    %348 = arith.addf %346, %347 : vector<8x128xf32>
    %349 = math.tanh %348 : vector<8x128xf32>
    %350 = arith.mulf %343, %349 : vector<8x128xf32>
    %cst_93 = arith.constant 5.000000e-01 : f32
    %351 = vector.broadcast %cst_93 : f32 to vector<8x1xf32>
    %352 = arith.cmpf ogt, %321, %351 : vector<8x1xf32>
    %353 = vector.shape_cast %352 : vector<8x1xi1> to vector<8x1xi1>
    %354 = vector.broadcast %353 : vector<8x1xi1> to vector<8x128xi1>
    %355 = arith.select %354, %350, %268 : vector<8x128xi1>, vector<8x128xf32>
    %356 = vector.shape_cast %352 : vector<8x1xi1> to vector<8x1xi1>
    %357 = vector.broadcast %356 : vector<8x1xi1> to vector<8x128xi1>
    %358 = arith.select %357, %348, %271 : vector<8x128xi1>, vector<8x128xf32>
    %c4_i32 = arith.constant 4 : i32
    %359 = arith.index_cast %c4_i32 : i32 to index
    %c0_94 = arith.constant 0 : index
    %c0_95 = arith.constant 0 : index
    %360 = vector.load %arg0[%359, %c0_94, %c0_95] : memref<8x8x32xf32, #tpu.memory_space<vmem>>, vector<1x8x32xf32>
    %361 = vector.shape_cast %360 : vector<1x8x32xf32> to vector<8x32xf32>
    %362 = arith.index_cast %c4_i32 : i32 to index
    %c0_96 = arith.constant 0 : index
    %c0_97 = arith.constant 0 : index
    %363 = vector.load %arg1[%362, %c0_96, %c0_97] : memref<8x8x1xf32, #tpu.memory_space<vmem>>, vector<1x8x1xf32>
    %364 = vector.shape_cast %363 : vector<1x8x1xf32> to vector<8x1xf32>
    %cst_98 = arith.constant dense<0.000000e+00> : vector<8x512xf32>
    %365 = tpu.matmul %361, %0, %cst_98 {dimension_numbers = #tpu.dot_dimension_numbers<[1], [0], [0], [1], [0, 0, 1, 1], [], []>} : vector<8x32xf32>, vector<32x512xf32>, vector<8x512xf32> -> vector<8x512xf32>
    %cst_99 = arith.constant dense<0.000000e+00> : vector<8x512xf32>
    %366 = tpu.matmul %311, %1, %cst_99 {dimension_numbers = #tpu.dot_dimension_numbers<[1], [0], [0], [1], [0, 0, 1, 1], [], []>} : vector<8x128xf32>, vector<128x512xf32>, vector<8x512xf32> -> vector<8x512xf32>
    %367 = arith.addf %365, %366 : vector<8x512xf32>
    %368 = arith.addf %367, %6 : vector<8x512xf32>
    %369 = vector.extract_strided_slice %368 {offsets = [0, 0], sizes = [8, 128], strides = [1, 1]} : vector<8x512xf32> to vector<8x128xf32>
    %370 = arith.negf %369 : vector<8x128xf32>
    %371 = math.exp %370 : vector<8x128xf32>
    %cst_100 = arith.constant 1.000000e+00 : f32
    %372 = vector.broadcast %cst_100 : f32 to vector<8x128xf32>
    %373 = arith.addf %372, %371 : vector<8x128xf32>
    %374 = arith.divf %372, %373 : vector<8x128xf32>
    %375 = vector.extract_strided_slice %368 {offsets = [0, 128], sizes = [8, 128], strides = [1, 1]} : vector<8x512xf32> to vector<8x128xf32>
    %376 = arith.negf %375 : vector<8x128xf32>
    %377 = math.exp %376 : vector<8x128xf32>
    %cst_101 = arith.constant 1.000000e+00 : f32
    %378 = vector.broadcast %cst_101 : f32 to vector<8x128xf32>
    %379 = arith.addf %378, %377 : vector<8x128xf32>
    %380 = arith.divf %378, %379 : vector<8x128xf32>
    %381 = vector.extract_strided_slice %368 {offsets = [0, 256], sizes = [8, 128], strides = [1, 1]} : vector<8x512xf32> to vector<8x128xf32>
    %382 = arith.negf %381 : vector<8x128xf32>
    %383 = math.exp %382 : vector<8x128xf32>
    %cst_102 = arith.constant 1.000000e+00 : f32
    %384 = vector.broadcast %cst_102 : f32 to vector<8x128xf32>
    %385 = arith.addf %384, %383 : vector<8x128xf32>
    %386 = arith.divf %384, %385 : vector<8x128xf32>
    %387 = vector.extract_strided_slice %368 {offsets = [0, 384], sizes = [8, 128], strides = [1, 1]} : vector<8x512xf32> to vector<8x128xf32>
    %388 = math.tanh %387 : vector<8x128xf32>
    %389 = arith.mulf %314, %374 : vector<8x128xf32>
    %390 = arith.mulf %380, %388 : vector<8x128xf32>
    %391 = arith.addf %389, %390 : vector<8x128xf32>
    %392 = math.tanh %391 : vector<8x128xf32>
    %393 = arith.mulf %386, %392 : vector<8x128xf32>
    %cst_103 = arith.constant 5.000000e-01 : f32
    %394 = vector.broadcast %cst_103 : f32 to vector<8x1xf32>
    %395 = arith.cmpf ogt, %364, %394 : vector<8x1xf32>
    %396 = vector.shape_cast %395 : vector<8x1xi1> to vector<8x1xi1>
    %397 = vector.broadcast %396 : vector<8x1xi1> to vector<8x128xi1>
    %398 = arith.select %397, %393, %311 : vector<8x128xi1>, vector<8x128xf32>
    %399 = vector.shape_cast %395 : vector<8x1xi1> to vector<8x1xi1>
    %400 = vector.broadcast %399 : vector<8x1xi1> to vector<8x128xi1>
    %401 = arith.select %400, %391, %314 : vector<8x128xi1>, vector<8x128xf32>
    %c7_i32_104 = arith.constant 7 : i32
    %402 = arith.subi %c7_i32_104, %c4_i32 : i32
    %403 = arith.index_cast %402 : i32 to index
    %c0_105 = arith.constant 0 : index
    %c0_106 = arith.constant 0 : index
    %404 = vector.load %arg0[%403, %c0_105, %c0_106] : memref<8x8x32xf32, #tpu.memory_space<vmem>>, vector<1x8x32xf32>
    %405 = vector.shape_cast %404 : vector<1x8x32xf32> to vector<8x32xf32>
    %406 = arith.index_cast %402 : i32 to index
    %c0_107 = arith.constant 0 : index
    %c0_108 = arith.constant 0 : index
    %407 = vector.load %arg1[%406, %c0_107, %c0_108] : memref<8x8x1xf32, #tpu.memory_space<vmem>>, vector<1x8x1xf32>
    %408 = vector.shape_cast %407 : vector<1x8x1xf32> to vector<8x1xf32>
    %cst_109 = arith.constant dense<0.000000e+00> : vector<8x512xf32>
    %409 = tpu.matmul %405, %2, %cst_109 {dimension_numbers = #tpu.dot_dimension_numbers<[1], [0], [0], [1], [0, 0, 1, 1], [], []>} : vector<8x32xf32>, vector<32x512xf32>, vector<8x512xf32> -> vector<8x512xf32>
    %cst_110 = arith.constant dense<0.000000e+00> : vector<8x512xf32>
    %410 = tpu.matmul %355, %3, %cst_110 {dimension_numbers = #tpu.dot_dimension_numbers<[1], [0], [0], [1], [0, 0, 1, 1], [], []>} : vector<8x128xf32>, vector<128x512xf32>, vector<8x512xf32> -> vector<8x512xf32>
    %411 = arith.addf %409, %410 : vector<8x512xf32>
    %412 = arith.addf %411, %9 : vector<8x512xf32>
    %413 = vector.extract_strided_slice %412 {offsets = [0, 0], sizes = [8, 128], strides = [1, 1]} : vector<8x512xf32> to vector<8x128xf32>
    %414 = arith.negf %413 : vector<8x128xf32>
    %415 = math.exp %414 : vector<8x128xf32>
    %cst_111 = arith.constant 1.000000e+00 : f32
    %416 = vector.broadcast %cst_111 : f32 to vector<8x128xf32>
    %417 = arith.addf %416, %415 : vector<8x128xf32>
    %418 = arith.divf %416, %417 : vector<8x128xf32>
    %419 = vector.extract_strided_slice %412 {offsets = [0, 128], sizes = [8, 128], strides = [1, 1]} : vector<8x512xf32> to vector<8x128xf32>
    %420 = arith.negf %419 : vector<8x128xf32>
    %421 = math.exp %420 : vector<8x128xf32>
    %cst_112 = arith.constant 1.000000e+00 : f32
    %422 = vector.broadcast %cst_112 : f32 to vector<8x128xf32>
    %423 = arith.addf %422, %421 : vector<8x128xf32>
    %424 = arith.divf %422, %423 : vector<8x128xf32>
    %425 = vector.extract_strided_slice %412 {offsets = [0, 256], sizes = [8, 128], strides = [1, 1]} : vector<8x512xf32> to vector<8x128xf32>
    %426 = arith.negf %425 : vector<8x128xf32>
    %427 = math.exp %426 : vector<8x128xf32>
    %cst_113 = arith.constant 1.000000e+00 : f32
    %428 = vector.broadcast %cst_113 : f32 to vector<8x128xf32>
    %429 = arith.addf %428, %427 : vector<8x128xf32>
    %430 = arith.divf %428, %429 : vector<8x128xf32>
    %431 = vector.extract_strided_slice %412 {offsets = [0, 384], sizes = [8, 128], strides = [1, 1]} : vector<8x512xf32> to vector<8x128xf32>
    %432 = math.tanh %431 : vector<8x128xf32>
    %433 = arith.mulf %358, %418 : vector<8x128xf32>
    %434 = arith.mulf %424, %432 : vector<8x128xf32>
    %435 = arith.addf %433, %434 : vector<8x128xf32>
    %436 = math.tanh %435 : vector<8x128xf32>
    %437 = arith.mulf %430, %436 : vector<8x128xf32>
    %cst_114 = arith.constant 5.000000e-01 : f32
    %438 = vector.broadcast %cst_114 : f32 to vector<8x1xf32>
    %439 = arith.cmpf ogt, %408, %438 : vector<8x1xf32>
    %440 = vector.shape_cast %439 : vector<8x1xi1> to vector<8x1xi1>
    %441 = vector.broadcast %440 : vector<8x1xi1> to vector<8x128xi1>
    %442 = arith.select %441, %437, %355 : vector<8x128xi1>, vector<8x128xf32>
    %443 = vector.shape_cast %439 : vector<8x1xi1> to vector<8x1xi1>
    %444 = vector.broadcast %443 : vector<8x1xi1> to vector<8x128xi1>
    %445 = arith.select %444, %435, %358 : vector<8x128xi1>, vector<8x128xf32>
    %c5_i32 = arith.constant 5 : i32
    %446 = arith.index_cast %c5_i32 : i32 to index
    %c0_115 = arith.constant 0 : index
    %c0_116 = arith.constant 0 : index
    %447 = vector.load %arg0[%446, %c0_115, %c0_116] : memref<8x8x32xf32, #tpu.memory_space<vmem>>, vector<1x8x32xf32>
    %448 = vector.shape_cast %447 : vector<1x8x32xf32> to vector<8x32xf32>
    %449 = arith.index_cast %c5_i32 : i32 to index
    %c0_117 = arith.constant 0 : index
    %c0_118 = arith.constant 0 : index
    %450 = vector.load %arg1[%449, %c0_117, %c0_118] : memref<8x8x1xf32, #tpu.memory_space<vmem>>, vector<1x8x1xf32>
    %451 = vector.shape_cast %450 : vector<1x8x1xf32> to vector<8x1xf32>
    %cst_119 = arith.constant dense<0.000000e+00> : vector<8x512xf32>
    %452 = tpu.matmul %448, %0, %cst_119 {dimension_numbers = #tpu.dot_dimension_numbers<[1], [0], [0], [1], [0, 0, 1, 1], [], []>} : vector<8x32xf32>, vector<32x512xf32>, vector<8x512xf32> -> vector<8x512xf32>
    %cst_120 = arith.constant dense<0.000000e+00> : vector<8x512xf32>
    %453 = tpu.matmul %398, %1, %cst_120 {dimension_numbers = #tpu.dot_dimension_numbers<[1], [0], [0], [1], [0, 0, 1, 1], [], []>} : vector<8x128xf32>, vector<128x512xf32>, vector<8x512xf32> -> vector<8x512xf32>
    %454 = arith.addf %452, %453 : vector<8x512xf32>
    %455 = arith.addf %454, %6 : vector<8x512xf32>
    %456 = vector.extract_strided_slice %455 {offsets = [0, 0], sizes = [8, 128], strides = [1, 1]} : vector<8x512xf32> to vector<8x128xf32>
    %457 = arith.negf %456 : vector<8x128xf32>
    %458 = math.exp %457 : vector<8x128xf32>
    %cst_121 = arith.constant 1.000000e+00 : f32
    %459 = vector.broadcast %cst_121 : f32 to vector<8x128xf32>
    %460 = arith.addf %459, %458 : vector<8x128xf32>
    %461 = arith.divf %459, %460 : vector<8x128xf32>
    %462 = vector.extract_strided_slice %455 {offsets = [0, 128], sizes = [8, 128], strides = [1, 1]} : vector<8x512xf32> to vector<8x128xf32>
    %463 = arith.negf %462 : vector<8x128xf32>
    %464 = math.exp %463 : vector<8x128xf32>
    %cst_122 = arith.constant 1.000000e+00 : f32
    %465 = vector.broadcast %cst_122 : f32 to vector<8x128xf32>
    %466 = arith.addf %465, %464 : vector<8x128xf32>
    %467 = arith.divf %465, %466 : vector<8x128xf32>
    %468 = vector.extract_strided_slice %455 {offsets = [0, 256], sizes = [8, 128], strides = [1, 1]} : vector<8x512xf32> to vector<8x128xf32>
    %469 = arith.negf %468 : vector<8x128xf32>
    %470 = math.exp %469 : vector<8x128xf32>
    %cst_123 = arith.constant 1.000000e+00 : f32
    %471 = vector.broadcast %cst_123 : f32 to vector<8x128xf32>
    %472 = arith.addf %471, %470 : vector<8x128xf32>
    %473 = arith.divf %471, %472 : vector<8x128xf32>
    %474 = vector.extract_strided_slice %455 {offsets = [0, 384], sizes = [8, 128], strides = [1, 1]} : vector<8x512xf32> to vector<8x128xf32>
    %475 = math.tanh %474 : vector<8x128xf32>
    %476 = arith.mulf %401, %461 : vector<8x128xf32>
    %477 = arith.mulf %467, %475 : vector<8x128xf32>
    %478 = arith.addf %476, %477 : vector<8x128xf32>
    %479 = math.tanh %478 : vector<8x128xf32>
    %480 = arith.mulf %473, %479 : vector<8x128xf32>
    %cst_124 = arith.constant 5.000000e-01 : f32
    %481 = vector.broadcast %cst_124 : f32 to vector<8x1xf32>
    %482 = arith.cmpf ogt, %451, %481 : vector<8x1xf32>
    %483 = vector.shape_cast %482 : vector<8x1xi1> to vector<8x1xi1>
    %484 = vector.broadcast %483 : vector<8x1xi1> to vector<8x128xi1>
    %485 = arith.select %484, %480, %398 : vector<8x128xi1>, vector<8x128xf32>
    %486 = vector.shape_cast %482 : vector<8x1xi1> to vector<8x1xi1>
    %487 = vector.broadcast %486 : vector<8x1xi1> to vector<8x128xi1>
    %488 = arith.select %487, %478, %401 : vector<8x128xi1>, vector<8x128xf32>
    %c7_i32_125 = arith.constant 7 : i32
    %489 = arith.subi %c7_i32_125, %c5_i32 : i32
    %490 = arith.index_cast %489 : i32 to index
    %c0_126 = arith.constant 0 : index
    %c0_127 = arith.constant 0 : index
    %491 = vector.load %arg0[%490, %c0_126, %c0_127] : memref<8x8x32xf32, #tpu.memory_space<vmem>>, vector<1x8x32xf32>
    %492 = vector.shape_cast %491 : vector<1x8x32xf32> to vector<8x32xf32>
    %493 = arith.index_cast %489 : i32 to index
    %c0_128 = arith.constant 0 : index
    %c0_129 = arith.constant 0 : index
    %494 = vector.load %arg1[%493, %c0_128, %c0_129] : memref<8x8x1xf32, #tpu.memory_space<vmem>>, vector<1x8x1xf32>
    %495 = vector.shape_cast %494 : vector<1x8x1xf32> to vector<8x1xf32>
    %cst_130 = arith.constant dense<0.000000e+00> : vector<8x512xf32>
    %496 = tpu.matmul %492, %2, %cst_130 {dimension_numbers = #tpu.dot_dimension_numbers<[1], [0], [0], [1], [0, 0, 1, 1], [], []>} : vector<8x32xf32>, vector<32x512xf32>, vector<8x512xf32> -> vector<8x512xf32>
    %cst_131 = arith.constant dense<0.000000e+00> : vector<8x512xf32>
    %497 = tpu.matmul %442, %3, %cst_131 {dimension_numbers = #tpu.dot_dimension_numbers<[1], [0], [0], [1], [0, 0, 1, 1], [], []>} : vector<8x128xf32>, vector<128x512xf32>, vector<8x512xf32> -> vector<8x512xf32>
    %498 = arith.addf %496, %497 : vector<8x512xf32>
    %499 = arith.addf %498, %9 : vector<8x512xf32>
    %500 = vector.extract_strided_slice %499 {offsets = [0, 0], sizes = [8, 128], strides = [1, 1]} : vector<8x512xf32> to vector<8x128xf32>
    %501 = arith.negf %500 : vector<8x128xf32>
    %502 = math.exp %501 : vector<8x128xf32>
    %cst_132 = arith.constant 1.000000e+00 : f32
    %503 = vector.broadcast %cst_132 : f32 to vector<8x128xf32>
    %504 = arith.addf %503, %502 : vector<8x128xf32>
    %505 = arith.divf %503, %504 : vector<8x128xf32>
    %506 = vector.extract_strided_slice %499 {offsets = [0, 128], sizes = [8, 128], strides = [1, 1]} : vector<8x512xf32> to vector<8x128xf32>
    %507 = arith.negf %506 : vector<8x128xf32>
    %508 = math.exp %507 : vector<8x128xf32>
    %cst_133 = arith.constant 1.000000e+00 : f32
    %509 = vector.broadcast %cst_133 : f32 to vector<8x128xf32>
    %510 = arith.addf %509, %508 : vector<8x128xf32>
    %511 = arith.divf %509, %510 : vector<8x128xf32>
    %512 = vector.extract_strided_slice %499 {offsets = [0, 256], sizes = [8, 128], strides = [1, 1]} : vector<8x512xf32> to vector<8x128xf32>
    %513 = arith.negf %512 : vector<8x128xf32>
    %514 = math.exp %513 : vector<8x128xf32>
    %cst_134 = arith.constant 1.000000e+00 : f32
    %515 = vector.broadcast %cst_134 : f32 to vector<8x128xf32>
    %516 = arith.addf %515, %514 : vector<8x128xf32>
    %517 = arith.divf %515, %516 : vector<8x128xf32>
    %518 = vector.extract_strided_slice %499 {offsets = [0, 384], sizes = [8, 128], strides = [1, 1]} : vector<8x512xf32> to vector<8x128xf32>
    %519 = math.tanh %518 : vector<8x128xf32>
    %520 = arith.mulf %445, %505 : vector<8x128xf32>
    %521 = arith.mulf %511, %519 : vector<8x128xf32>
    %522 = arith.addf %520, %521 : vector<8x128xf32>
    %523 = math.tanh %522 : vector<8x128xf32>
    %524 = arith.mulf %517, %523 : vector<8x128xf32>
    %cst_135 = arith.constant 5.000000e-01 : f32
    %525 = vector.broadcast %cst_135 : f32 to vector<8x1xf32>
    %526 = arith.cmpf ogt, %495, %525 : vector<8x1xf32>
    %527 = vector.shape_cast %526 : vector<8x1xi1> to vector<8x1xi1>
    %528 = vector.broadcast %527 : vector<8x1xi1> to vector<8x128xi1>
    %529 = arith.select %528, %524, %442 : vector<8x128xi1>, vector<8x128xf32>
    %530 = vector.shape_cast %526 : vector<8x1xi1> to vector<8x1xi1>
    %531 = vector.broadcast %530 : vector<8x1xi1> to vector<8x128xi1>
    %532 = arith.select %531, %522, %445 : vector<8x128xi1>, vector<8x128xf32>
    %c6_i32 = arith.constant 6 : i32
    %533 = arith.index_cast %c6_i32 : i32 to index
    %c0_136 = arith.constant 0 : index
    %c0_137 = arith.constant 0 : index
    %534 = vector.load %arg0[%533, %c0_136, %c0_137] : memref<8x8x32xf32, #tpu.memory_space<vmem>>, vector<1x8x32xf32>
    %535 = vector.shape_cast %534 : vector<1x8x32xf32> to vector<8x32xf32>
    %536 = arith.index_cast %c6_i32 : i32 to index
    %c0_138 = arith.constant 0 : index
    %c0_139 = arith.constant 0 : index
    %537 = vector.load %arg1[%536, %c0_138, %c0_139] : memref<8x8x1xf32, #tpu.memory_space<vmem>>, vector<1x8x1xf32>
    %538 = vector.shape_cast %537 : vector<1x8x1xf32> to vector<8x1xf32>
    %cst_140 = arith.constant dense<0.000000e+00> : vector<8x512xf32>
    %539 = tpu.matmul %535, %0, %cst_140 {dimension_numbers = #tpu.dot_dimension_numbers<[1], [0], [0], [1], [0, 0, 1, 1], [], []>} : vector<8x32xf32>, vector<32x512xf32>, vector<8x512xf32> -> vector<8x512xf32>
    %cst_141 = arith.constant dense<0.000000e+00> : vector<8x512xf32>
    %540 = tpu.matmul %485, %1, %cst_141 {dimension_numbers = #tpu.dot_dimension_numbers<[1], [0], [0], [1], [0, 0, 1, 1], [], []>} : vector<8x128xf32>, vector<128x512xf32>, vector<8x512xf32> -> vector<8x512xf32>
    %541 = arith.addf %539, %540 : vector<8x512xf32>
    %542 = arith.addf %541, %6 : vector<8x512xf32>
    %543 = vector.extract_strided_slice %542 {offsets = [0, 0], sizes = [8, 128], strides = [1, 1]} : vector<8x512xf32> to vector<8x128xf32>
    %544 = arith.negf %543 : vector<8x128xf32>
    %545 = math.exp %544 : vector<8x128xf32>
    %cst_142 = arith.constant 1.000000e+00 : f32
    %546 = vector.broadcast %cst_142 : f32 to vector<8x128xf32>
    %547 = arith.addf %546, %545 : vector<8x128xf32>
    %548 = arith.divf %546, %547 : vector<8x128xf32>
    %549 = vector.extract_strided_slice %542 {offsets = [0, 128], sizes = [8, 128], strides = [1, 1]} : vector<8x512xf32> to vector<8x128xf32>
    %550 = arith.negf %549 : vector<8x128xf32>
    %551 = math.exp %550 : vector<8x128xf32>
    %cst_143 = arith.constant 1.000000e+00 : f32
    %552 = vector.broadcast %cst_143 : f32 to vector<8x128xf32>
    %553 = arith.addf %552, %551 : vector<8x128xf32>
    %554 = arith.divf %552, %553 : vector<8x128xf32>
    %555 = vector.extract_strided_slice %542 {offsets = [0, 256], sizes = [8, 128], strides = [1, 1]} : vector<8x512xf32> to vector<8x128xf32>
    %556 = arith.negf %555 : vector<8x128xf32>
    %557 = math.exp %556 : vector<8x128xf32>
    %cst_144 = arith.constant 1.000000e+00 : f32
    %558 = vector.broadcast %cst_144 : f32 to vector<8x128xf32>
    %559 = arith.addf %558, %557 : vector<8x128xf32>
    %560 = arith.divf %558, %559 : vector<8x128xf32>
    %561 = vector.extract_strided_slice %542 {offsets = [0, 384], sizes = [8, 128], strides = [1, 1]} : vector<8x512xf32> to vector<8x128xf32>
    %562 = math.tanh %561 : vector<8x128xf32>
    %563 = arith.mulf %488, %548 : vector<8x128xf32>
    %564 = arith.mulf %554, %562 : vector<8x128xf32>
    %565 = arith.addf %563, %564 : vector<8x128xf32>
    %566 = math.tanh %565 : vector<8x128xf32>
    %567 = arith.mulf %560, %566 : vector<8x128xf32>
    %cst_145 = arith.constant 5.000000e-01 : f32
    %568 = vector.broadcast %cst_145 : f32 to vector<8x1xf32>
    %569 = arith.cmpf ogt, %538, %568 : vector<8x1xf32>
    %570 = vector.shape_cast %569 : vector<8x1xi1> to vector<8x1xi1>
    %571 = vector.broadcast %570 : vector<8x1xi1> to vector<8x128xi1>
    %572 = arith.select %571, %567, %485 : vector<8x128xi1>, vector<8x128xf32>
    %573 = vector.shape_cast %569 : vector<8x1xi1> to vector<8x1xi1>
    %574 = vector.broadcast %573 : vector<8x1xi1> to vector<8x128xi1>
    %575 = arith.select %574, %565, %488 : vector<8x128xi1>, vector<8x128xf32>
    %c7_i32_146 = arith.constant 7 : i32
    %576 = arith.subi %c7_i32_146, %c6_i32 : i32
    %577 = arith.index_cast %576 : i32 to index
    %c0_147 = arith.constant 0 : index
    %c0_148 = arith.constant 0 : index
    %578 = vector.load %arg0[%577, %c0_147, %c0_148] : memref<8x8x32xf32, #tpu.memory_space<vmem>>, vector<1x8x32xf32>
    %579 = vector.shape_cast %578 : vector<1x8x32xf32> to vector<8x32xf32>
    %580 = arith.index_cast %576 : i32 to index
    %c0_149 = arith.constant 0 : index
    %c0_150 = arith.constant 0 : index
    %581 = vector.load %arg1[%580, %c0_149, %c0_150] : memref<8x8x1xf32, #tpu.memory_space<vmem>>, vector<1x8x1xf32>
    %582 = vector.shape_cast %581 : vector<1x8x1xf32> to vector<8x1xf32>
    %cst_151 = arith.constant dense<0.000000e+00> : vector<8x512xf32>
    %583 = tpu.matmul %579, %2, %cst_151 {dimension_numbers = #tpu.dot_dimension_numbers<[1], [0], [0], [1], [0, 0, 1, 1], [], []>} : vector<8x32xf32>, vector<32x512xf32>, vector<8x512xf32> -> vector<8x512xf32>
    %cst_152 = arith.constant dense<0.000000e+00> : vector<8x512xf32>
    %584 = tpu.matmul %529, %3, %cst_152 {dimension_numbers = #tpu.dot_dimension_numbers<[1], [0], [0], [1], [0, 0, 1, 1], [], []>} : vector<8x128xf32>, vector<128x512xf32>, vector<8x512xf32> -> vector<8x512xf32>
    %585 = arith.addf %583, %584 : vector<8x512xf32>
    %586 = arith.addf %585, %9 : vector<8x512xf32>
    %587 = vector.extract_strided_slice %586 {offsets = [0, 0], sizes = [8, 128], strides = [1, 1]} : vector<8x512xf32> to vector<8x128xf32>
    %588 = arith.negf %587 : vector<8x128xf32>
    %589 = math.exp %588 : vector<8x128xf32>
    %cst_153 = arith.constant 1.000000e+00 : f32
    %590 = vector.broadcast %cst_153 : f32 to vector<8x128xf32>
    %591 = arith.addf %590, %589 : vector<8x128xf32>
    %592 = arith.divf %590, %591 : vector<8x128xf32>
    %593 = vector.extract_strided_slice %586 {offsets = [0, 128], sizes = [8, 128], strides = [1, 1]} : vector<8x512xf32> to vector<8x128xf32>
    %594 = arith.negf %593 : vector<8x128xf32>
    %595 = math.exp %594 : vector<8x128xf32>
    %cst_154 = arith.constant 1.000000e+00 : f32
    %596 = vector.broadcast %cst_154 : f32 to vector<8x128xf32>
    %597 = arith.addf %596, %595 : vector<8x128xf32>
    %598 = arith.divf %596, %597 : vector<8x128xf32>
    %599 = vector.extract_strided_slice %586 {offsets = [0, 256], sizes = [8, 128], strides = [1, 1]} : vector<8x512xf32> to vector<8x128xf32>
    %600 = arith.negf %599 : vector<8x128xf32>
    %601 = math.exp %600 : vector<8x128xf32>
    %cst_155 = arith.constant 1.000000e+00 : f32
    %602 = vector.broadcast %cst_155 : f32 to vector<8x128xf32>
    %603 = arith.addf %602, %601 : vector<8x128xf32>
    %604 = arith.divf %602, %603 : vector<8x128xf32>
    %605 = vector.extract_strided_slice %586 {offsets = [0, 384], sizes = [8, 128], strides = [1, 1]} : vector<8x512xf32> to vector<8x128xf32>
    %606 = math.tanh %605 : vector<8x128xf32>
    %607 = arith.mulf %532, %592 : vector<8x128xf32>
    %608 = arith.mulf %598, %606 : vector<8x128xf32>
    %609 = arith.addf %607, %608 : vector<8x128xf32>
    %610 = math.tanh %609 : vector<8x128xf32>
    %611 = arith.mulf %604, %610 : vector<8x128xf32>
    %cst_156 = arith.constant 5.000000e-01 : f32
    %612 = vector.broadcast %cst_156 : f32 to vector<8x1xf32>
    %613 = arith.cmpf ogt, %582, %612 : vector<8x1xf32>
    %614 = vector.shape_cast %613 : vector<8x1xi1> to vector<8x1xi1>
    %615 = vector.broadcast %614 : vector<8x1xi1> to vector<8x128xi1>
    %616 = arith.select %615, %611, %529 : vector<8x128xi1>, vector<8x128xf32>
    %617 = vector.shape_cast %613 : vector<8x1xi1> to vector<8x1xi1>
    %618 = vector.broadcast %617 : vector<8x1xi1> to vector<8x128xi1>
    %619 = arith.select %618, %609, %532 : vector<8x128xi1>, vector<8x128xf32>
    %c7_i32_157 = arith.constant 7 : i32
    %620 = arith.index_cast %c7_i32_157 : i32 to index
    %c0_158 = arith.constant 0 : index
    %c0_159 = arith.constant 0 : index
    %621 = vector.load %arg0[%620, %c0_158, %c0_159] : memref<8x8x32xf32, #tpu.memory_space<vmem>>, vector<1x8x32xf32>
    %622 = vector.shape_cast %621 : vector<1x8x32xf32> to vector<8x32xf32>
    %623 = arith.index_cast %c7_i32_157 : i32 to index
    %c0_160 = arith.constant 0 : index
    %c0_161 = arith.constant 0 : index
    %624 = vector.load %arg1[%623, %c0_160, %c0_161] : memref<8x8x1xf32, #tpu.memory_space<vmem>>, vector<1x8x1xf32>
    %625 = vector.shape_cast %624 : vector<1x8x1xf32> to vector<8x1xf32>
    %cst_162 = arith.constant dense<0.000000e+00> : vector<8x512xf32>
    %626 = tpu.matmul %622, %0, %cst_162 {dimension_numbers = #tpu.dot_dimension_numbers<[1], [0], [0], [1], [0, 0, 1, 1], [], []>} : vector<8x32xf32>, vector<32x512xf32>, vector<8x512xf32> -> vector<8x512xf32>
    %cst_163 = arith.constant dense<0.000000e+00> : vector<8x512xf32>
    %627 = tpu.matmul %572, %1, %cst_163 {dimension_numbers = #tpu.dot_dimension_numbers<[1], [0], [0], [1], [0, 0, 1, 1], [], []>} : vector<8x128xf32>, vector<128x512xf32>, vector<8x512xf32> -> vector<8x512xf32>
    %628 = arith.addf %626, %627 : vector<8x512xf32>
    %629 = arith.addf %628, %6 : vector<8x512xf32>
    %630 = vector.extract_strided_slice %629 {offsets = [0, 0], sizes = [8, 128], strides = [1, 1]} : vector<8x512xf32> to vector<8x128xf32>
    %631 = arith.negf %630 : vector<8x128xf32>
    %632 = math.exp %631 : vector<8x128xf32>
    %cst_164 = arith.constant 1.000000e+00 : f32
    %633 = vector.broadcast %cst_164 : f32 to vector<8x128xf32>
    %634 = arith.addf %633, %632 : vector<8x128xf32>
    %635 = arith.divf %633, %634 : vector<8x128xf32>
    %636 = vector.extract_strided_slice %629 {offsets = [0, 128], sizes = [8, 128], strides = [1, 1]} : vector<8x512xf32> to vector<8x128xf32>
    %637 = arith.negf %636 : vector<8x128xf32>
    %638 = math.exp %637 : vector<8x128xf32>
    %cst_165 = arith.constant 1.000000e+00 : f32
    %639 = vector.broadcast %cst_165 : f32 to vector<8x128xf32>
    %640 = arith.addf %639, %638 : vector<8x128xf32>
    %641 = arith.divf %639, %640 : vector<8x128xf32>
    %642 = vector.extract_strided_slice %629 {offsets = [0, 256], sizes = [8, 128], strides = [1, 1]} : vector<8x512xf32> to vector<8x128xf32>
    %643 = arith.negf %642 : vector<8x128xf32>
    %644 = math.exp %643 : vector<8x128xf32>
    %cst_166 = arith.constant 1.000000e+00 : f32
    %645 = vector.broadcast %cst_166 : f32 to vector<8x128xf32>
    %646 = arith.addf %645, %644 : vector<8x128xf32>
    %647 = arith.divf %645, %646 : vector<8x128xf32>
    %648 = vector.extract_strided_slice %629 {offsets = [0, 384], sizes = [8, 128], strides = [1, 1]} : vector<8x512xf32> to vector<8x128xf32>
    %649 = math.tanh %648 : vector<8x128xf32>
    %650 = arith.mulf %575, %635 : vector<8x128xf32>
    %651 = arith.mulf %641, %649 : vector<8x128xf32>
    %652 = arith.addf %650, %651 : vector<8x128xf32>
    %653 = math.tanh %652 : vector<8x128xf32>
    %654 = arith.mulf %647, %653 : vector<8x128xf32>
    %cst_167 = arith.constant 5.000000e-01 : f32
    %655 = vector.broadcast %cst_167 : f32 to vector<8x1xf32>
    %656 = arith.cmpf ogt, %625, %655 : vector<8x1xf32>
    %657 = vector.shape_cast %656 : vector<8x1xi1> to vector<8x1xi1>
    %658 = vector.broadcast %657 : vector<8x1xi1> to vector<8x128xi1>
    %659 = arith.select %658, %654, %572 : vector<8x128xi1>, vector<8x128xf32>
    %660 = vector.shape_cast %656 : vector<8x1xi1> to vector<8x1xi1>
    %661 = vector.broadcast %660 : vector<8x1xi1> to vector<8x128xi1>
    %662 = arith.select %661, %652, %575 : vector<8x128xi1>, vector<8x128xf32>
    %c7_i32_168 = arith.constant 7 : i32
    %663 = arith.subi %c7_i32_168, %c7_i32_157 : i32
    %664 = arith.index_cast %663 : i32 to index
    %c0_169 = arith.constant 0 : index
    %c0_170 = arith.constant 0 : index
    %665 = vector.load %arg0[%664, %c0_169, %c0_170] : memref<8x8x32xf32, #tpu.memory_space<vmem>>, vector<1x8x32xf32>
    %666 = vector.shape_cast %665 : vector<1x8x32xf32> to vector<8x32xf32>
    %667 = arith.index_cast %663 : i32 to index
    %c0_171 = arith.constant 0 : index
    %c0_172 = arith.constant 0 : index
    %668 = vector.load %arg1[%667, %c0_171, %c0_172] : memref<8x8x1xf32, #tpu.memory_space<vmem>>, vector<1x8x1xf32>
    %669 = vector.shape_cast %668 : vector<1x8x1xf32> to vector<8x1xf32>
    %cst_173 = arith.constant dense<0.000000e+00> : vector<8x512xf32>
    %670 = tpu.matmul %666, %2, %cst_173 {dimension_numbers = #tpu.dot_dimension_numbers<[1], [0], [0], [1], [0, 0, 1, 1], [], []>} : vector<8x32xf32>, vector<32x512xf32>, vector<8x512xf32> -> vector<8x512xf32>
    %cst_174 = arith.constant dense<0.000000e+00> : vector<8x512xf32>
    %671 = tpu.matmul %616, %3, %cst_174 {dimension_numbers = #tpu.dot_dimension_numbers<[1], [0], [0], [1], [0, 0, 1, 1], [], []>} : vector<8x128xf32>, vector<128x512xf32>, vector<8x512xf32> -> vector<8x512xf32>
    %672 = arith.addf %670, %671 : vector<8x512xf32>
    %673 = arith.addf %672, %9 : vector<8x512xf32>
    %674 = vector.extract_strided_slice %673 {offsets = [0, 0], sizes = [8, 128], strides = [1, 1]} : vector<8x512xf32> to vector<8x128xf32>
    %675 = arith.negf %674 : vector<8x128xf32>
    %676 = math.exp %675 : vector<8x128xf32>
    %cst_175 = arith.constant 1.000000e+00 : f32
    %677 = vector.broadcast %cst_175 : f32 to vector<8x128xf32>
    %678 = arith.addf %677, %676 : vector<8x128xf32>
    %679 = arith.divf %677, %678 : vector<8x128xf32>
    %680 = vector.extract_strided_slice %673 {offsets = [0, 128], sizes = [8, 128], strides = [1, 1]} : vector<8x512xf32> to vector<8x128xf32>
    %681 = arith.negf %680 : vector<8x128xf32>
    %682 = math.exp %681 : vector<8x128xf32>
    %cst_176 = arith.constant 1.000000e+00 : f32
    %683 = vector.broadcast %cst_176 : f32 to vector<8x128xf32>
    %684 = arith.addf %683, %682 : vector<8x128xf32>
    %685 = arith.divf %683, %684 : vector<8x128xf32>
    %686 = vector.extract_strided_slice %673 {offsets = [0, 256], sizes = [8, 128], strides = [1, 1]} : vector<8x512xf32> to vector<8x128xf32>
    %687 = arith.negf %686 : vector<8x128xf32>
    %688 = math.exp %687 : vector<8x128xf32>
    %cst_177 = arith.constant 1.000000e+00 : f32
    %689 = vector.broadcast %cst_177 : f32 to vector<8x128xf32>
    %690 = arith.addf %689, %688 : vector<8x128xf32>
    %691 = arith.divf %689, %690 : vector<8x128xf32>
    %692 = vector.extract_strided_slice %673 {offsets = [0, 384], sizes = [8, 128], strides = [1, 1]} : vector<8x512xf32> to vector<8x128xf32>
    %693 = math.tanh %692 : vector<8x128xf32>
    %694 = arith.mulf %619, %679 : vector<8x128xf32>
    %695 = arith.mulf %685, %693 : vector<8x128xf32>
    %696 = arith.addf %694, %695 : vector<8x128xf32>
    %697 = math.tanh %696 : vector<8x128xf32>
    %698 = arith.mulf %691, %697 : vector<8x128xf32>
    %cst_178 = arith.constant 5.000000e-01 : f32
    %699 = vector.broadcast %cst_178 : f32 to vector<8x1xf32>
    %700 = arith.cmpf ogt, %669, %699 : vector<8x1xf32>
    %701 = vector.shape_cast %700 : vector<8x1xi1> to vector<8x1xi1>
    %702 = vector.broadcast %701 : vector<8x1xi1> to vector<8x128xi1>
    %703 = arith.select %702, %698, %616 : vector<8x128xi1>, vector<8x128xf32>
    %704 = vector.shape_cast %700 : vector<8x1xi1> to vector<8x1xi1>
    %705 = vector.broadcast %704 : vector<8x1xi1> to vector<8x128xi1>
    %706 = arith.select %705, %696, %619 : vector<8x128xi1>, vector<8x128xf32>
    %c8_i32 = arith.constant 8 : i32
    %707 = tpu.concatenate %659, %703 in 1 : vector<8x128xf32>, vector<8x128xf32> -> vector<8x256xf32>
    %c0_179 = arith.constant 0 : index
    %c0_180 = arith.constant 0 : index
    %708 = vector.load %arg8[%c0_179, %c0_180] : memref<8x256xf32, #tpu.memory_space<vmem>>, vector<8x256xf32>
    tpu.vector_store %arg8[%c0_179, %c0_180], %707 {strides = array<i32>} : memref<8x256xf32, #tpu.memory_space<vmem>>, vector<8x256xf32>,
    return
  }
}

</mosaic_0001>

<llo_original>
// kernel: tpu_custom_call.1
$region0: #{tpu_custom_call.1}
  #allocation0 [shape = 'u32[]', space=smem, size = 0x4, offset = 0x4, fixed_abs, tag = 'smem constant byte address 0x4 - core index']
  #allocation1 [shape = 'u32[72,128]{1,0:T(1,128)}', space=vmem, size = 0x9000, scoped, tag = 'internal scratch']
  %s0 = inlined_call_operand.vmem [shape: f32[8,8,32], index: 0, kind: input, shape index: {}]
  %s1 = inlined_call_operand.vmem [shape: f32[8,8,1], index: 1, kind: input, shape index: {}]
  %s2 = inlined_call_operand.hbm [shape: f32[32,512], index: 2, kind: input, shape index: {}]
  %s3 = inlined_call_operand.hbm [shape: f32[128,512], index: 3, kind: input, shape index: {}]
  %s4 = inlined_call_operand.vmem [shape: f32[1,512], index: 4, kind: input, shape index: {}]
  %s5 = inlined_call_operand.hbm [shape: f32[32,512], index: 5, kind: input, shape index: {}]
  %s6 = inlined_call_operand.hbm [shape: f32[128,512], index: 6, kind: input, shape index: {}]
  %s7 = inlined_call_operand.vmem [shape: f32[1,512], index: 7, kind: input, shape index: {}]
  %s8 = inlined_call_operand.hbm [shape: f32[8,256], index: 8, kind: output, shape index: {}]
  %s9 = sld [smem:[#allocation0]]
  $region58: #{tpu_custom_call.1} parent=0
    _
  %s11 = ssub.s32 1, %s9
  %s12 = scalar_select 0, %s11, %s9
  $region1: #{tpu_custom_call.1} parent=0
    #allocation2 [shape = 'u8[65536]{0}', space=vmem, size = 0x10000, scoped, tag = 'input window, operand 2, single buffered']
    #allocation3 [shape = 's32[1]{0}', space=sflag, size = 0x4, scoped, tag = 'scoped memory for tpu_custom_call.1']
    #allocation4 [shape = 's32[1]{0}', space=sflag, size = 0x4, scoped, tag = 'scoped memory for tpu_custom_call.1']
    #allocation5 [shape = 'u8[262144]{0}', space=vmem, size = 0x40000, scoped, tag = 'input window, operand 3, single buffered']
    #allocation6 [shape = 's32[1]{0}', space=sflag, size = 0x4, scoped, tag = 'scoped memory for tpu_custom_call.1']
    #allocation7 [shape = 'u8[65536]{0}', space=vmem, size = 0x10000, scoped, tag = 'input window, operand 5, single buffered']
    #allocation8 [shape = 'u8[262144]{0}', space=vmem, size = 0x40000, scoped, tag = 'input window, operand 6, single buffered']
    #allocation9 [shape = 's32[1]{0}', space=sflag, size = 0x4, scoped, tag = 'scoped memory for tpu_custom_call.1']
    #allocation10 [shape = 'u8[8192]{0}', space=vmem, size = 0x2000, scoped, tag = 'output window, operand 0, single buffered']
    %13 = vsyncpa [#allocation3], 0
    %14 = vsyncpa [#allocation6], 0
    %15 = vsyncpa [#allocation9], 0
    %16 = vsyncpa [#allocation4], 0
    // Predicated region
    $region2: #{tpu_custom_call.1} parent=1 // pred_check
      _
    $region3: #{tpu_custom_call.1} parent=1 // pred_check_branch
      %18 = sbr.rel (0) target = $region5
    $region4: #{tpu_custom_call.1} parent=1 // pred_region
      _
    $region5: #{tpu_custom_call.1} parent=1 // pred_fallthru
      _
    // Predicated region
    $region6: #{tpu_custom_call.1} parent=1 // pred_check
      _
    $region7: #{tpu_custom_call.1} parent=1 // pred_check_branch
      %20 = sbr.rel (0) target = $region9
    $region8: #{tpu_custom_call.1} parent=1 // pred_region
      _
    $region9: #{tpu_custom_call.1} parent=1 // pred_fallthru
      _
    // Predicated region
    $region10: #{tpu_custom_call.1} parent=1 // pred_check
      _
    $region11: #{tpu_custom_call.1} parent=1 // pred_check_branch
      %22 = sbr.rel (0) target = $region13
    $region12: #{tpu_custom_call.1} parent=1 // pred_region
      %24 = vsyncadd [#allocation3], 0
      %s25 = sshll.u32 %s2, 4
      %s26 = int_to_ptr.hbm [resolvable:$true] %s25
      %s27 = sshll.u32 [#allocation2], 4
      %s28 = int_to_ptr.vmem [resolvable:$true] %s27
      %33 = dma.hbm_to_vmem [thread:$0]  %s26, 2048, %s28, [#allocation3], 512, 512, 32
    $region13: #{tpu_custom_call.1} parent=1 // pred_fallthru
      _
    // Predicated region
    $region14: #{tpu_custom_call.1} parent=1 // pred_check
      _
    $region15: #{tpu_custom_call.1} parent=1 // pred_check_branch
      %35 = sbr.rel (0) target = $region17
    $region16: #{tpu_custom_call.1} parent=1 // pred_region
      %37 = vsyncadd [#allocation6], 0
      %s38 = sshll.u32 %s3, 4
      %s39 = int_to_ptr.hbm [resolvable:$true] %s38
      %s40 = sshll.u32 [#allocation5], 4
      %s41 = int_to_ptr.vmem [resolvable:$true] %s40
      %46 = dma.hbm_to_vmem [thread:$0]  %s39, 8192, %s41, [#allocation6], 512, 512, 32
    $region17: #{tpu_custom_call.1} parent=1 // pred_fallthru
      _
    // Predicated region
    $region18: #{tpu_custom_call.1} parent=1 // pred_check
      _
    $region19: #{tpu_custom_call.1} parent=1 // pred_check_branch
      %48 = sbr.rel (0) target = $region21
    $region20: #{tpu_custom_call.1} parent=1 // pred_region
      _
    $region21: #{tpu_custom_call.1} parent=1 // pred_fallthru
      _
    // Predicated region
    $region22: #{tpu_custom_call.1} parent=1 // pred_check
      _
    $region23: #{tpu_custom_call.1} parent=1 // pred_check_branch
      %50 = sbr.rel (0) target = $region25
    $region24: #{tpu_custom_call.1} parent=1 // pred_region
      %52 = vsyncadd [#allocation6], 0
      %s53 = sshll.u32 %s5, 4
      %s54 = int_to_ptr.hbm [resolvable:$true] %s53
      %s55 = sshll.u32 [#allocation7], 4
      %s56 = int_to_ptr.vmem [resolvable:$true] %s55
      %61 = dma.hbm_to_vmem [thread:$0]  %s54, 2048, %s56, [#allocation6], 512, 512, 32
    $region25: #{tpu_custom_call.1} parent=1 // pred_fallthru
      _
    // Predicated region
    $region26: #{tpu_custom_call.1} parent=1 // pred_check
      _
    $region27: #{tpu_custom_call.1} parent=1 // pred_check_branch
      %63 = sbr.rel (0) target = $region29
    $region28: #{tpu_custom_call.1} parent=1 // pred_region
      %65 = vsyncadd [#allocation9], 0
      %s66 = sshll.u32 %s6, 4
      %s67 = int_to_ptr.hbm [resolvable:$true] %s66
      %s68 = sshll.u32 [#allocation8], 4
      %s69 = int_to_ptr.vmem [resolvable:$true] %s68
      %74 = dma.hbm_to_vmem [thread:$0]  %s67, 8192, %s69, [#allocation9], 512, 512, 32
    $region29: #{tpu_custom_call.1} parent=1 // pred_fallthru
      _
    // Predicated region
    $region30: #{tpu_custom_call.1} parent=1 // pred_check
      _
    $region31: #{tpu_custom_call.1} parent=1 // pred_check_branch
      %76 = sbr.rel (0) target = $region33
    $region32: #{tpu_custom_call.1} parent=1 // pred_region
      _
    $region33: #{tpu_custom_call.1} parent=1 // pred_fallthru
      _
    // Predicated region
    $region34: #{tpu_custom_call.1} parent=1 // pred_check
      _
    $region35: #{tpu_custom_call.1} parent=1 // pred_check_branch
      %78 = sbr.rel (0) target = $region37
    $region36: #{tpu_custom_call.1} parent=1 // pred_region
      %80 = dma.done [#allocation3], 2048
    $region37: #{tpu_custom_call.1} parent=1 // pred_fallthru
      _
    // Predicated region
    $region38: #{tpu_custom_call.1} parent=1 // pred_check
      _
    $region39: #{tpu_custom_call.1} parent=1 // pred_check_branch
      %82 = sbr.rel (0) target = $region41
    $region40: #{tpu_custom_call.1} parent=1 // pred_region
      %84 = dma.done [#allocation6], 8192
    $region41: #{tpu_custom_call.1} parent=1 // pred_fallthru
      _
    // Predicated region
    $region42: #{tpu_custom_call.1} parent=1 // pred_check
      _
    $region43: #{tpu_custom_call.1} parent=1 // pred_check_branch
      %86 = sbr.rel (0) target = $region45
    $region44: #{tpu_custom_call.1} parent=1 // pred_region
      %88 = dma.done [#allocation6], 2048
    $region45: #{tpu_custom_call.1} parent=1 // pred_fallthru
      _
    // Predicated region
    $region46: #{tpu_custom_call.1} parent=1 // pred_check
      _
    $region47: #{tpu_custom_call.1} parent=1 // pred_check_branch
      %90 = sbr.rel (0) target = $region49
    $region48: #{tpu_custom_call.1} parent=1 // pred_region
      %92 = dma.done [#allocation9], 8192
    $region49: #{tpu_custom_call.1} parent=1 // pred_fallthru
      _
    %v93 = vld [vmem:[#allocation2] sm:$0xff]
    %v94 = vld [vmem:[#allocation2 + $0x8] sm:$0xff]
    %v95 = vld [vmem:[#allocation2 + $0x10] sm:$0xff]
    %v96 = vld [vmem:[#allocation2 + $0x18] sm:$0xff]
    %v97 = vld [vmem:[#allocation2 + $0x20] sm:$0xff]
    %v98 = vld [vmem:[#allocation2 + $0x28] sm:$0xff]
    %v99 = vld [vmem:[#allocation2 + $0x30] sm:$0xff]
    %v100 = vld [vmem:[#allocation2 + $0x38] sm:$0xff]
    %v101 = vld [vmem:[#allocation2 + $0x40] sm:$0xff]
    %v102 = vld [vmem:[#allocation2 + $0x48] sm:$0xff]
    %v103 = vld [vmem:[#allocation2 + $0x50] sm:$0xff]
    %v104 = vld [vmem:[#allocation2 + $0x58] sm:$0xff]
    %v105 = vld [vmem:[#allocation2 + $0x60] sm:$0xff]
    %v106 = vld [vmem:[#allocation2 + $0x68] sm:$0xff]
    %v107 = vld [vmem:[#allocation2 + $0x70] sm:$0xff]
    %v108 = vld [vmem:[#allocation2 + $0x78] sm:$0xff]
    %v109 = vld [vmem:[#allocation5] sm:$0xff]
    %v110 = vld [vmem:[#allocation5 + $0x8] sm:$0xff]
    %v111 = vld [vmem:[#allocation5 + $0x10] sm:$0xff]
    %v112 = vld [vmem:[#allocation5 + $0x18] sm:$0xff]
    %v113 = vld [vmem:[#allocation5 + $0x20] sm:$0xff]
    %v114 = vld [vmem:[#allocation5 + $0x28] sm:$0xff]
    %v115 = vld [vmem:[#allocation5 + $0x30] sm:$0xff]
    %v116 = vld [vmem:[#allocation5 + $0x38] sm:$0xff]
    %v117 = vld [vmem:[#allocation5 + $0x40] sm:$0xff]
    %v118 = vld [vmem:[#allocation5 + $0x48] sm:$0xff]
    %v119 = vld [vmem:[#allocation5 + $0x50] sm:$0xff]
    %v120 = vld [vmem:[#allocation5 + $0x58] sm:$0xff]
    %v121 = vld [vmem:[#allocation5 + $0x60] sm:$0xff]
    %v122 = vld [vmem:[#allocation5 + $0x68] sm:$0xff]
    %v123 = vld [vmem:[#allocation5 + $0x70] sm:$0xff]
    %v124 = vld [vmem:[#allocation5 + $0x78] sm:$0xff]
    %v125 = vld [vmem:[#allocation5 + $0x80] sm:$0xff]
    %v126 = vld [vmem:[#allocation5 + $0x88] sm:$0xff]
    %v127 = vld [vmem:[#allocation5 + $0x90] sm:$0xff]
    %v128 = vld [vmem:[#allocation5 + $0x98] sm:$0xff]
    %v129 = vld [vmem:[#allocation5 + $0xa0] sm:$0xff]
    %v130 = vld [vmem:[#allocation5 + $0xa8] sm:$0xff]
    %v131 = vld [vmem:[#allocation5 + $0xb0] sm:$0xff]
    %v132 = vld [vmem:[#allocation5 + $0xb8] sm:$0xff]
    %v133 = vld [vmem:[#allocation5 + $0xc0] sm:$0xff]
    %v134 = vld [vmem:[#allocation5 + $0xc8] sm:$0xff]
    %v135 = vld [vmem:[#allocation5 + $0xd0] sm:$0xff]
    %v136 = vld [vmem:[#allocation5 + $0xd8] sm:$0xff]
    %v137 = vld [vmem:[#allocation5 + $0xe0] sm:$0xff]
    %v138 = vld [vmem:[#allocation5 + $0xe8] sm:$0xff]
    %v139 = vld [vmem:[#allocation5 + $0xf0] sm:$0xff]
    %v140 = vld [vmem:[#allocation5 + $0xf8] sm:$0xff]
    %v141 = vld [vmem:[#allocation5 + $0x100] sm:$0xff]
    %v142 = vld [vmem:[#allocation5 + $0x108] sm:$0xff]
    %v143 = vld [vmem:[#allocation5 + $0x110] sm:$0xff]
    %v144 = vld [vmem:[#allocation5 + $0x118] sm:$0xff]
    %v145 = vld [vmem:[#allocation5 + $0x120] sm:$0xff]
    %v146 = vld [vmem:[#allocation5 + $0x128] sm:$0xff]
    %v147 = vld [vmem:[#allocation5 + $0x130] sm:$0xff]
    %v148 = vld [vmem:[#allocation5 + $0x138] sm:$0xff]
    %v149 = vld [vmem:[#allocation5 + $0x140] sm:$0xff]
    %v150 = vld [vmem:[#allocation5 + $0x148] sm:$0xff]
    %v151 = vld [vmem:[#allocation5 + $0x150] sm:$0xff]
    %v152 = vld [vmem:[#allocation5 + $0x158] sm:$0xff]
    %v153 = vld [vmem:[#allocation5 + $0x160] sm:$0xff]
    %v154 = vld [vmem:[#allocation5 + $0x168] sm:$0xff]
    %v155 = vld [vmem:[#allocation5 + $0x170] sm:$0xff]
    %v156 = vld [vmem:[#allocation5 + $0x178] sm:$0xff]
    %v157 = vld [vmem:[#allocation5 + $0x180] sm:$0xff]
    %v158 = vld [vmem:[#allocation5 + $0x188] sm:$0xff]
    %v159 = vld [vmem:[#allocation5 + $0x190] sm:$0xff]
    %v160 = vld [vmem:[#allocation5 + $0x198] sm:$0xff]
    %v161 = vld [vmem:[#allocation5 + $0x1a0] sm:$0xff]
    %v162 = vld [vmem:[#allocation5 + $0x1a8] sm:$0xff]
    %v163 = vld [vmem:[#allocation5 + $0x1b0] sm:$0xff]
    %v164 = vld [vmem:[#allocation5 + $0x1b8] sm:$0xff]
    %v165 = vld [vmem:[#allocation5 + $0x1c0] sm:$0xff]
    %v166 = vld [vmem:[#allocation5 + $0x1c8] sm:$0xff]
    %v167 = vld [vmem:[#allocation5 + $0x1d0] sm:$0xff]
    %v168 = vld [vmem:[#allocation5 + $0x1d8] sm:$0xff]
    %v169 = vld [vmem:[#allocation5 + $0x1e0] sm:$0xff]
    %v170 = vld [vmem:[#allocation5 + $0x1e8] sm:$0xff]
    %v171 = vld [vmem:[#allocation5 + $0x1f0] sm:$0xff]
    %v172 = vld [vmem:[#allocation5 + $0x1f8] sm:$0xff]
    %v173 = vld [vmem:[#allocation7] sm:$0xff]
    %v174 = vld [vmem:[#allocation7 + $0x8] sm:$0xff]
    %v175 = vld [vmem:[#allocation7 + $0x10] sm:$0xff]
    %v176 = vld [vmem:[#allocation7 + $0x18] sm:$0xff]
    %v177 = vld [vmem:[#allocation7 + $0x20] sm:$0xff]
    %v178 = vld [vmem:[#allocation7 + $0x28] sm:$0xff]
    %v179 = vld [vmem:[#allocation7 + $0x30] sm:$0xff]
    %v180 = vld [vmem:[#allocation7 + $0x38] sm:$0xff]
    %v181 = vld [vmem:[#allocation7 + $0x40] sm:$0xff]
    %v182 = vld [vmem:[#allocation7 + $0x48] sm:$0xff]
    %v183 = vld [vmem:[#allocation7 + $0x50] sm:$0xff]
    %v184 = vld [vmem:[#allocation7 + $0x58] sm:$0xff]
    %v185 = vld [vmem:[#allocation7 + $0x60] sm:$0xff]
    %v186 = vld [vmem:[#allocation7 + $0x68] sm:$0xff]
    %v187 = vld [vmem:[#allocation7 + $0x70] sm:$0xff]
    %v188 = vld [vmem:[#allocation7 + $0x78] sm:$0xff]
    %v189 = vld [vmem:[#allocation8] sm:$0xff]
    %v190 = vld [vmem:[#allocation8 + $0x8] sm:$0xff]
    %v191 = vld [vmem:[#allocation8 + $0x10] sm:$0xff]
    %v192 = vld [vmem:[#allocation8 + $0x18] sm:$0xff]
    %v193 = vld [vmem:[#allocation8 + $0x20] sm:$0xff]
    %v194 = vld [vmem:[#allocation8 + $0x28] sm:$0xff]
    %v195 = vld [vmem:[#allocation8 + $0x30] sm:$0xff]
    %v196 = vld [vmem:[#allocation8 + $0x38] sm:$0xff]
    %v197 = vld [vmem:[#allocation8 + $0x40] sm:$0xff]
    %v198 = vld [vmem:[#allocation8 + $0x48] sm:$0xff]
    %v199 = vld [vmem:[#allocation8 + $0x50] sm:$0xff]
    %v200 = vld [vmem:[#allocation8 + $0x58] sm:$0xff]
    %v201 = vld [vmem:[#allocation8 + $0x60] sm:$0xff]
    %v202 = vld [vmem:[#allocation8 + $0x68] sm:$0xff]
    %v203 = vld [vmem:[#allocation8 + $0x70] sm:$0xff]
    %v204 = vld [vmem:[#allocation8 + $0x78] sm:$0xff]
    %v205 = vld [vmem:[#allocation8 + $0x80] sm:$0xff]
    %v206 = vld [vmem:[#allocation8 + $0x88] sm:$0xff]
    %v207 = vld [vmem:[#allocation8 + $0x90] sm:$0xff]
    %v208 = vld [vmem:[#allocation8 + $0x98] sm:$0xff]
    %v209 = vld [vmem:[#allocation8 + $0xa0] sm:$0xff]
    %v210 = vld [vmem:[#allocation8 + $0xa8] sm:$0xff]
    %v211 = vld [vmem:[#allocation8 + $0xb0] sm:$0xff]
    %v212 = vld [vmem:[#allocation8 + $0xb8] sm:$0xff]
    %v213 = vld [vmem:[#allocation8 + $0xc0] sm:$0xff]
    %v214 = vld [vmem:[#allocation8 + $0xc8] sm:$0xff]
    %v215 = vld [vmem:[#allocation8 + $0xd0] sm:$0xff]
    %v216 = vld [vmem:[#allocation8 + $0xd8] sm:$0xff]
    %v217 = vld [vmem:[#allocation8 + $0xe0] sm:$0xff]
    %v218 = vld [vmem:[#allocation8 + $0xe8] sm:$0xff]
    %v219 = vld [vmem:[#allocation8 + $0xf0] sm:$0xff]
    %v220 = vld [vmem:[#allocation8 + $0xf8] sm:$0xff]
    %v221 = vld [vmem:[#allocation8 + $0x100] sm:$0xff]
    %v222 = vld [vmem:[#allocation8 + $0x108] sm:$0xff]
    %v223 = vld [vmem:[#allocation8 + $0x110] sm:$0xff]
    %v224 = vld [vmem:[#allocation8 + $0x118] sm:$0xff]
    %v225 = vld [vmem:[#allocation8 + $0x120] sm:$0xff]
    %v226 = vld [vmem:[#allocation8 + $0x128] sm:$0xff]
    %v227 = vld [vmem:[#allocation8 + $0x130] sm:$0xff]
    %v228 = vld [vmem:[#allocation8 + $0x138] sm:$0xff]
    %v229 = vld [vmem:[#allocation8 + $0x140] sm:$0xff]
    %v230 = vld [vmem:[#allocation8 + $0x148] sm:$0xff]
    %v231 = vld [vmem:[#allocation8 + $0x150] sm:$0xff]
    %v232 = vld [vmem:[#allocation8 + $0x158] sm:$0xff]
    %v233 = vld [vmem:[#allocation8 + $0x160] sm:$0xff]
    %v234 = vld [vmem:[#allocation8 + $0x168] sm:$0xff]
    %v235 = vld [vmem:[#allocation8 + $0x170] sm:$0xff]
    %v236 = vld [vmem:[#allocation8 + $0x178] sm:$0xff]
    %v237 = vld [vmem:[#allocation8 + $0x180] sm:$0xff]
    %v238 = vld [vmem:[#allocation8 + $0x188] sm:$0xff]
    %v239 = vld [vmem:[#allocation8 + $0x190] sm:$0xff]
    %v240 = vld [vmem:[#allocation8 + $0x198] sm:$0xff]
    %v241 = vld [vmem:[#allocation8 + $0x1a0] sm:$0xff]
    %v242 = vld [vmem:[#allocation8 + $0x1a8] sm:$0xff]
    %v243 = vld [vmem:[#allocation8 + $0x1b0] sm:$0xff]
    %v244 = vld [vmem:[#allocation8 + $0x1b8] sm:$0xff]
    %v245 = vld [vmem:[#allocation8 + $0x1c0] sm:$0xff]
    %v246 = vld [vmem:[#allocation8 + $0x1c8] sm:$0xff]
    %v247 = vld [vmem:[#allocation8 + $0x1d0] sm:$0xff]
    %v248 = vld [vmem:[#allocation8 + $0x1d8] sm:$0xff]
    %v249 = vld [vmem:[#allocation8 + $0x1e0] sm:$0xff]
    %v250 = vld [vmem:[#allocation8 + $0x1e8] sm:$0xff]
    %v251 = vld [vmem:[#allocation8 + $0x1f0] sm:$0xff]
    %v252 = vld [vmem:[#allocation8 + $0x1f8] sm:$0xff]
    %v253 = vld [vmem:[%s4] sm:$0xf]
    %v255 = vperm.slane %v253, 0
    %v256 = vperm.slane %v253, 1
    %v257 = vperm.slane %v253, 2
    %v258 = vperm.slane %v253, 3
    %v263 = vld [vmem:[%s7] sm:$0xf]
    %v265 = vperm.slane %v263, 0
    %v266 = vperm.slane %v263, 1
    %v267 = vperm.slane %v263, 2
    %v268 = vperm.slane %v263, 3
    %v273 = vld [vmem:[%s0] sm:$0xff]
    %v274 = vld [vmem:[%s1] sm:$0xff]
    %275 = vmatpush.msra.mxu0 %v169
    %276 = vmatpush.msra.mxu0 %v165
    %277 = vmatpush.msra.mxu0 %v161
    %278 = vmatpush.msra.mxu0 %v157
    %279 = vmatpush.msra.mxu0 %v153
    %280 = vmatpush.msra.mxu0 %v149
    %281 = vmatpush.msra.mxu0 %v145
    %282 = vmatpush.msra.mxu0 %v141
    %283 = vmatpush.msra.mxu0 %v137
    %284 = vmatpush.msra.mxu0 %v133
    %285 = vmatpush.msra.mxu0 %v129
    %286 = vmatpush.msra.mxu0 %v125
    %287 = vmatpush.msra.mxu0 %v121
    %288 = vmatpush.msra.mxu0 %v117
    %289 = vmatpush.msra.mxu0 %v113
    %290 = vmatpush.msra.mxu0 %v109
    %291 = vmatmul.f32.gmra.mxu0 0.0
    %v292 = vpop.f32.mrf.mxu0
    %v293 = vadd.f32 0.0, %v292
    %294 = vdwg.mxu0
    %295 = vmatpush.msra.mxu0 %v170
    %296 = vmatpush.msra.mxu0 %v166
    %297 = vmatpush.msra.mxu0 %v162
    %298 = vmatpush.msra.mxu0 %v158
    %299 = vmatpush.msra.mxu0 %v154
    %300 = vmatpush.msra.mxu0 %v150
    %301 = vmatpush.msra.mxu0 %v146
    %302 = vmatpush.msra.mxu0 %v142
    %303 = vmatpush.msra.mxu0 %v138
    %304 = vmatpush.msra.mxu0 %v134
    %305 = vmatpush.msra.mxu0 %v130
    %306 = vmatpush.msra.mxu0 %v126
    %307 = vmatpush.msra.mxu0 %v122
    %308 = vmatpush.msra.mxu0 %v118
    %309 = vmatpush.msra.mxu0 %v114
    %310 = vmatpush.msra.mxu0 %v110
    %311 = vmatmul.f32.gmra.mxu0 0.0
    %v312 = vpop.f32.mrf.mxu0
    %v313 = vadd.f32 0.0, %v312
    %314 = vdwg.mxu0
    %315 = vmatpush.msra.mxu0 %v171
    %316 = vmatpush.msra.mxu0 %v167
    %317 = vmatpush.msra.mxu0 %v163
    %318 = vmatpush.msra.mxu0 %v159
    %319 = vmatpush.msra.mxu0 %v155
    %320 = vmatpush.msra.mxu0 %v151
    %321 = vmatpush.msra.mxu0 %v147
    %322 = vmatpush.msra.mxu0 %v143
    %323 = vmatpush.msra.mxu0 %v139
    %324 = vmatpush.msra.mxu0 %v135
    %325 = vmatpush.msra.mxu0 %v131
    %326 = vmatpush.msra.mxu0 %v127
    %327 = vmatpush.msra.mxu0 %v123
    %328 = vmatpush.msra.mxu0 %v119
    %329 = vmatpush.msra.mxu0 %v115
    %330 = vmatpush.msra.mxu0 %v111
    %331 = vmatmul.f32.gmra.mxu0 0.0
    %v332 = vpop.f32.mrf.mxu0
    %v333 = vadd.f32 0.0, %v332
    %334 = vdwg.mxu0
    %335 = vmatpush.msra.mxu0 %v172
    %336 = vmatpush.msra.mxu0 %v168
    %337 = vmatpush.msra.mxu0 %v164
    %338 = vmatpush.msra.mxu0 %v160
    %339 = vmatpush.msra.mxu0 %v156
    %340 = vmatpush.msra.mxu0 %v152
    %341 = vmatpush.msra.mxu0 %v148
    %342 = vmatpush.msra.mxu0 %v144
    %343 = vmatpush.msra.mxu0 %v140
    %344 = vmatpush.msra.mxu0 %v136
    %345 = vmatpush.msra.mxu0 %v132
    %346 = vmatpush.msra.mxu0 %v128
    %347 = vmatpush.msra.mxu0 %v124
    %348 = vmatpush.msra.mxu0 %v120
    %349 = vmatpush.msra.mxu0 %v116
    %350 = vmatpush.msra.mxu0 %v112
    %351 = vmatmul.f32.gmra.mxu0 0.0
    %v352 = vpop.f32.mrf.mxu0
    %v353 = vadd.f32 0.0, %v352
    %354 = vdwg.mxu0
    %vm355 = vcmask 261120
    %v357 = vsel %vm355, %v273, 0
    %359 = vmatpush.msra.mxu0 0.0
    %360 = vmatpush.msra.mxu0 0.0
    %361 = vmatpush.msra.mxu0 0.0
    %362 = vmatpush.msra.mxu0 0.0
    %363 = vmatpush.msra.mxu0 0.0
    %364 = vmatpush.msra.mxu0 0.0
    %365 = vmatpush.msra.mxu0 0.0
    %366 = vmatpush.msra.mxu0 0.0
    %367 = vmatpush.msra.mxu0 0.0
    %368 = vmatpush.msra.mxu0 0.0
    %369 = vmatpush.msra.mxu0 0.0
    %370 = vmatpush.msra.mxu0 0.0
    %371 = vmatpush.msra.mxu0 %v105
    %372 = vmatpush.msra.mxu0 %v101
    %373 = vmatpush.msra.mxu0 %v97
    %374 = vmatpush.msra.mxu0 %v93
    %375 = vmatmul.f32.gmra.mxu0 %v357
    %v376 = vpop.f32.mrf.mxu0
    %v377 = vadd.f32 %v293, %v376
    %378 = vdwg.mxu0
    %379 = vmatpush.msra.mxu0 0.0
    %380 = vmatpush.msra.mxu0 0.0
    %381 = vmatpush.msra.mxu0 0.0
    %382 = vmatpush.msra.mxu0 0.0
    %383 = vmatpush.msra.mxu0 0.0
    %384 = vmatpush.msra.mxu0 0.0
    %385 = vmatpush.msra.mxu0 0.0
    %386 = vmatpush.msra.mxu0 0.0
    %387 = vmatpush.msra.mxu0 0.0
    %388 = vmatpush.msra.mxu0 0.0
    %389 = vmatpush.msra.mxu0 0.0
    %390 = vmatpush.msra.mxu0 0.0
    %391 = vmatpush.msra.mxu0 %v106
    %392 = vmatpush.msra.mxu0 %v102
    %393 = vmatpush.msra.mxu0 %v98
    %394 = vmatpush.msra.mxu0 %v94
    %395 = vmatmul.f32.gmra.mxu0 %v357
    %v396 = vpop.f32.mrf.mxu0
    %v397 = vadd.f32 %v313, %v396
    %398 = vdwg.mxu0
    %399 = vmatpush.msra.mxu0 0.0
    %400 = vmatpush.msra.mxu0 0.0
    %401 = vmatpush.msra.mxu0 0.0
    %402 = vmatpush.msra.mxu0 0.0
    %403 = vmatpush.msra.mxu0 0.0
    %404 = vmatpush.msra.mxu0 0.0
    %405 = vmatpush.msra.mxu0 0.0
    %406 = vmatpush.msra.mxu0 0.0
    %407 = vmatpush.msra.mxu0 0.0
    %408 = vmatpush.msra.mxu0 0.0
    %409 = vmatpush.msra.mxu0 0.0
    %410 = vmatpush.msra.mxu0 0.0
    %411 = vmatpush.msra.mxu0 %v107
    %412 = vmatpush.msra.mxu0 %v103
    %413 = vmatpush.msra.mxu0 %v99
    %414 = vmatpush.msra.mxu0 %v95
    %415 = vmatmul.f32.gmra.mxu0 %v357
    %v416 = vpop.f32.mrf.mxu0
    %v417 = vadd.f32 %v333, %v416
    %418 = vdwg.mxu0
    %419 = vmatpush.msra.mxu0 0.0
    %420 = vmatpush.msra.mxu0 0.0
    %421 = vmatpush.msra.mxu0 0.0
    %422 = vmatpush.msra.mxu0 0.0
    %423 = vmatpush.msra.mxu0 0.0
    %424 = vmatpush.msra.mxu0 0.0
    %425 = vmatpush.msra.mxu0 0.0
    %426 = vmatpush.msra.mxu0 0.0
    %427 = vmatpush.msra.mxu0 0.0
    %428 = vmatpush.msra.mxu0 0.0
    %429 = vmatpush.msra.mxu0 0.0
    %430 = vmatpush.msra.mxu0 0.0
    %431 = vmatpush.msra.mxu0 %v108
    %432 = vmatpush.msra.mxu0 %v104
    %433 = vmatpush.msra.mxu0 %v100
    %434 = vmatpush.msra.mxu0 %v96
    %435 = vmatmul.f32.gmra.mxu0 %v357
    %v436 = vpop.f32.mrf.mxu0
    %v437 = vadd.f32 %v353, %v436
    %438 = vdwg.mxu0
    %v439 = vadd.f32 %v377, %v255
    %v440 = vadd.f32 %v397, %v256
    %v441 = vadd.f32 %v417, %v257
    %v442 = vadd.f32 %v437, %v258
    %v443 = vxor.u32 %v439, 2147483648
    %v444 = vmul.f32 %v443, 1.442695
    %v445 = vpow.pop %v444
    %v446 = vadd.f32 %v445, 1.0
    %v447 = vrcp.pop %v446
    %v448 = vmul.f32 %v446, %v447
    %v449 = vsub.f32 1.0, %v448
    %v450 = vmul.f32 %v447, %v449
    %v451 = vadd.f32 %v447, %v450
    %vm452 = vweird.f32 %v446
    %vm453 = vweird.f32 %v447
    %vm454 = vmor %vm452, %vm453
    %v455 = vsel %vm454, %v447, %v451
    %v456 = vand.u32 2147483647, %v446
    %vm457 = vcmp.eq.f32.partialorder %v456, 8.507059e+37
    %v458 = vand.u32 %v446, 2147483648
    %v459 = vor.u32 1.1754944e-38, %v458
    %v460 = vsel %vm457, %v459, %v455
    %v461 = vmul.f32 1.0, %v460
    %v462 = vxor.u32 %v440, 2147483648
    %v463 = vmul.f32 %v462, 1.442695
    %v464 = vpow.pop %v463
    %v465 = vadd.f32 %v464, 1.0
    %v466 = vrcp.pop %v465
    %v467 = vmul.f32 %v465, %v466
    %v468 = vsub.f32 1.0, %v467
    %v469 = vmul.f32 %v466, %v468
    %v470 = vadd.f32 %v466, %v469
    %vm471 = vweird.f32 %v465
    %vm472 = vweird.f32 %v466
    %vm473 = vmor %vm471, %vm472
    %v474 = vsel %vm473, %v466, %v470
    %v475 = vand.u32 2147483647, %v465
    %vm476 = vcmp.eq.f32.partialorder %v475, 8.507059e+37
    %v477 = vand.u32 %v465, 2147483648
    %v478 = vor.u32 1.1754944e-38, %v477
    %v479 = vsel %vm476, %v478, %v474
    %v480 = vmul.f32 1.0, %v479
    %v481 = vxor.u32 %v441, 2147483648
    %v482 = vmul.f32 %v481, 1.442695
    %v483 = vpow.pop %v482
    %v484 = vadd.f32 %v483, 1.0
    %v485 = vrcp.pop %v484
    %v486 = vmul.f32 %v484, %v485
    %v487 = vsub.f32 1.0, %v486
    %v488 = vmul.f32 %v485, %v487
    %v489 = vadd.f32 %v485, %v488
    %vm490 = vweird.f32 %v484
    %vm491 = vweird.f32 %v485
    %vm492 = vmor %vm490, %vm491
    %v493 = vsel %vm492, %v485, %v489
    %v494 = vand.u32 2147483647, %v484
    %vm495 = vcmp.eq.f32.partialorder %v494, 8.507059e+37
    %v496 = vand.u32 %v484, 2147483648
    %v497 = vor.u32 1.1754944e-38, %v496
    %v498 = vsel %vm495, %v497, %v493
    %v499 = vmul.f32 1.0, %v498
    %v500 = vtanh.pop %v442
    %v501 = vmul.f32 %v461, 0.0
    %v502 = vmul.f32 %v480, %v500
    %v503 = vadd.f32 %v501, %v502
    %v504 = vtanh.pop %v503
    %v505 = vmul.f32 %v499, %v504
    %vm506 = vcmp.gt.f32.partialorder %v274, 0.5
    %v507 = vsel %vm506, 1, 0
    %508 = vset.pattern.permute.xlu0 0
    %509 = vperm.xlu0 %508, %v507
    %v510 = vpop.permute.xlu0 %509
    %vm511 = vcmp.eq.s32.totalorder %v510, 1
    %v512 = vsel %vm511, %v505, 0.0
    %v513 = vsel %vm511, %v503, 0.0
    %s514 = scalar_lea.vmem %s0, 56
    %v515 = vld [vmem:[%s514] sm:$0xff]
    %s516 = scalar_lea.vmem %s1, 56
    %v517 = vld [vmem:[%s516] sm:$0xff]
    %518 = vmatpush.msra.mxu0 %v249
    %519 = vmatpush.msra.mxu0 %v245
    %520 = vmatpush.msra.mxu0 %v241
    %521 = vmatpush.msra.mxu0 %v237
    %522 = vmatpush.msra.mxu0 %v233
    %523 = vmatpush.msra.mxu0 %v229
    %524 = vmatpush.msra.mxu0 %v225
    %525 = vmatpush.msra.mxu0 %v221
    %526 = vmatpush.msra.mxu0 %v217
    %527 = vmatpush.msra.mxu0 %v213
    %528 = vmatpush.msra.mxu0 %v209
    %529 = vmatpush.msra.mxu0 %v205
    %530 = vmatpush.msra.mxu0 %v201
    %531 = vmatpush.msra.mxu0 %v197
    %532 = vmatpush.msra.mxu0 %v193
    %533 = vmatpush.msra.mxu0 %v189
    %534 = vmatmul.f32.gmra.mxu0 0.0
    %v535 = vpop.f32.mrf.mxu0
    %v536 = vadd.f32 0.0, %v535
    %537 = vdwg.mxu0
    %538 = vmatpush.msra.mxu0 %v250
    %539 = vmatpush.msra.mxu0 %v246
    %540 = vmatpush.msra.mxu0 %v242
    %541 = vmatpush.msra.mxu0 %v238
    %542 = vmatpush.msra.mxu0 %v234
    %543 = vmatpush.msra.mxu0 %v230
    %544 = vmatpush.msra.mxu0 %v226
    %545 = vmatpush.msra.mxu0 %v222
    %546 = vmatpush.msra.mxu0 %v218
    %547 = vmatpush.msra.mxu0 %v214
    %548 = vmatpush.msra.mxu0 %v210
    %549 = vmatpush.msra.mxu0 %v206
    %550 = vmatpush.msra.mxu0 %v202
    %551 = vmatpush.msra.mxu0 %v198
    %552 = vmatpush.msra.mxu0 %v194
    %553 = vmatpush.msra.mxu0 %v190
    %554 = vmatmul.f32.gmra.mxu0 0.0
    %v555 = vpop.f32.mrf.mxu0
    %v556 = vadd.f32 0.0, %v555
    %557 = vdwg.mxu0
    %558 = vmatpush.msra.mxu0 %v251
    %559 = vmatpush.msra.mxu0 %v247
    %560 = vmatpush.msra.mxu0 %v243
    %561 = vmatpush.msra.mxu0 %v239
    %562 = vmatpush.msra.mxu0 %v235
    %563 = vmatpush.msra.mxu0 %v231
    %564 = vmatpush.msra.mxu0 %v227
    %565 = vmatpush.msra.mxu0 %v223
    %566 = vmatpush.msra.mxu0 %v219
    %567 = vmatpush.msra.mxu0 %v215
    %568 = vmatpush.msra.mxu0 %v211
    %569 = vmatpush.msra.mxu0 %v207
    %570 = vmatpush.msra.mxu0 %v203
    %571 = vmatpush.msra.mxu0 %v199
    %572 = vmatpush.msra.mxu0 %v195
    %573 = vmatpush.msra.mxu0 %v191
    %574 = vmatmul.f32.gmra.mxu0 0.0
    %v575 = vpop.f32.mrf.mxu0
    %v576 = vadd.f32 0.0, %v575
    %577 = vdwg.mxu0
    %578 = vmatpush.msra.mxu0 %v252
    %579 = vmatpush.msra.mxu0 %v248
    %580 = vmatpush.msra.mxu0 %v244
    %581 = vmatpush.msra.mxu0 %v240
    %582 = vmatpush.msra.mxu0 %v236
    %583 = vmatpush.msra.mxu0 %v232
    %584 = vmatpush.msra.mxu0 %v228
    %585 = vmatpush.msra.mxu0 %v224
    %586 = vmatpush.msra.mxu0 %v220
    %587 = vmatpush.msra.mxu0 %v216
    %588 = vmatpush.msra.mxu0 %v212
    %589 = vmatpush.msra.mxu0 %v208
    %590 = vmatpush.msra.mxu0 %v204
    %591 = vmatpush.msra.mxu0 %v200
    %592 = vmatpush.msra.mxu0 %v196
    %593 = vmatpush.msra.mxu0 %v192
    %594 = vmatmul.f32.gmra.mxu0 0.0
    %v595 = vpop.f32.mrf.mxu0
    %v596 = vadd.f32 0.0, %v595
    %597 = vdwg.mxu0
    %v599 = vsel %vm355, %v515, 0
    %601 = vmatpush.msra.mxu0 0.0
    %602 = vmatpush.msra.mxu0 0.0
    %603 = vmatpush.msra.mxu0 0.0
    %604 = vmatpush.msra.mxu0 0.0
    %605 = vmatpush.msra.mxu0 0.0
    %606 = vmatpush.msra.mxu0 0.0
    %607 = vmatpush.msra.mxu0 0.0
    %608 = vmatpush.msra.mxu0 0.0
    %609 = vmatpush.msra.mxu0 0.0
    %610 = vmatpush.msra.mxu0 0.0
    %611 = vmatpush.msra.mxu0 0.0
    %612 = vmatpush.msra.mxu0 0.0
    %613 = vmatpush.msra.mxu0 %v185
    %614 = vmatpush.msra.mxu0 %v181
    %615 = vmatpush.msra.mxu0 %v177
    %616 = vmatpush.msra.mxu0 %v173
    %617 = vmatmul.f32.gmra.mxu0 %v599
    %v618 = vpop.f32.mrf.mxu0
    %v619 = vadd.f32 %v536, %v618
    %620 = vdwg.mxu0
    %621 = vmatpush.msra.mxu0 0.0
    %622 = vmatpush.msra.mxu0 0.0
    %623 = vmatpush.msra.mxu0 0.0
    %624 = vmatpush.msra.mxu0 0.0
    %625 = vmatpush.msra.mxu0 0.0
    %626 = vmatpush.msra.mxu0 0.0
    %627 = vmatpush.msra.mxu0 0.0
    %628 = vmatpush.msra.mxu0 0.0
    %629 = vmatpush.msra.mxu0 0.0
    %630 = vmatpush.msra.mxu0 0.0
    %631 = vmatpush.msra.mxu0 0.0
    %632 = vmatpush.msra.mxu0 0.0
    %633 = vmatpush.msra.mxu0 %v186
    %634 = vmatpush.msra.mxu0 %v182
    %635 = vmatpush.msra.mxu0 %v178
    %636 = vmatpush.msra.mxu0 %v174
    %637 = vmatmul.f32.gmra.mxu0 %v599
    %v638 = vpop.f32.mrf.mxu0
    %v639 = vadd.f32 %v556, %v638
    %640 = vdwg.mxu0
    %641 = vmatpush.msra.mxu0 0.0
    %642 = vmatpush.msra.mxu0 0.0
    %643 = vmatpush.msra.mxu0 0.0
    %644 = vmatpush.msra.mxu0 0.0
    %645 = vmatpush.msra.mxu0 0.0
    %646 = vmatpush.msra.mxu0 0.0
    %647 = vmatpush.msra.mxu0 0.0
    %648 = vmatpush.msra.mxu0 0.0
    %649 = vmatpush.msra.mxu0 0.0
    %650 = vmatpush.msra.mxu0 0.0
    %651 = vmatpush.msra.mxu0 0.0
    %652 = vmatpush.msra.mxu0 0.0
    %653 = vmatpush.msra.mxu0 %v187
    %654 = vmatpush.msra.mxu0 %v183
    %655 = vmatpush.msra.mxu0 %v179
    %656 = vmatpush.msra.mxu0 %v175
    %657 = vmatmul.f32.gmra.mxu0 %v599
    %v658 = vpop.f32.mrf.mxu0
    %v659 = vadd.f32 %v576, %v658
    %660 = vdwg.mxu0
    %661 = vmatpush.msra.mxu0 0.0
    %662 = vmatpush.msra.mxu0 0.0
    %663 = vmatpush.msra.mxu0 0.0
    %664 = vmatpush.msra.mxu0 0.0
    %665 = vmatpush.msra.mxu0 0.0
    %666 = vmatpush.msra.mxu0 0.0
    %667 = vmatpush.msra.mxu0 0.0
    %668 = vmatpush.msra.mxu0 0.0
    %669 = vmatpush.msra.mxu0 0.0
    %670 = vmatpush.msra.mxu0 0.0
    %671 = vmatpush.msra.mxu0 0.0
    %672 = vmatpush.msra.mxu0 0.0
    %673 = vmatpush.msra.mxu0 %v188
    %674 = vmatpush.msra.mxu0 %v184
    %675 = vmatpush.msra.mxu0 %v180
    %676 = vmatpush.msra.mxu0 %v176
    %677 = vmatmul.f32.gmra.mxu0 %v599
    %v678 = vpop.f32.mrf.mxu0
    %v679 = vadd.f32 %v596, %v678
    %680 = vdwg.mxu0
    %v681 = vadd.f32 %v619, %v265
    %v682 = vadd.f32 %v639, %v266
    %v683 = vadd.f32 %v659, %v267
    %v684 = vadd.f32 %v679, %v268
    %v685 = vxor.u32 %v681, 2147483648
    %v686 = vmul.f32 %v685, 1.442695
    %v687 = vpow.pop %v686
    %v688 = vadd.f32 %v687, 1.0
    %v689 = vrcp.pop %v688
    %v690 = vmul.f32 %v688, %v689
    %v691 = vsub.f32 1.0, %v690
    %v692 = vmul.f32 %v689, %v691
    %v693 = vadd.f32 %v689, %v692
    %vm694 = vweird.f32 %v688
    %vm695 = vweird.f32 %v689
    %vm696 = vmor %vm694, %vm695
    %v697 = vsel %vm696, %v689, %v693
    %v698 = vand.u32 2147483647, %v688
    %vm699 = vcmp.eq.f32.partialorder %v698, 8.507059e+37
    %v700 = vand.u32 %v688, 2147483648
    %v701 = vor.u32 1.1754944e-38, %v700
    %v702 = vsel %vm699, %v701, %v697
    %v703 = vmul.f32 1.0, %v702
    %v704 = vxor.u32 %v682, 2147483648
    %v705 = vmul.f32 %v704, 1.442695
    %v706 = vpow.pop %v705
    %v707 = vadd.f32 %v706, 1.0
    %v708 = vrcp.pop %v707
    %v709 = vmul.f32 %v707, %v708
    %v710 = vsub.f32 1.0, %v709
    %v711 = vmul.f32 %v708, %v710
    %v712 = vadd.f32 %v708, %v711
    %vm713 = vweird.f32 %v707
    %vm714 = vweird.f32 %v708
    %vm715 = vmor %vm713, %vm714
    %v716 = vsel %vm715, %v708, %v712
    %v717 = vand.u32 2147483647, %v707
    %vm718 = vcmp.eq.f32.partialorder %v717, 8.507059e+37
    %v719 = vand.u32 %v707, 2147483648
    %v720 = vor.u32 1.1754944e-38, %v719
    %v721 = vsel %vm718, %v720, %v716
    %v722 = vmul.f32 1.0, %v721
    %v723 = vxor.u32 %v683, 2147483648
    %v724 = vmul.f32 %v723, 1.442695
    %v725 = vpow.pop %v724
    %v726 = vadd.f32 %v725, 1.0
    %v727 = vrcp.pop %v726
    %v728 = vmul.f32 %v726, %v727
    %v729 = vsub.f32 1.0, %v728
    %v730 = vmul.f32 %v727, %v729
    %v731 = vadd.f32 %v727, %v730
    %vm732 = vweird.f32 %v726
    %vm733 = vweird.f32 %v727
    %vm734 = vmor %vm732, %vm733
    %v735 = vsel %vm734, %v727, %v731
    %v736 = vand.u32 2147483647, %v726
    %vm737 = vcmp.eq.f32.partialorder %v736, 8.507059e+37
    %v738 = vand.u32 %v726, 2147483648
    %v739 = vor.u32 1.1754944e-38, %v738
    %v740 = vsel %vm737, %v739, %v735
    %v741 = vmul.f32 1.0, %v740
    %v742 = vtanh.pop %v684
    %v743 = vmul.f32 %v703, 0.0
    %v744 = vmul.f32 %v722, %v742
    %v745 = vadd.f32 %v743, %v744
    %v746 = vtanh.pop %v745
    %v747 = vmul.f32 %v741, %v746
    %vm748 = vcmp.gt.f32.partialorder %v517, 0.5
    %v749 = vsel %vm748, 1, 0
    %750 = vset.pattern.permute.xlu0 0
    %751 = vperm.xlu0 %750, %v749
    %v752 = vpop.permute.xlu0 %751
    %vm753 = vcmp.eq.s32.totalorder %v752, 1
    %v754 = vsel %vm753, %v747, 0.0
    %v755 = vsel %vm753, %v745, 0.0
    %s756 = scalar_lea.vmem %s0, 8
    %v757 = vld [vmem:[%s756] sm:$0xff]
    %s758 = scalar_lea.vmem %s1, 8
    %v759 = vld [vmem:[%s758] sm:$0xff]
    %760 = vmatpush.msra.mxu0 %v169
    %761 = vmatpush.msra.mxu0 %v165
    %762 = vmatpush.msra.mxu0 %v161
    %763 = vmatpush.msra.mxu0 %v157
    %764 = vmatpush.msra.mxu0 %v153
    %765 = vmatpush.msra.mxu0 %v149
    %766 = vmatpush.msra.mxu0 %v145
    %767 = vmatpush.msra.mxu0 %v141
    %768 = vmatpush.msra.mxu0 %v137
    %769 = vmatpush.msra.mxu0 %v133
    %770 = vmatpush.msra.mxu0 %v129
    %771 = vmatpush.msra.mxu0 %v125
    %772 = vmatpush.msra.mxu0 %v121
    %773 = vmatpush.msra.mxu0 %v117
    %774 = vmatpush.msra.mxu0 %v113
    %775 = vmatpush.msra.mxu0 %v109
    %776 = vmatmul.f32.gmra.mxu0 %v512
    %v777 = vpop.f32.mrf.mxu0
    %v778 = vadd.f32 0.0, %v777
    %779 = vdwg.mxu0
    %780 = vmatpush.msra.mxu0 %v170
    %781 = vmatpush.msra.mxu0 %v166
    %782 = vmatpush.msra.mxu0 %v162
    %783 = vmatpush.msra.mxu0 %v158
    %784 = vmatpush.msra.mxu0 %v154
    %785 = vmatpush.msra.mxu0 %v150
    %786 = vmatpush.msra.mxu0 %v146
    %787 = vmatpush.msra.mxu0 %v142
    %788 = vmatpush.msra.mxu0 %v138
    %789 = vmatpush.msra.mxu0 %v134
    %790 = vmatpush.msra.mxu0 %v130
    %791 = vmatpush.msra.mxu0 %v126
    %792 = vmatpush.msra.mxu0 %v122
    %793 = vmatpush.msra.mxu0 %v118
    %794 = vmatpush.msra.mxu0 %v114
    %795 = vmatpush.msra.mxu0 %v110
    %796 = vmatmul.f32.gmra.mxu0 %v512
    %v797 = vpop.f32.mrf.mxu0
    %v798 = vadd.f32 0.0, %v797
    %799 = vdwg.mxu0
    %800 = vmatpush.msra.mxu0 %v171
    %801 = vmatpush.msra.mxu0 %v167
    %802 = vmatpush.msra.mxu0 %v163
    %803 = vmatpush.msra.mxu0 %v159
    %804 = vmatpush.msra.mxu0 %v155
    %805 = vmatpush.msra.mxu0 %v151
    %806 = vmatpush.msra.mxu0 %v147
    %807 = vmatpush.msra.mxu0 %v143
    %808 = vmatpush.msra.mxu0 %v139
    %809 = vmatpush.msra.mxu0 %v135
    %810 = vmatpush.msra.mxu0 %v131
    %811 = vmatpush.msra.mxu0 %v127
    %812 = vmatpush.msra.mxu0 %v123
    %813 = vmatpush.msra.mxu0 %v119
    %814 = vmatpush.msra.mxu0 %v115
    %815 = vmatpush.msra.mxu0 %v111
    %816 = vmatmul.f32.gmra.mxu0 %v512
    %v817 = vpop.f32.mrf.mxu0
    %v818 = vadd.f32 0.0, %v817
    %819 = vdwg.mxu0
    %820 = vmatpush.msra.mxu0 %v172
    %821 = vmatpush.msra.mxu0 %v168
    %822 = vmatpush.msra.mxu0 %v164
    %823 = vmatpush.msra.mxu0 %v160
    %824 = vmatpush.msra.mxu0 %v156
    %825 = vmatpush.msra.mxu0 %v152
    %826 = vmatpush.msra.mxu0 %v148
    %827 = vmatpush.msra.mxu0 %v144
    %828 = vmatpush.msra.mxu0 %v140
    %829 = vmatpush.msra.mxu0 %v136
    %830 = vmatpush.msra.mxu0 %v132
    %831 = vmatpush.msra.mxu0 %v128
    %832 = vmatpush.msra.mxu0 %v124
    %833 = vmatpush.msra.mxu0 %v120
    %834 = vmatpush.msra.mxu0 %v116
    %835 = vmatpush.msra.mxu0 %v112
    %836 = vmatmul.f32.gmra.mxu0 %v512
    %v837 = vpop.f32.mrf.mxu0
    %v838 = vadd.f32 0.0, %v837
    %839 = vdwg.mxu0
    %v841 = vsel %vm355, %v757, 0
    %843 = vmatpush.msra.mxu0 0.0
    %844 = vmatpush.msra.mxu0 0.0
    %845 = vmatpush.msra.mxu0 0.0
    %846 = vmatpush.msra.mxu0 0.0
    %847 = vmatpush.msra.mxu0 0.0
    %848 = vmatpush.msra.mxu0 0.0
    %849 = vmatpush.msra.mxu0 0.0
    %850 = vmatpush.msra.mxu0 0.0
    %851 = vmatpush.msra.mxu0 0.0
    %852 = vmatpush.msra.mxu0 0.0
    %853 = vmatpush.msra.mxu0 0.0
    %854 = vmatpush.msra.mxu0 0.0
    %855 = vmatpush.msra.mxu0 %v105
    %856 = vmatpush.msra.mxu0 %v101
    %857 = vmatpush.msra.mxu0 %v97
    %858 = vmatpush.msra.mxu0 %v93
    %859 = vmatmul.f32.gmra.mxu0 %v841
    %v860 = vpop.f32.mrf.mxu0
    %v861 = vadd.f32 %v778, %v860
    %862 = vdwg.mxu0
    %863 = vmatpush.msra.mxu0 0.0
    %864 = vmatpush.msra.mxu0 0.0
    %865 = vmatpush.msra.mxu0 0.0
    %866 = vmatpush.msra.mxu0 0.0
    %867 = vmatpush.msra.mxu0 0.0
    %868 = vmatpush.msra.mxu0 0.0
    %869 = vmatpush.msra.mxu0 0.0
    %870 = vmatpush.msra.mxu0 0.0
    %871 = vmatpush.msra.mxu0 0.0
    %872 = vmatpush.msra.mxu0 0.0
    %873 = vmatpush.msra.mxu0 0.0
    %874 = vmatpush.msra.mxu0 0.0
    %875 = vmatpush.msra.mxu0 %v106
    %876 = vmatpush.msra.mxu0 %v102
    %877 = vmatpush.msra.mxu0 %v98
    %878 = vmatpush.msra.mxu0 %v94
    %879 = vmatmul.f32.gmra.mxu0 %v841
    %v880 = vpop.f32.mrf.mxu0
    %v881 = vadd.f32 %v798, %v880
    %882 = vdwg.mxu0
    %883 = vmatpush.msra.mxu0 0.0
    %884 = vmatpush.msra.mxu0 0.0
    %885 = vmatpush.msra.mxu0 0.0
    %886 = vmatpush.msra.mxu0 0.0
    %887 = vmatpush.msra.mxu0 0.0
    %888 = vmatpush.msra.mxu0 0.0
    %889 = vmatpush.msra.mxu0 0.0
    %890 = vmatpush.msra.mxu0 0.0
    %891 = vmatpush.msra.mxu0 0.0
    %892 = vmatpush.msra.mxu0 0.0
    %893 = vmatpush.msra.mxu0 0.0
    %894 = vmatpush.msra.mxu0 0.0
    %895 = vmatpush.msra.mxu0 %v107
    %896 = vmatpush.msra.mxu0 %v103
    %897 = vmatpush.msra.mxu0 %v99
    %898 = vmatpush.msra.mxu0 %v95
    %899 = vmatmul.f32.gmra.mxu0 %v841
    %v900 = vpop.f32.mrf.mxu0
    %v901 = vadd.f32 %v818, %v900
    %902 = vdwg.mxu0
    %903 = vmatpush.msra.mxu0 0.0
    %904 = vmatpush.msra.mxu0 0.0
    %905 = vmatpush.msra.mxu0 0.0
    %906 = vmatpush.msra.mxu0 0.0
    %907 = vmatpush.msra.mxu0 0.0
    %908 = vmatpush.msra.mxu0 0.0
    %909 = vmatpush.msra.mxu0 0.0
    %910 = vmatpush.msra.mxu0 0.0
    %911 = vmatpush.msra.mxu0 0.0
    %912 = vmatpush.msra.mxu0 0.0
    %913 = vmatpush.msra.mxu0 0.0
    %914 = vmatpush.msra.mxu0 0.0
    %915 = vmatpush.msra.mxu0 %v108
    %916 = vmatpush.msra.mxu0 %v104
    %917 = vmatpush.msra.mxu0 %v100
    %918 = vmatpush.msra.mxu0 %v96
    %919 = vmatmul.f32.gmra.mxu0 %v841
    %v920 = vpop.f32.mrf.mxu0
    %v921 = vadd.f32 %v838, %v920
    %922 = vdwg.mxu0
    %v923 = vadd.f32 %v861, %v255
    %v924 = vadd.f32 %v881, %v256
    %v925 = vadd.f32 %v901, %v257
    %v926 = vadd.f32 %v921, %v258
    %v927 = vxor.u32 %v923, 2147483648
    %v928 = vmul.f32 %v927, 1.442695
    %v929 = vpow.pop %v928
    %v930 = vadd.f32 %v929, 1.0
    %v931 = vrcp.pop %v930
    %v932 = vmul.f32 %v930, %v931
    %v933 = vsub.f32 1.0, %v932
    %v934 = vmul.f32 %v931, %v933
    %v935 = vadd.f32 %v931, %v934
    %vm936 = vweird.f32 %v930
    %vm937 = vweird.f32 %v931
    %vm938 = vmor %vm936, %vm937
    %v939 = vsel %vm938, %v931, %v935
    %v940 = vand.u32 2147483647, %v930
    %vm941 = vcmp.eq.f32.partialorder %v940, 8.507059e+37
    %v942 = vand.u32 %v930, 2147483648
    %v943 = vor.u32 1.1754944e-38, %v942
    %v944 = vsel %vm941, %v943, %v939
    %v945 = vmul.f32 1.0, %v944
    %v946 = vxor.u32 %v924, 2147483648
    %v947 = vmul.f32 %v946, 1.442695
    %v948 = vpow.pop %v947
    %v949 = vadd.f32 %v948, 1.0
    %v950 = vrcp.pop %v949
    %v951 = vmul.f32 %v949, %v950
    %v952 = vsub.f32 1.0, %v951
    %v953 = vmul.f32 %v950, %v952
    %v954 = vadd.f32 %v950, %v953
    %vm955 = vweird.f32 %v949
    %vm956 = vweird.f32 %v950
    %vm957 = vmor %vm955, %vm956
    %v958 = vsel %vm957, %v950, %v954
    %v959 = vand.u32 2147483647, %v949
    %vm960 = vcmp.eq.f32.partialorder %v959, 8.507059e+37
    %v961 = vand.u32 %v949, 2147483648
    %v962 = vor.u32 1.1754944e-38, %v961
    %v963 = vsel %vm960, %v962, %v958
    %v964 = vmul.f32 1.0, %v963
    %v965 = vxor.u32 %v925, 2147483648
    %v966 = vmul.f32 %v965, 1.442695
    %v967 = vpow.pop %v966
    %v968 = vadd.f32 %v967, 1.0
    %v969 = vrcp.pop %v968
    %v970 = vmul.f32 %v968, %v969
    %v971 = vsub.f32 1.0, %v970
    %v972 = vmul.f32 %v969, %v971
    %v973 = vadd.f32 %v969, %v972
    %vm974 = vweird.f32 %v968
    %vm975 = vweird.f32 %v969
    %vm976 = vmor %vm974, %vm975
    %v977 = vsel %vm976, %v969, %v973
    %v978 = vand.u32 2147483647, %v968
    %vm979 = vcmp.eq.f32.partialorder %v978, 8.507059e+37
    %v980 = vand.u32 %v968, 2147483648
    %v981 = vor.u32 1.1754944e-38, %v980
    %v982 = vsel %vm979, %v981, %v977
    %v983 = vmul.f32 1.0, %v982
    %v984 = vtanh.pop %v926
    %v985 = vmul.f32 %v513, %v945
    %v986 = vmul.f32 %v964, %v984
    %v987 = vadd.f32 %v985, %v986
    %v988 = vtanh.pop %v987
    %v989 = vmul.f32 %v983, %v988
    %vm990 = vcmp.gt.f32.partialorder %v759, 0.5
    %v991 = vsel %vm990, 1, 0
    %992 = vset.pattern.permute.xlu0 0
    %993 = vperm.xlu0 %992, %v991
    %v994 = vpop.permute.xlu0 %993
    %vm995 = vcmp.eq.s32.totalorder %v994, 1
    %v996 = vsel %vm995, %v989, %v512
    %v997 = vsel %vm995, %v987, %v513
    %s998 = scalar_lea.vmem %s0, 48
    %v999 = vld [vmem:[%s998] sm:$0xff]
    %s1000 = scalar_lea.vmem %s1, 48
    %v1001 = vld [vmem:[%s1000] sm:$0xff]
    %1002 = vmatpush.msra.mxu0 %v249
    %1003 = vmatpush.msra.mxu0 %v245
    %1004 = vmatpush.msra.mxu0 %v241
    %1005 = vmatpush.msra.mxu0 %v237
    %1006 = vmatpush.msra.mxu0 %v233
    %1007 = vmatpush.msra.mxu0 %v229
    %1008 = vmatpush.msra.mxu0 %v225
    %1009 = vmatpush.msra.mxu0 %v221
    %1010 = vmatpush.msra.mxu0 %v217
    %1011 = vmatpush.msra.mxu0 %v213
    %1012 = vmatpush.msra.mxu0 %v209
    %1013 = vmatpush.msra.mxu0 %v205
    %1014 = vmatpush.msra.mxu0 %v201
    %1015 = vmatpush.msra.mxu0 %v197
    %1016 = vmatpush.msra.mxu0 %v193
    %1017 = vmatpush.msra.mxu0 %v189
    %1018 = vmatmul.f32.gmra.mxu0 %v754
    %v1019 = vpop.f32.mrf.mxu0
    %v1020 = vadd.f32 0.0, %v1019
    %1021 = vdwg.mxu0
    %1022 = vmatpush.msra.mxu0 %v250
    %1023 = vmatpush.msra.mxu0 %v246
    %1024 = vmatpush.msra.mxu0 %v242
    %1025 = vmatpush.msra.mxu0 %v238
    %1026 = vmatpush.msra.mxu0 %v234
    %1027 = vmatpush.msra.mxu0 %v230
    %1028 = vmatpush.msra.mxu0 %v226
    %1029 = vmatpush.msra.mxu0 %v222
    %1030 = vmatpush.msra.mxu0 %v218
    %1031 = vmatpush.msra.mxu0 %v214
    %1032 = vmatpush.msra.mxu0 %v210
    %1033 = vmatpush.msra.mxu0 %v206
    %1034 = vmatpush.msra.mxu0 %v202
    %1035 = vmatpush.msra.mxu0 %v198
    %1036 = vmatpush.msra.mxu0 %v194
    %1037 = vmatpush.msra.mxu0 %v190
    %1038 = vmatmul.f32.gmra.mxu0 %v754
    %v1039 = vpop.f32.mrf.mxu0
    %v1040 = vadd.f32 0.0, %v1039
    %1041 = vdwg.mxu0
    %1042 = vmatpush.msra.mxu0 %v251
    %1043 = vmatpush.msra.mxu0 %v247
    %1044 = vmatpush.msra.mxu0 %v243
    %1045 = vmatpush.msra.mxu0 %v239
    %1046 = vmatpush.msra.mxu0 %v235
    %1047 = vmatpush.msra.mxu0 %v231
    %1048 = vmatpush.msra.mxu0 %v227
    %1049 = vmatpush.msra.mxu0 %v223
    %1050 = vmatpush.msra.mxu0 %v219
    %1051 = vmatpush.msra.mxu0 %v215
    %1052 = vmatpush.msra.mxu0 %v211
    %1053 = vmatpush.msra.mxu0 %v207
    %1054 = vmatpush.msra.mxu0 %v203
    %1055 = vmatpush.msra.mxu0 %v199
    %1056 = vmatpush.msra.mxu0 %v195
    %1057 = vmatpush.msra.mxu0 %v191
    %1058 = vmatmul.f32.gmra.mxu0 %v754
    %v1059 = vpop.f32.mrf.mxu0
    %v1060 = vadd.f32 0.0, %v1059
    %1061 = vdwg.mxu0
    %1062 = vmatpush.msra.mxu0 %v252
    %1063 = vmatpush.msra.mxu0 %v248
    %1064 = vmatpush.msra.mxu0 %v244
    %1065 = vmatpush.msra.mxu0 %v240
    %1066 = vmatpush.msra.mxu0 %v236
    %1067 = vmatpush.msra.mxu0 %v232
    %1068 = vmatpush.msra.mxu0 %v228
    %1069 = vmatpush.msra.mxu0 %v224
    %1070 = vmatpush.msra.mxu0 %v220
    %1071 = vmatpush.msra.mxu0 %v216
    %1072 = vmatpush.msra.mxu0 %v212
    %1073 = vmatpush.msra.mxu0 %v208
    %1074 = vmatpush.msra.mxu0 %v204
    %1075 = vmatpush.msra.mxu0 %v200
    %1076 = vmatpush.msra.mxu0 %v196
    %1077 = vmatpush.msra.mxu0 %v192
    %1078 = vmatmul.f32.gmra.mxu0 %v754
    %v1079 = vpop.f32.mrf.mxu0
    %v1080 = vadd.f32 0.0, %v1079
    %1081 = vdwg.mxu0
    %v1083 = vsel %vm355, %v999, 0
    %1085 = vmatpush.msra.mxu0 0.0
    %1086 = vmatpush.msra.mxu0 0.0
    %1087 = vmatpush.msra.mxu0 0.0
    %1088 = vmatpush.msra.mxu0 0.0
    %1089 = vmatpush.msra.mxu0 0.0
    %1090 = vmatpush.msra.mxu0 0.0
    %1091 = vmatpush.msra.mxu0 0.0
    %1092 = vmatpush.msra.mxu0 0.0
    %1093 = vmatpush.msra.mxu0 0.0
    %1094 = vmatpush.msra.mxu0 0.0
    %1095 = vmatpush.msra.mxu0 0.0
    %1096 = vmatpush.msra.mxu0 0.0
    %1097 = vmatpush.msra.mxu0 %v185
    %1098 = vmatpush.msra.mxu0 %v181
    %1099 = vmatpush.msra.mxu0 %v177
    %1100 = vmatpush.msra.mxu0 %v173
    %1101 = vmatmul.f32.gmra.mxu0 %v1083
    %v1102 = vpop.f32.mrf.mxu0
    %v1103 = vadd.f32 %v1020, %v1102
    %1104 = vdwg.mxu0
    %1105 = vmatpush.msra.mxu0 0.0
    %1106 = vmatpush.msra.mxu0 0.0
    %1107 = vmatpush.msra.mxu0 0.0
    %1108 = vmatpush.msra.mxu0 0.0
    %1109 = vmatpush.msra.mxu0 0.0
    %1110 = vmatpush.msra.mxu0 0.0
    %1111 = vmatpush.msra.mxu0 0.0
    %1112 = vmatpush.msra.mxu0 0.0
    %1113 = vmatpush.msra.mxu0 0.0
    %1114 = vmatpush.msra.mxu0 0.0
    %1115 = vmatpush.msra.mxu0 0.0
    %1116 = vmatpush.msra.mxu0 0.0
    %1117 = vmatpush.msra.mxu0 %v186
    %1118 = vmatpush.msra.mxu0 %v182
    %1119 = vmatpush.msra.mxu0 %v178
    %1120 = vmatpush.msra.mxu0 %v174
    %1121 = vmatmul.f32.gmra.mxu0 %v1083
    %v1122 = vpop.f32.mrf.mxu0
    %v1123 = vadd.f32 %v1040, %v1122
    %1124 = vdwg.mxu0
    %1125 = vmatpush.msra.mxu0 0.0
    %1126 = vmatpush.msra.mxu0 0.0
    %1127 = vmatpush.msra.mxu0 0.0
    %1128 = vmatpush.msra.mxu0 0.0
    %1129 = vmatpush.msra.mxu0 0.0
    %1130 = vmatpush.msra.mxu0 0.0
    %1131 = vmatpush.msra.mxu0 0.0
    %1132 = vmatpush.msra.mxu0 0.0
    %1133 = vmatpush.msra.mxu0 0.0
    %1134 = vmatpush.msra.mxu0 0.0
    %1135 = vmatpush.msra.mxu0 0.0
    %1136 = vmatpush.msra.mxu0 0.0
    %1137 = vmatpush.msra.mxu0 %v187
    %1138 = vmatpush.msra.mxu0 %v183
    %1139 = vmatpush.msra.mxu0 %v179
    %1140 = vmatpush.msra.mxu0 %v175
    %1141 = vmatmul.f32.gmra.mxu0 %v1083
    %v1142 = vpop.f32.mrf.mxu0
    %v1143 = vadd.f32 %v1060, %v1142
    %1144 = vdwg.mxu0
    %1145 = vmatpush.msra.mxu0 0.0
    %1146 = vmatpush.msra.mxu0 0.0
    %1147 = vmatpush.msra.mxu0 0.0
    %1148 = vmatpush.msra.mxu0 0.0
    %1149 = vmatpush.msra.mxu0 0.0
    %1150 = vmatpush.msra.mxu0 0.0
    %1151 = vmatpush.msra.mxu0 0.0
    %1152 = vmatpush.msra.mxu0 0.0
    %1153 = vmatpush.msra.mxu0 0.0
    %1154 = vmatpush.msra.mxu0 0.0
    %1155 = vmatpush.msra.mxu0 0.0
    %1156 = vmatpush.msra.mxu0 0.0
    %1157 = vmatpush.msra.mxu0 %v188
    %1158 = vmatpush.msra.mxu0 %v184
    %1159 = vmatpush.msra.mxu0 %v180
    %1160 = vmatpush.msra.mxu0 %v176
    %1161 = vmatmul.f32.gmra.mxu0 %v1083
    %v1162 = vpop.f32.mrf.mxu0
    %v1163 = vadd.f32 %v1080, %v1162
    %1164 = vdwg.mxu0
    %v1165 = vadd.f32 %v1103, %v265
    %v1166 = vadd.f32 %v1123, %v266
    %v1167 = vadd.f32 %v1143, %v267
    %v1168 = vadd.f32 %v1163, %v268
    %v1169 = vxor.u32 %v1165, 2147483648
    %v1170 = vmul.f32 %v1169, 1.442695
    %v1171 = vpow.pop %v1170
    %v1172 = vadd.f32 %v1171, 1.0
    %v1173 = vrcp.pop %v1172
    %v1174 = vmul.f32 %v1172, %v1173
    %v1175 = vsub.f32 1.0, %v1174
    %v1176 = vmul.f32 %v1173, %v1175
    %v1177 = vadd.f32 %v1173, %v1176
    %vm1178 = vweird.f32 %v1172
    %vm1179 = vweird.f32 %v1173
    %vm1180 = vmor %vm1178, %vm1179
    %v1181 = vsel %vm1180, %v1173, %v1177
    %v1182 = vand.u32 2147483647, %v1172
    %vm1183 = vcmp.eq.f32.partialorder %v1182, 8.507059e+37
    %v1184 = vand.u32 %v1172, 2147483648
    %v1185 = vor.u32 1.1754944e-38, %v1184
    %v1186 = vsel %vm1183, %v1185, %v1181
    %v1187 = vmul.f32 1.0, %v1186
    %v1188 = vxor.u32 %v1166, 2147483648
    %v1189 = vmul.f32 %v1188, 1.442695
    %v1190 = vpow.pop %v1189
    %v1191 = vadd.f32 %v1190, 1.0
    %v1192 = vrcp.pop %v1191
    %v1193 = vmul.f32 %v1191, %v1192
    %v1194 = vsub.f32 1.0, %v1193
    %v1195 = vmul.f32 %v1192, %v1194
    %v1196 = vadd.f32 %v1192, %v1195
    %vm1197 = vweird.f32 %v1191
    %vm1198 = vweird.f32 %v1192
    %vm1199 = vmor %vm1197, %vm1198
    %v1200 = vsel %vm1199, %v1192, %v1196
    %v1201 = vand.u32 2147483647, %v1191
    %vm1202 = vcmp.eq.f32.partialorder %v1201, 8.507059e+37
    %v1203 = vand.u32 %v1191, 2147483648
    %v1204 = vor.u32 1.1754944e-38, %v1203
    %v1205 = vsel %vm1202, %v1204, %v1200
    %v1206 = vmul.f32 1.0, %v1205
    %v1207 = vxor.u32 %v1167, 2147483648
    %v1208 = vmul.f32 %v1207, 1.442695
    %v1209 = vpow.pop %v1208
    %v1210 = vadd.f32 %v1209, 1.0
    %v1211 = vrcp.pop %v1210
    %v1212 = vmul.f32 %v1210, %v1211
    %v1213 = vsub.f32 1.0, %v1212
    %v1214 = vmul.f32 %v1211, %v1213
    %v1215 = vadd.f32 %v1211, %v1214
    %vm1216 = vweird.f32 %v1210
    %vm1217 = vweird.f32 %v1211
    %vm1218 = vmor %vm1216, %vm1217
    %v1219 = vsel %vm1218, %v1211, %v1215
    %v1220 = vand.u32 2147483647, %v1210
    %vm1221 = vcmp.eq.f32.partialorder %v1220, 8.507059e+37
    %v1222 = vand.u32 %v1210, 2147483648
    %v1223 = vor.u32 1.1754944e-38, %v1222
    %v1224 = vsel %vm1221, %v1223, %v1219
    %v1225 = vmul.f32 1.0, %v1224
    %v1226 = vtanh.pop %v1168
    %v1227 = vmul.f32 %v755, %v1187
    %v1228 = vmul.f32 %v1206, %v1226
    %v1229 = vadd.f32 %v1227, %v1228
    %v1230 = vtanh.pop %v1229
    %v1231 = vmul.f32 %v1225, %v1230
    %vm1232 = vcmp.gt.f32.partialorder %v1001, 0.5
    %v1233 = vsel %vm1232, 1, 0
    %1234 = vset.pattern.permute.xlu0 0
    %1235 = vperm.xlu0 %1234, %v1233
    %v1236 = vpop.permute.xlu0 %1235
    %vm1237 = vcmp.eq.s32.totalorder %v1236, 1
    %v1238 = vsel %vm1237, %v1231, %v754
    %v1239 = vsel %vm1237, %v1229, %v755
    %s1240 = scalar_lea.vmem %s0, 16
    %v1241 = vld [vmem:[%s1240] sm:$0xff]
    %s1242 = scalar_lea.vmem %s1, 16
    %v1243 = vld [vmem:[%s1242] sm:$0xff]
    %1244 = vmatpush.msra.mxu0 %v169
    %1245 = vmatpush.msra.mxu0 %v165
    %1246 = vmatpush.msra.mxu0 %v161
    %1247 = vmatpush.msra.mxu0 %v157
    %1248 = vmatpush.msra.mxu0 %v153
    %1249 = vmatpush.msra.mxu0 %v149
    %1250 = vmatpush.msra.mxu0 %v145
    %1251 = vmatpush.msra.mxu0 %v141
    %1252 = vmatpush.msra.mxu0 %v137
    %1253 = vmatpush.msra.mxu0 %v133
    %1254 = vmatpush.msra.mxu0 %v129
    %1255 = vmatpush.msra.mxu0 %v125
    %1256 = vmatpush.msra.mxu0 %v121
    %1257 = vmatpush.msra.mxu0 %v117
    %1258 = vmatpush.msra.mxu0 %v113
    %1259 = vmatpush.msra.mxu0 %v109
    %1260 = vmatmul.f32.gmra.mxu0 %v996
    %v1261 = vpop.f32.mrf.mxu0
    %v1262 = vadd.f32 0.0, %v1261
    %1263 = vdwg.mxu0
    %1264 = vmatpush.msra.mxu0 %v170
    %1265 = vmatpush.msra.mxu0 %v166
    %1266 = vmatpush.msra.mxu0 %v162
    %1267 = vmatpush.msra.mxu0 %v158
    %1268 = vmatpush.msra.mxu0 %v154
    %1269 = vmatpush.msra.mxu0 %v150
    %1270 = vmatpush.msra.mxu0 %v146
    %1271 = vmatpush.msra.mxu0 %v142
    %1272 = vmatpush.msra.mxu0 %v138
    %1273 = vmatpush.msra.mxu0 %v134
    %1274 = vmatpush.msra.mxu0 %v130
    %1275 = vmatpush.msra.mxu0 %v126
    %1276 = vmatpush.msra.mxu0 %v122
    %1277 = vmatpush.msra.mxu0 %v118
    %1278 = vmatpush.msra.mxu0 %v114
    %1279 = vmatpush.msra.mxu0 %v110
    %1280 = vmatmul.f32.gmra.mxu0 %v996
    %v1281 = vpop.f32.mrf.mxu0
    %v1282 = vadd.f32 0.0, %v1281
    %1283 = vdwg.mxu0
    %1284 = vmatpush.msra.mxu0 %v171
    %1285 = vmatpush.msra.mxu0 %v167
    %1286 = vmatpush.msra.mxu0 %v163
    %1287 = vmatpush.msra.mxu0 %v159
    %1288 = vmatpush.msra.mxu0 %v155
    %1289 = vmatpush.msra.mxu0 %v151
    %1290 = vmatpush.msra.mxu0 %v147
    %1291 = vmatpush.msra.mxu0 %v143
    %1292 = vmatpush.msra.mxu0 %v139
    %1293 = vmatpush.msra.mxu0 %v135
    %1294 = vmatpush.msra.mxu0 %v131
    %1295 = vmatpush.msra.mxu0 %v127
    %1296 = vmatpush.msra.mxu0 %v123
    %1297 = vmatpush.msra.mxu0 %v119
    %1298 = vmatpush.msra.mxu0 %v115
    %1299 = vmatpush.msra.mxu0 %v111
    %1300 = vmatmul.f32.gmra.mxu0 %v996
    %v1301 = vpop.f32.mrf.mxu0
    %v1302 = vadd.f32 0.0, %v1301
    %1303 = vdwg.mxu0
    %1304 = vmatpush.msra.mxu0 %v172
    %1305 = vmatpush.msra.mxu0 %v168
    %1306 = vmatpush.msra.mxu0 %v164
    %1307 = vmatpush.msra.mxu0 %v160
    %1308 = vmatpush.msra.mxu0 %v156
    %1309 = vmatpush.msra.mxu0 %v152
    %1310 = vmatpush.msra.mxu0 %v148
    %1311 = vmatpush.msra.mxu0 %v144
    %1312 = vmatpush.msra.mxu0 %v140
    %1313 = vmatpush.msra.mxu0 %v136
    %1314 = vmatpush.msra.mxu0 %v132
    %1315 = vmatpush.msra.mxu0 %v128
    %1316 = vmatpush.msra.mxu0 %v124
    %1317 = vmatpush.msra.mxu0 %v120
    %1318 = vmatpush.msra.mxu0 %v116
    %1319 = vmatpush.msra.mxu0 %v112
    %1320 = vmatmul.f32.gmra.mxu0 %v996
    %v1321 = vpop.f32.mrf.mxu0
    %v1322 = vadd.f32 0.0, %v1321
    %1323 = vdwg.mxu0
    %v1325 = vsel %vm355, %v1241, 0
    %1327 = vmatpush.msra.mxu0 0.0
    %1328 = vmatpush.msra.mxu0 0.0
    %1329 = vmatpush.msra.mxu0 0.0
    %1330 = vmatpush.msra.mxu0 0.0
    %1331 = vmatpush.msra.mxu0 0.0
    %1332 = vmatpush.msra.mxu0 0.0
    %1333 = vmatpush.msra.mxu0 0.0
    %1334 = vmatpush.msra.mxu0 0.0
    %1335 = vmatpush.msra.mxu0 0.0
    %1336 = vmatpush.msra.mxu0 0.0
    %1337 = vmatpush.msra.mxu0 0.0
    %1338 = vmatpush.msra.mxu0 0.0
    %1339 = vmatpush.msra.mxu0 %v105
    %1340 = vmatpush.msra.mxu0 %v101
    %1341 = vmatpush.msra.mxu0 %v97
    %1342 = vmatpush.msra.mxu0 %v93
    %1343 = vmatmul.f32.gmra.mxu0 %v1325
    %v1344 = vpop.f32.mrf.mxu0
    %v1345 = vadd.f32 %v1262, %v1344
    %1346 = vdwg.mxu0
    %1347 = vmatpush.msra.mxu0 0.0
    %1348 = vmatpush.msra.mxu0 0.0
    %1349 = vmatpush.msra.mxu0 0.0
    %1350 = vmatpush.msra.mxu0 0.0
    %1351 = vmatpush.msra.mxu0 0.0
    %1352 = vmatpush.msra.mxu0 0.0
    %1353 = vmatpush.msra.mxu0 0.0
    %1354 = vmatpush.msra.mxu0 0.0
    %1355 = vmatpush.msra.mxu0 0.0
    %1356 = vmatpush.msra.mxu0 0.0
    %1357 = vmatpush.msra.mxu0 0.0
    %1358 = vmatpush.msra.mxu0 0.0
    %1359 = vmatpush.msra.mxu0 %v106
    %1360 = vmatpush.msra.mxu0 %v102
    %1361 = vmatpush.msra.mxu0 %v98
    %1362 = vmatpush.msra.mxu0 %v94
    %1363 = vmatmul.f32.gmra.mxu0 %v1325
    %v1364 = vpop.f32.mrf.mxu0
    %v1365 = vadd.f32 %v1282, %v1364
    %1366 = vdwg.mxu0
    %1367 = vmatpush.msra.mxu0 0.0
    %1368 = vmatpush.msra.mxu0 0.0
    %1369 = vmatpush.msra.mxu0 0.0
    %1370 = vmatpush.msra.mxu0 0.0
    %1371 = vmatpush.msra.mxu0 0.0
    %1372 = vmatpush.msra.mxu0 0.0
    %1373 = vmatpush.msra.mxu0 0.0
    %1374 = vmatpush.msra.mxu0 0.0
    %1375 = vmatpush.msra.mxu0 0.0
    %1376 = vmatpush.msra.mxu0 0.0
    %1377 = vmatpush.msra.mxu0 0.0
    %1378 = vmatpush.msra.mxu0 0.0
    %1379 = vmatpush.msra.mxu0 %v107
    %1380 = vmatpush.msra.mxu0 %v103
    %1381 = vmatpush.msra.mxu0 %v99
    %1382 = vmatpush.msra.mxu0 %v95
    %1383 = vmatmul.f32.gmra.mxu0 %v1325
    %v1384 = vpop.f32.mrf.mxu0
    %v1385 = vadd.f32 %v1302, %v1384
    %1386 = vdwg.mxu0
    %1387 = vmatpush.msra.mxu0 0.0
    %1388 = vmatpush.msra.mxu0 0.0
    %1389 = vmatpush.msra.mxu0 0.0
    %1390 = vmatpush.msra.mxu0 0.0
    %1391 = vmatpush.msra.mxu0 0.0
    %1392 = vmatpush.msra.mxu0 0.0
    %1393 = vmatpush.msra.mxu0 0.0
    %1394 = vmatpush.msra.mxu0 0.0
    %1395 = vmatpush.msra.mxu0 0.0
    %1396 = vmatpush.msra.mxu0 0.0
    %1397 = vmatpush.msra.mxu0 0.0
    %1398 = vmatpush.msra.mxu0 0.0
    %1399 = vmatpush.msra.mxu0 %v108
    %1400 = vmatpush.msra.mxu0 %v104
    %1401 = vmatpush.msra.mxu0 %v100
    %1402 = vmatpush.msra.mxu0 %v96
    %1403 = vmatmul.f32.gmra.mxu0 %v1325
    %v1404 = vpop.f32.mrf.mxu0
    %v1405 = vadd.f32 %v1322, %v1404
    %1406 = vdwg.mxu0
    %v1407 = vadd.f32 %v1345, %v255
    %v1408 = vadd.f32 %v1365, %v256
    %v1409 = vadd.f32 %v1385, %v257
    %v1410 = vadd.f32 %v1405, %v258
    %v1411 = vxor.u32 %v1407, 2147483648
    %v1412 = vmul.f32 %v1411, 1.442695
    %v1413 = vpow.pop %v1412
    %v1414 = vadd.f32 %v1413, 1.0
    %v1415 = vrcp.pop %v1414
    %v1416 = vmul.f32 %v1414, %v1415
    %v1417 = vsub.f32 1.0, %v1416
    %v1418 = vmul.f32 %v1415, %v1417
    %v1419 = vadd.f32 %v1415, %v1418
    %vm1420 = vweird.f32 %v1414
    %vm1421 = vweird.f32 %v1415
    %vm1422 = vmor %vm1420, %vm1421
    %v1423 = vsel %vm1422, %v1415, %v1419
    %v1424 = vand.u32 2147483647, %v1414
    %vm1425 = vcmp.eq.f32.partialorder %v1424, 8.507059e+37
    %v1426 = vand.u32 %v1414, 2147483648
    %v1427 = vor.u32 1.1754944e-38, %v1426
    %v1428 = vsel %vm1425, %v1427, %v1423
    %v1429 = vmul.f32 1.0, %v1428
    %v1430 = vxor.u32 %v1408, 2147483648
    %v1431 = vmul.f32 %v1430, 1.442695
    %v1432 = vpow.pop %v1431
    %v1433 = vadd.f32 %v1432, 1.0
    %v1434 = vrcp.pop %v1433
    %v1435 = vmul.f32 %v1433, %v1434
    %v1436 = vsub.f32 1.0, %v1435
    %v1437 = vmul.f32 %v1434, %v1436
    %v1438 = vadd.f32 %v1434, %v1437
    %vm1439 = vweird.f32 %v1433
    %vm1440 = vweird.f32 %v1434
    %vm1441 = vmor %vm1439, %vm1440
    %v1442 = vsel %vm1441, %v1434, %v1438
    %v1443 = vand.u32 2147483647, %v1433
    %vm1444 = vcmp.eq.f32.partialorder %v1443, 8.507059e+37
    %v1445 = vand.u32 %v1433, 2147483648
    %v1446 = vor.u32 1.1754944e-38, %v1445
    %v1447 = vsel %vm1444, %v1446, %v1442
    %v1448 = vmul.f32 1.0, %v1447
    %v1449 = vxor.u32 %v1409, 2147483648
    %v1450 = vmul.f32 %v1449, 1.442695
    %v1451 = vpow.pop %v1450
    %v1452 = vadd.f32 %v1451, 1.0
    %v1453 = vrcp.pop %v1452
    %v1454 = vmul.f32 %v1452, %v1453
    %v1455 = vsub.f32 1.0, %v1454
    %v1456 = vmul.f32 %v1453, %v1455
    %v1457 = vadd.f32 %v1453, %v1456
    %vm1458 = vweird.f32 %v1452
    %vm1459 = vweird.f32 %v1453
    %vm1460 = vmor %vm1458, %vm1459
    %v1461 = vsel %vm1460, %v1453, %v1457
    %v1462 = vand.u32 2147483647, %v1452
    %vm1463 = vcmp.eq.f32.partialorder %v1462, 8.507059e+37
    %v1464 = vand.u32 %v1452, 2147483648
    %v1465 = vor.u32 1.1754944e-38, %v1464
    %v1466 = vsel %vm1463, %v1465, %v1461
    %v1467 = vmul.f32 1.0, %v1466
    %v1468 = vtanh.pop %v1410
    %v1469 = vmul.f32 %v997, %v1429
    %v1470 = vmul.f32 %v1448, %v1468
    %v1471 = vadd.f32 %v1469, %v1470
    %v1472 = vtanh.pop %v1471
    %v1473 = vmul.f32 %v1467, %v1472
    %vm1474 = vcmp.gt.f32.partialorder %v1243, 0.5
    %v1475 = vsel %vm1474, 1, 0
    %1476 = vset.pattern.permute.xlu0 0
    %1477 = vperm.xlu0 %1476, %v1475
    %v1478 = vpop.permute.xlu0 %1477
    %vm1479 = vcmp.eq.s32.totalorder %v1478, 1
    %v1480 = vsel %vm1479, %v1473, %v996
    %v1481 = vsel %vm1479, %v1471, %v997
    %s1482 = scalar_lea.vmem %s0, 40
    %v1483 = vld [vmem:[%s1482] sm:$0xff]
    %s1484 = scalar_lea.vmem %s1, 40
    %v1485 = vld [vmem:[%s1484] sm:$0xff]
    %1486 = vmatpush.msra.mxu0 %v249
    %1487 = vmatpush.msra.mxu0 %v245
    %1488 = vmatpush.msra.mxu0 %v241
    %1489 = vmatpush.msra.mxu0 %v237
    %1490 = vmatpush.msra.mxu0 %v233
    %1491 = vmatpush.msra.mxu0 %v229
    %1492 = vmatpush.msra.mxu0 %v225
    %1493 = vmatpush.msra.mxu0 %v221
    %1494 = vmatpush.msra.mxu0 %v217
    %1495 = vmatpush.msra.mxu0 %v213
    %1496 = vmatpush.msra.mxu0 %v209
    %1497 = vmatpush.msra.mxu0 %v205
    %1498 = vmatpush.msra.mxu0 %v201
    %1499 = vmatpush.msra.mxu0 %v197
    %1500 = vmatpush.msra.mxu0 %v193
    %1501 = vmatpush.msra.mxu0 %v189
    %1502 = vmatmul.f32.gmra.mxu0 %v1238
    %v1503 = vpop.f32.mrf.mxu0
    %v1504 = vadd.f32 0.0, %v1503
    %1505 = vdwg.mxu0
    %1506 = vmatpush.msra.mxu0 %v250
    %1507 = vmatpush.msra.mxu0 %v246
    %1508 = vmatpush.msra.mxu0 %v242
    %1509 = vmatpush.msra.mxu0 %v238
    %1510 = vmatpush.msra.mxu0 %v234
    %1511 = vmatpush.msra.mxu0 %v230
    %1512 = vmatpush.msra.mxu0 %v226
    %1513 = vmatpush.msra.mxu0 %v222
    %1514 = vmatpush.msra.mxu0 %v218
    %1515 = vmatpush.msra.mxu0 %v214
    %1516 = vmatpush.msra.mxu0 %v210
    %1517 = vmatpush.msra.mxu0 %v206
    %1518 = vmatpush.msra.mxu0 %v202
    %1519 = vmatpush.msra.mxu0 %v198
    %1520 = vmatpush.msra.mxu0 %v194
    %1521 = vmatpush.msra.mxu0 %v190
    %1522 = vmatmul.f32.gmra.mxu0 %v1238
    %v1523 = vpop.f32.mrf.mxu0
    %v1524 = vadd.f32 0.0, %v1523
    %1525 = vdwg.mxu0
    %1526 = vmatpush.msra.mxu0 %v251
    %1527 = vmatpush.msra.mxu0 %v247
    %1528 = vmatpush.msra.mxu0 %v243
    %1529 = vmatpush.msra.mxu0 %v239
    %1530 = vmatpush.msra.mxu0 %v235
    %1531 = vmatpush.msra.mxu0 %v231
    %1532 = vmatpush.msra.mxu0 %v227
    %1533 = vmatpush.msra.mxu0 %v223
    %1534 = vmatpush.msra.mxu0 %v219
    %1535 = vmatpush.msra.mxu0 %v215
    %1536 = vmatpush.msra.mxu0 %v211
    %1537 = vmatpush.msra.mxu0 %v207
    %1538 = vmatpush.msra.mxu0 %v203
    %1539 = vmatpush.msra.mxu0 %v199
    %1540 = vmatpush.msra.mxu0 %v195
    %1541 = vmatpush.msra.mxu0 %v191
    %1542 = vmatmul.f32.gmra.mxu0 %v1238
    %v1543 = vpop.f32.mrf.mxu0
    %v1544 = vadd.f32 0.0, %v1543
    %1545 = vdwg.mxu0
    %1546 = vmatpush.msra.mxu0 %v252
    %1547 = vmatpush.msra.mxu0 %v248
    %1548 = vmatpush.msra.mxu0 %v244
    %1549 = vmatpush.msra.mxu0 %v240
    %1550 = vmatpush.msra.mxu0 %v236
    %1551 = vmatpush.msra.mxu0 %v232
    %1552 = vmatpush.msra.mxu0 %v228
    %1553 = vmatpush.msra.mxu0 %v224
    %1554 = vmatpush.msra.mxu0 %v220
    %1555 = vmatpush.msra.mxu0 %v216
    %1556 = vmatpush.msra.mxu0 %v212
    %1557 = vmatpush.msra.mxu0 %v208
    %1558 = vmatpush.msra.mxu0 %v204
    %1559 = vmatpush.msra.mxu0 %v200
    %1560 = vmatpush.msra.mxu0 %v196
    %1561 = vmatpush.msra.mxu0 %v192
    %1562 = vmatmul.f32.gmra.mxu0 %v1238
    %v1563 = vpop.f32.mrf.mxu0
    %v1564 = vadd.f32 0.0, %v1563
    %1565 = vdwg.mxu0
    %v1567 = vsel %vm355, %v1483, 0
    %1569 = vmatpush.msra.mxu0 0.0
    %1570 = vmatpush.msra.mxu0 0.0
    %1571 = vmatpush.msra.mxu0 0.0
    %1572 = vmatpush.msra.mxu0 0.0
    %1573 = vmatpush.msra.mxu0 0.0
    %1574 = vmatpush.msra.mxu0 0.0
    %1575 = vmatpush.msra.mxu0 0.0
    %1576 = vmatpush.msra.mxu0 0.0
    %1577 = vmatpush.msra.mxu0 0.0
    %1578 = vmatpush.msra.mxu0 0.0
    %1579 = vmatpush.msra.mxu0 0.0
    %1580 = vmatpush.msra.mxu0 0.0
    %1581 = vmatpush.msra.mxu0 %v185
    %1582 = vmatpush.msra.mxu0 %v181
    %1583 = vmatpush.msra.mxu0 %v177
    %1584 = vmatpush.msra.mxu0 %v173
    %1585 = vmatmul.f32.gmra.mxu0 %v1567
    %v1586 = vpop.f32.mrf.mxu0
    %v1587 = vadd.f32 %v1504, %v1586
    %1588 = vdwg.mxu0
    %1589 = vmatpush.msra.mxu0 0.0
    %1590 = vmatpush.msra.mxu0 0.0
    %1591 = vmatpush.msra.mxu0 0.0
    %1592 = vmatpush.msra.mxu0 0.0
    %1593 = vmatpush.msra.mxu0 0.0
    %1594 = vmatpush.msra.mxu0 0.0
    %1595 = vmatpush.msra.mxu0 0.0
    %1596 = vmatpush.msra.mxu0 0.0
    %1597 = vmatpush.msra.mxu0 0.0
    %1598 = vmatpush.msra.mxu0 0.0
    %1599 = vmatpush.msra.mxu0 0.0
    %1600 = vmatpush.msra.mxu0 0.0
    %1601 = vmatpush.msra.mxu0 %v186
    %1602 = vmatpush.msra.mxu0 %v182
    %1603 = vmatpush.msra.mxu0 %v178
    %1604 = vmatpush.msra.mxu0 %v174
    %1605 = vmatmul.f32.gmra.mxu0 %v1567
    %v1606 = vpop.f32.mrf.mxu0
    %v1607 = vadd.f32 %v1524, %v1606
    %1608 = vdwg.mxu0
    %1609 = vmatpush.msra.mxu0 0.0
    %1610 = vmatpush.msra.mxu0 0.0
    %1611 = vmatpush.msra.mxu0 0.0
    %1612 = vmatpush.msra.mxu0 0.0
    %1613 = vmatpush.msra.mxu0 0.0
    %1614 = vmatpush.msra.mxu0 0.0
    %1615 = vmatpush.msra.mxu0 0.0
    %1616 = vmatpush.msra.mxu0 0.0
    %1617 = vmatpush.msra.mxu0 0.0
    %1618 = vmatpush.msra.mxu0 0.0
    %1619 = vmatpush.msra.mxu0 0.0
    %1620 = vmatpush.msra.mxu0 0.0
    %1621 = vmatpush.msra.mxu0 %v187
    %1622 = vmatpush.msra.mxu0 %v183
    %1623 = vmatpush.msra.mxu0 %v179
    %1624 = vmatpush.msra.mxu0 %v175
    %1625 = vmatmul.f32.gmra.mxu0 %v1567
    %v1626 = vpop.f32.mrf.mxu0
    %v1627 = vadd.f32 %v1544, %v1626
    %1628 = vdwg.mxu0
    %1629 = vmatpush.msra.mxu0 0.0
    %1630 = vmatpush.msra.mxu0 0.0
    %1631 = vmatpush.msra.mxu0 0.0
    %1632 = vmatpush.msra.mxu0 0.0
    %1633 = vmatpush.msra.mxu0 0.0
    %1634 = vmatpush.msra.mxu0 0.0
    %1635 = vmatpush.msra.mxu0 0.0
    %1636 = vmatpush.msra.mxu0 0.0
    %1637 = vmatpush.msra.mxu0 0.0
    %1638 = vmatpush.msra.mxu0 0.0
    %1639 = vmatpush.msra.mxu0 0.0
    %1640 = vmatpush.msra.mxu0 0.0
    %1641 = vmatpush.msra.mxu0 %v188
    %1642 = vmatpush.msra.mxu0 %v184
    %1643 = vmatpush.msra.mxu0 %v180
    %1644 = vmatpush.msra.mxu0 %v176
    %1645 = vmatmul.f32.gmra.mxu0 %v1567
    %v1646 = vpop.f32.mrf.mxu0
    %v1647 = vadd.f32 %v1564, %v1646
    %1648 = vdwg.mxu0
    %v1649 = vadd.f32 %v1587, %v265
    %v1650 = vadd.f32 %v1607, %v266
    %v1651 = vadd.f32 %v1627, %v267
    %v1652 = vadd.f32 %v1647, %v268
    %v1653 = vxor.u32 %v1649, 2147483648
    %v1654 = vmul.f32 %v1653, 1.442695
    %v1655 = vpow.pop %v1654
    %v1656 = vadd.f32 %v1655, 1.0
    %v1657 = vrcp.pop %v1656
    %v1658 = vmul.f32 %v1656, %v1657
    %v1659 = vsub.f32 1.0, %v1658
    %v1660 = vmul.f32 %v1657, %v1659
    %v1661 = vadd.f32 %v1657, %v1660
    %vm1662 = vweird.f32 %v1656
    %vm1663 = vweird.f32 %v1657
    %vm1664 = vmor %vm1662, %vm1663
    %v1665 = vsel %vm1664, %v1657, %v1661
    %v1666 = vand.u32 2147483647, %v1656
    %vm1667 = vcmp.eq.f32.partialorder %v1666, 8.507059e+37
    %v1668 = vand.u32 %v1656, 2147483648
    %v1669 = vor.u32 1.1754944e-38, %v1668
    %v1670 = vsel %vm1667, %v1669, %v1665
    %v1671 = vmul.f32 1.0, %v1670
    %v1672 = vxor.u32 %v1650, 2147483648
    %v1673 = vmul.f32 %v1672, 1.442695
    %v1674 = vpow.pop %v1673
    %v1675 = vadd.f32 %v1674, 1.0
    %v1676 = vrcp.pop %v1675
    %v1677 = vmul.f32 %v1675, %v1676
    %v1678 = vsub.f32 1.0, %v1677
    %v1679 = vmul.f32 %v1676, %v1678
    %v1680 = vadd.f32 %v1676, %v1679
    %vm1681 = vweird.f32 %v1675
    %vm1682 = vweird.f32 %v1676
    %vm1683 = vmor %vm1681, %vm1682
    %v1684 = vsel %vm1683, %v1676, %v1680
    %v1685 = vand.u32 2147483647, %v1675
    %vm1686 = vcmp.eq.f32.partialorder %v1685, 8.507059e+37
    %v1687 = vand.u32 %v1675, 2147483648
    %v1688 = vor.u32 1.1754944e-38, %v1687
    %v1689 = vsel %vm1686, %v1688, %v1684
    %v1690 = vmul.f32 1.0, %v1689
    %v1691 = vxor.u32 %v1651, 2147483648
    %v1692 = vmul.f32 %v1691, 1.442695
    %v1693 = vpow.pop %v1692
    %v1694 = vadd.f32 %v1693, 1.0
    %v1695 = vrcp.pop %v1694
    %v1696 = vmul.f32 %v1694, %v1695
    %v1697 = vsub.f32 1.0, %v1696
    %v1698 = vmul.f32 %v1695, %v1697
    %v1699 = vadd.f32 %v1695, %v1698
    %vm1700 = vweird.f32 %v1694
    %vm1701 = vweird.f32 %v1695
    %vm1702 = vmor %vm1700, %vm1701
    %v1703 = vsel %vm1702, %v1695, %v1699
    %v1704 = vand.u32 2147483647, %v1694
    %vm1705 = vcmp.eq.f32.partialorder %v1704, 8.507059e+37
    %v1706 = vand.u32 %v1694, 2147483648
    %v1707 = vor.u32 1.1754944e-38, %v1706
    %v1708 = vsel %vm1705, %v1707, %v1703
    %v1709 = vmul.f32 1.0, %v1708
    %v1710 = vtanh.pop %v1652
    %v1711 = vmul.f32 %v1239, %v1671
    %v1712 = vmul.f32 %v1690, %v1710
    %v1713 = vadd.f32 %v1711, %v1712
    %v1714 = vtanh.pop %v1713
    %v1715 = vmul.f32 %v1709, %v1714
    %vm1716 = vcmp.gt.f32.partialorder %v1485, 0.5
    %v1717 = vsel %vm1716, 1, 0
    %1718 = vset.pattern.permute.xlu0 0
    %1719 = vperm.xlu0 %1718, %v1717
    %v1720 = vpop.permute.xlu0 %1719
    %vm1721 = vcmp.eq.s32.totalorder %v1720, 1
    %v1722 = vsel %vm1721, %v1715, %v1238
    %v1723 = vsel %vm1721, %v1713, %v1239
    %s1724 = scalar_lea.vmem %s0, 24
    %v1725 = vld [vmem:[%s1724] sm:$0xff]
    %s1726 = scalar_lea.vmem %s1, 24
    %v1727 = vld [vmem:[%s1726] sm:$0xff]
    %1728 = vmatpush.msra.mxu0 %v169
    %1729 = vmatpush.msra.mxu0 %v165
    %1730 = vmatpush.msra.mxu0 %v161
    %1731 = vmatpush.msra.mxu0 %v157
    %1732 = vmatpush.msra.mxu0 %v153
    %1733 = vmatpush.msra.mxu0 %v149
    %1734 = vmatpush.msra.mxu0 %v145
    %1735 = vmatpush.msra.mxu0 %v141
    %1736 = vmatpush.msra.mxu0 %v137
    %1737 = vmatpush.msra.mxu0 %v133
    %1738 = vmatpush.msra.mxu0 %v129
    %1739 = vmatpush.msra.mxu0 %v125
    %1740 = vmatpush.msra.mxu0 %v121
    %1741 = vmatpush.msra.mxu0 %v117
    %1742 = vmatpush.msra.mxu0 %v113
    %1743 = vmatpush.msra.mxu0 %v109
    %1744 = vmatmul.f32.gmra.mxu0 %v1480
    %v1745 = vpop.f32.mrf.mxu0
    %v1746 = vadd.f32 0.0, %v1745
    %1747 = vdwg.mxu0
    %1748 = vmatpush.msra.mxu0 %v170
    %1749 = vmatpush.msra.mxu0 %v166
    %1750 = vmatpush.msra.mxu0 %v162
    %1751 = vmatpush.msra.mxu0 %v158
    %1752 = vmatpush.msra.mxu0 %v154
    %1753 = vmatpush.msra.mxu0 %v150
    %1754 = vmatpush.msra.mxu0 %v146
    %1755 = vmatpush.msra.mxu0 %v142
    %1756 = vmatpush.msra.mxu0 %v138
    %1757 = vmatpush.msra.mxu0 %v134
    %1758 = vmatpush.msra.mxu0 %v130
    %1759 = vmatpush.msra.mxu0 %v126
    %1760 = vmatpush.msra.mxu0 %v122
    %1761 = vmatpush.msra.mxu0 %v118
    %1762 = vmatpush.msra.mxu0 %v114
    %1763 = vmatpush.msra.mxu0 %v110
    %1764 = vmatmul.f32.gmra.mxu0 %v1480
    %v1765 = vpop.f32.mrf.mxu0
    %v1766 = vadd.f32 0.0, %v1765
    %1767 = vdwg.mxu0
    %1768 = vmatpush.msra.mxu0 %v171
    %1769 = vmatpush.msra.mxu0 %v167
    %1770 = vmatpush.msra.mxu0 %v163
    %1771 = vmatpush.msra.mxu0 %v159
    %1772 = vmatpush.msra.mxu0 %v155
    %1773 = vmatpush.msra.mxu0 %v151
    %1774 = vmatpush.msra.mxu0 %v147
    %1775 = vmatpush.msra.mxu0 %v143
    %1776 = vmatpush.msra.mxu0 %v139
    %1777 = vmatpush.msra.mxu0 %v135
    %1778 = vmatpush.msra.mxu0 %v131
    %1779 = vmatpush.msra.mxu0 %v127
    %1780 = vmatpush.msra.mxu0 %v123
    %1781 = vmatpush.msra.mxu0 %v119
    %1782 = vmatpush.msra.mxu0 %v115
    %1783 = vmatpush.msra.mxu0 %v111
    %1784 = vmatmul.f32.gmra.mxu0 %v1480
    %v1785 = vpop.f32.mrf.mxu0
    %v1786 = vadd.f32 0.0, %v1785
    %1787 = vdwg.mxu0
    %1788 = vmatpush.msra.mxu0 %v172
    %1789 = vmatpush.msra.mxu0 %v168
    %1790 = vmatpush.msra.mxu0 %v164
    %1791 = vmatpush.msra.mxu0 %v160
    %1792 = vmatpush.msra.mxu0 %v156
    %1793 = vmatpush.msra.mxu0 %v152
    %1794 = vmatpush.msra.mxu0 %v148
    %1795 = vmatpush.msra.mxu0 %v144
    %1796 = vmatpush.msra.mxu0 %v140
    %1797 = vmatpush.msra.mxu0 %v136
    %1798 = vmatpush.msra.mxu0 %v132
    %1799 = vmatpush.msra.mxu0 %v128
    %1800 = vmatpush.msra.mxu0 %v124
    %1801 = vmatpush.msra.mxu0 %v120
    %1802 = vmatpush.msra.mxu0 %v116
    %1803 = vmatpush.msra.mxu0 %v112
    %1804 = vmatmul.f32.gmra.mxu0 %v1480
    %v1805 = vpop.f32.mrf.mxu0
    %v1806 = vadd.f32 0.0, %v1805
    %1807 = vdwg.mxu0
    %v1809 = vsel %vm355, %v1725, 0
    %1811 = vmatpush.msra.mxu0 0.0
    %1812 = vmatpush.msra.mxu0 0.0
    %1813 = vmatpush.msra.mxu0 0.0
    %1814 = vmatpush.msra.mxu0 0.0
    %1815 = vmatpush.msra.mxu0 0.0
    %1816 = vmatpush.msra.mxu0 0.0
    %1817 = vmatpush.msra.mxu0 0.0
    %1818 = vmatpush.msra.mxu0 0.0
    %1819 = vmatpush.msra.mxu0 0.0
    %1820 = vmatpush.msra.mxu0 0.0
    %1821 = vmatpush.msra.mxu0 0.0
    %1822 = vmatpush.msra.mxu0 0.0
    %1823 = vmatpush.msra.mxu0 %v105
    %1824 = vmatpush.msra.mxu0 %v101
    %1825 = vmatpush.msra.mxu0 %v97
    %1826 = vmatpush.msra.mxu0 %v93
    %1827 = vmatmul.f32.gmra.mxu0 %v1809
    %v1828 = vpop.f32.mrf.mxu0
    %v1829 = vadd.f32 %v1746, %v1828
    %1830 = vdwg.mxu0
    %1831 = vmatpush.msra.mxu0 0.0
    %1832 = vmatpush.msra.mxu0 0.0
    %1833 = vmatpush.msra.mxu0 0.0
    %1834 = vmatpush.msra.mxu0 0.0
    %1835 = vmatpush.msra.mxu0 0.0
    %1836 = vmatpush.msra.mxu0 0.0
    %1837 = vmatpush.msra.mxu0 0.0
    %1838 = vmatpush.msra.mxu0 0.0
    %1839 = vmatpush.msra.mxu0 0.0
    %1840 = vmatpush.msra.mxu0 0.0
    %1841 = vmatpush.msra.mxu0 0.0
    %1842 = vmatpush.msra.mxu0 0.0
    %1843 = vmatpush.msra.mxu0 %v106
    %1844 = vmatpush.msra.mxu0 %v102
    %1845 = vmatpush.msra.mxu0 %v98
    %1846 = vmatpush.msra.mxu0 %v94
    %1847 = vmatmul.f32.gmra.mxu0 %v1809
    %v1848 = vpop.f32.mrf.mxu0
    %v1849 = vadd.f32 %v1766, %v1848
    %1850 = vdwg.mxu0
    %1851 = vmatpush.msra.mxu0 0.0
    %1852 = vmatpush.msra.mxu0 0.0
    %1853 = vmatpush.msra.mxu0 0.0
    %1854 = vmatpush.msra.mxu0 0.0
    %1855 = vmatpush.msra.mxu0 0.0
    %1856 = vmatpush.msra.mxu0 0.0
    %1857 = vmatpush.msra.mxu0 0.0
    %1858 = vmatpush.msra.mxu0 0.0
    %1859 = vmatpush.msra.mxu0 0.0
    %1860 = vmatpush.msra.mxu0 0.0
    %1861 = vmatpush.msra.mxu0 0.0
    %1862 = vmatpush.msra.mxu0 0.0
    %1863 = vmatpush.msra.mxu0 %v107
    %1864 = vmatpush.msra.mxu0 %v103
    %1865 = vmatpush.msra.mxu0 %v99
    %1866 = vmatpush.msra.mxu0 %v95
    %1867 = vmatmul.f32.gmra.mxu0 %v1809
    %v1868 = vpop.f32.mrf.mxu0
    %v1869 = vadd.f32 %v1786, %v1868
    %1870 = vdwg.mxu0
    %1871 = vmatpush.msra.mxu0 0.0
    %1872 = vmatpush.msra.mxu0 0.0
    %1873 = vmatpush.msra.mxu0 0.0
    %1874 = vmatpush.msra.mxu0 0.0
    %1875 = vmatpush.msra.mxu0 0.0
    %1876 = vmatpush.msra.mxu0 0.0
    %1877 = vmatpush.msra.mxu0 0.0
    %1878 = vmatpush.msra.mxu0 0.0
    %1879 = vmatpush.msra.mxu0 0.0
    %1880 = vmatpush.msra.mxu0 0.0
    %1881 = vmatpush.msra.mxu0 0.0
    %1882 = vmatpush.msra.mxu0 0.0
    %1883 = vmatpush.msra.mxu0 %v108
    %1884 = vmatpush.msra.mxu0 %v104
    %1885 = vmatpush.msra.mxu0 %v100
    %1886 = vmatpush.msra.mxu0 %v96
    %1887 = vmatmul.f32.gmra.mxu0 %v1809
    %v1888 = vpop.f32.mrf.mxu0
    %v1889 = vadd.f32 %v1806, %v1888
    %1890 = vdwg.mxu0
    %v1891 = vadd.f32 %v1829, %v255
    %v1892 = vadd.f32 %v1849, %v256
    %v1893 = vadd.f32 %v1869, %v257
    %v1894 = vadd.f32 %v1889, %v258
    %v1895 = vxor.u32 %v1891, 2147483648
    %v1896 = vmul.f32 %v1895, 1.442695
    %v1897 = vpow.pop %v1896
    %v1898 = vadd.f32 %v1897, 1.0
    %v1899 = vrcp.pop %v1898
    %v1900 = vmul.f32 %v1898, %v1899
    %v1901 = vsub.f32 1.0, %v1900
    %v1902 = vmul.f32 %v1899, %v1901
    %v1903 = vadd.f32 %v1899, %v1902
    %vm1904 = vweird.f32 %v1898
    %vm1905 = vweird.f32 %v1899
    %vm1906 = vmor %vm1904, %vm1905
    %v1907 = vsel %vm1906, %v1899, %v1903
    %v1908 = vand.u32 2147483647, %v1898
    %vm1909 = vcmp.eq.f32.partialorder %v1908, 8.507059e+37
    %v1910 = vand.u32 %v1898, 2147483648
    %v1911 = vor.u32 1.1754944e-38, %v1910
    %v1912 = vsel %vm1909, %v1911, %v1907
    %v1913 = vmul.f32 1.0, %v1912
    %v1914 = vxor.u32 %v1892, 2147483648
    %v1915 = vmul.f32 %v1914, 1.442695
    %v1916 = vpow.pop %v1915
    %v1917 = vadd.f32 %v1916, 1.0
    %v1918 = vrcp.pop %v1917
    %v1919 = vmul.f32 %v1917, %v1918
    %v1920 = vsub.f32 1.0, %v1919
    %v1921 = vmul.f32 %v1918, %v1920
    %v1922 = vadd.f32 %v1918, %v1921
    %vm1923 = vweird.f32 %v1917
    %vm1924 = vweird.f32 %v1918
    %vm1925 = vmor %vm1923, %vm1924
    %v1926 = vsel %vm1925, %v1918, %v1922
    %v1927 = vand.u32 2147483647, %v1917
    %vm1928 = vcmp.eq.f32.partialorder %v1927, 8.507059e+37
    %v1929 = vand.u32 %v1917, 2147483648
    %v1930 = vor.u32 1.1754944e-38, %v1929
    %v1931 = vsel %vm1928, %v1930, %v1926
    %v1932 = vmul.f32 1.0, %v1931
    %v1933 = vxor.u32 %v1893, 2147483648
    %v1934 = vmul.f32 %v1933, 1.442695
    %v1935 = vpow.pop %v1934
    %v1936 = vadd.f32 %v1935, 1.0
    %v1937 = vrcp.pop %v1936
    %v1938 = vmul.f32 %v1936, %v1937
    %v1939 = vsub.f32 1.0, %v1938
    %v1940 = vmul.f32 %v1937, %v1939
    %v1941 = vadd.f32 %v1937, %v1940
    %vm1942 = vweird.f32 %v1936
    %vm1943 = vweird.f32 %v1937
    %vm1944 = vmor %vm1942, %vm1943
    %v1945 = vsel %vm1944, %v1937, %v1941
    %v1946 = vand.u32 2147483647, %v1936
    %vm1947 = vcmp.eq.f32.partialorder %v1946, 8.507059e+37
    %v1948 = vand.u32 %v1936, 2147483648
    %v1949 = vor.u32 1.1754944e-38, %v1948
    %v1950 = vsel %vm1947, %v1949, %v1945
    %v1951 = vmul.f32 1.0, %v1950
    %v1952 = vtanh.pop %v1894
    %v1953 = vmul.f32 %v1481, %v1913
    %v1954 = vmul.f32 %v1932, %v1952
    %v1955 = vadd.f32 %v1953, %v1954
    %v1956 = vtanh.pop %v1955
    %v1957 = vmul.f32 %v1951, %v1956
    %vm1958 = vcmp.gt.f32.partialorder %v1727, 0.5
    %v1959 = vsel %vm1958, 1, 0
    %1960 = vset.pattern.permute.xlu0 0
    %1961 = vperm.xlu0 %1960, %v1959
    %v1962 = vpop.permute.xlu0 %1961
    %vm1963 = vcmp.eq.s32.totalorder %v1962, 1
    %v1964 = vsel %vm1963, %v1957, %v1480
    %v1965 = vsel %vm1963, %v1955, %v1481
    %s1966 = scalar_lea.vmem %s0, 32
    %v1967 = vld [vmem:[%s1966] sm:$0xff]
    %s1968 = scalar_lea.vmem %s1, 32
    %v1969 = vld [vmem:[%s1968] sm:$0xff]
    %1970 = vmatpush.msra.mxu0 %v249
    %1971 = vmatpush.msra.mxu0 %v245
    %1972 = vmatpush.msra.mxu0 %v241
    %1973 = vmatpush.msra.mxu0 %v237
    %1974 = vmatpush.msra.mxu0 %v233
    %1975 = vmatpush.msra.mxu0 %v229
    %1976 = vmatpush.msra.mxu0 %v225
    %1977 = vmatpush.msra.mxu0 %v221
    %1978 = vmatpush.msra.mxu0 %v217
    %1979 = vmatpush.msra.mxu0 %v213
    %1980 = vmatpush.msra.mxu0 %v209
    %1981 = vmatpush.msra.mxu0 %v205
    %1982 = vmatpush.msra.mxu0 %v201
    %1983 = vmatpush.msra.mxu0 %v197
    %1984 = vmatpush.msra.mxu0 %v193
    %1985 = vmatpush.msra.mxu0 %v189
    %1986 = vmatmul.f32.gmra.mxu0 %v1722
    %v1987 = vpop.f32.mrf.mxu0
    %v1988 = vadd.f32 0.0, %v1987
    %1989 = vdwg.mxu0
    %1990 = vmatpush.msra.mxu0 %v250
    %1991 = vmatpush.msra.mxu0 %v246
    %1992 = vmatpush.msra.mxu0 %v242
    %1993 = vmatpush.msra.mxu0 %v238
    %1994 = vmatpush.msra.mxu0 %v234
    %1995 = vmatpush.msra.mxu0 %v230
    %1996 = vmatpush.msra.mxu0 %v226
    %1997 = vmatpush.msra.mxu0 %v222
    %1998 = vmatpush.msra.mxu0 %v218
    %1999 = vmatpush.msra.mxu0 %v214
    %2000 = vmatpush.msra.mxu0 %v210
    %2001 = vmatpush.msra.mxu0 %v206
    %2002 = vmatpush.msra.mxu0 %v202
    %2003 = vmatpush.msra.mxu0 %v198
    %2004 = vmatpush.msra.mxu0 %v194
    %2005 = vmatpush.msra.mxu0 %v190
    %2006 = vmatmul.f32.gmra.mxu0 %v1722
    %v2007 = vpop.f32.mrf.mxu0
    %v2008 = vadd.f32 0.0, %v2007
    %2009 = vdwg.mxu0
    %2010 = vmatpush.msra.mxu0 %v251
    %2011 = vmatpush.msra.mxu0 %v247
    %2012 = vmatpush.msra.mxu0 %v243
    %2013 = vmatpush.msra.mxu0 %v239
    %2014 = vmatpush.msra.mxu0 %v235
    %2015 = vmatpush.msra.mxu0 %v231
    %2016 = vmatpush.msra.mxu0 %v227
    %2017 = vmatpush.msra.mxu0 %v223
    %2018 = vmatpush.msra.mxu0 %v219
    %2019 = vmatpush.msra.mxu0 %v215
    %2020 = vmatpush.msra.mxu0 %v211
    %2021 = vmatpush.msra.mxu0 %v207
    %2022 = vmatpush.msra.mxu0 %v203
    %2023 = vmatpush.msra.mxu0 %v199
    %2024 = vmatpush.msra.mxu0 %v195
    %2025 = vmatpush.msra.mxu0 %v191
    %2026 = vmatmul.f32.gmra.mxu0 %v1722
    %v2027 = vpop.f32.mrf.mxu0
    %v2028 = vadd.f32 0.0, %v2027
    %2029 = vdwg.mxu0
    %2030 = vmatpush.msra.mxu0 %v252
    %2031 = vmatpush.msra.mxu0 %v248
    %2032 = vmatpush.msra.mxu0 %v244
    %2033 = vmatpush.msra.mxu0 %v240
    %2034 = vmatpush.msra.mxu0 %v236
    %2035 = vmatpush.msra.mxu0 %v232
    %2036 = vmatpush.msra.mxu0 %v228
    %2037 = vmatpush.msra.mxu0 %v224
    %2038 = vmatpush.msra.mxu0 %v220
    %2039 = vmatpush.msra.mxu0 %v216
    %2040 = vmatpush.msra.mxu0 %v212
    %2041 = vmatpush.msra.mxu0 %v208
    %2042 = vmatpush.msra.mxu0 %v204
    %2043 = vmatpush.msra.mxu0 %v200
    %2044 = vmatpush.msra.mxu0 %v196
    %2045 = vmatpush.msra.mxu0 %v192
    %2046 = vmatmul.f32.gmra.mxu0 %v1722
    %v2047 = vpop.f32.mrf.mxu0
    %v2048 = vadd.f32 0.0, %v2047
    %2049 = vdwg.mxu0
    %v2051 = vsel %vm355, %v1967, 0
    %2053 = vmatpush.msra.mxu0 0.0
    %2054 = vmatpush.msra.mxu0 0.0
    %2055 = vmatpush.msra.mxu0 0.0
    %2056 = vmatpush.msra.mxu0 0.0
    %2057 = vmatpush.msra.mxu0 0.0
    %2058 = vmatpush.msra.mxu0 0.0
    %2059 = vmatpush.msra.mxu0 0.0
    %2060 = vmatpush.msra.mxu0 0.0
    %2061 = vmatpush.msra.mxu0 0.0
    %2062 = vmatpush.msra.mxu0 0.0
    %2063 = vmatpush.msra.mxu0 0.0
    %2064 = vmatpush.msra.mxu0 0.0
    %2065 = vmatpush.msra.mxu0 %v185
    %2066 = vmatpush.msra.mxu0 %v181
    %2067 = vmatpush.msra.mxu0 %v177
    %2068 = vmatpush.msra.mxu0 %v173
    %2069 = vmatmul.f32.gmra.mxu0 %v2051
    %v2070 = vpop.f32.mrf.mxu0
    %v2071 = vadd.f32 %v1988, %v2070
    %2072 = vdwg.mxu0
    %2073 = vmatpush.msra.mxu0 0.0
    %2074 = vmatpush.msra.mxu0 0.0
    %2075 = vmatpush.msra.mxu0 0.0
    %2076 = vmatpush.msra.mxu0 0.0
    %2077 = vmatpush.msra.mxu0 0.0
    %2078 = vmatpush.msra.mxu0 0.0
    %2079 = vmatpush.msra.mxu0 0.0
    %2080 = vmatpush.msra.mxu0 0.0
    %2081 = vmatpush.msra.mxu0 0.0
    %2082 = vmatpush.msra.mxu0 0.0
    %2083 = vmatpush.msra.mxu0 0.0
    %2084 = vmatpush.msra.mxu0 0.0
    %2085 = vmatpush.msra.mxu0 %v186
    %2086 = vmatpush.msra.mxu0 %v182
    %2087 = vmatpush.msra.mxu0 %v178
    %2088 = vmatpush.msra.mxu0 %v174
    %2089 = vmatmul.f32.gmra.mxu0 %v2051
    %v2090 = vpop.f32.mrf.mxu0
    %v2091 = vadd.f32 %v2008, %v2090
    %2092 = vdwg.mxu0
    %2093 = vmatpush.msra.mxu0 0.0
    %2094 = vmatpush.msra.mxu0 0.0
    %2095 = vmatpush.msra.mxu0 0.0
    %2096 = vmatpush.msra.mxu0 0.0
    %2097 = vmatpush.msra.mxu0 0.0
    %2098 = vmatpush.msra.mxu0 0.0
    %2099 = vmatpush.msra.mxu0 0.0
    %2100 = vmatpush.msra.mxu0 0.0
    %2101 = vmatpush.msra.mxu0 0.0
    %2102 = vmatpush.msra.mxu0 0.0
    %2103 = vmatpush.msra.mxu0 0.0
    %2104 = vmatpush.msra.mxu0 0.0
    %2105 = vmatpush.msra.mxu0 %v187
    %2106 = vmatpush.msra.mxu0 %v183
    %2107 = vmatpush.msra.mxu0 %v179
    %2108 = vmatpush.msra.mxu0 %v175
    %2109 = vmatmul.f32.gmra.mxu0 %v2051
    %v2110 = vpop.f32.mrf.mxu0
    %v2111 = vadd.f32 %v2028, %v2110
    %2112 = vdwg.mxu0
    %2113 = vmatpush.msra.mxu0 0.0
    %2114 = vmatpush.msra.mxu0 0.0
    %2115 = vmatpush.msra.mxu0 0.0
    %2116 = vmatpush.msra.mxu0 0.0
    %2117 = vmatpush.msra.mxu0 0.0
    %2118 = vmatpush.msra.mxu0 0.0
    %2119 = vmatpush.msra.mxu0 0.0
    %2120 = vmatpush.msra.mxu0 0.0
    %2121 = vmatpush.msra.mxu0 0.0
    %2122 = vmatpush.msra.mxu0 0.0
    %2123 = vmatpush.msra.mxu0 0.0
    %2124 = vmatpush.msra.mxu0 0.0
    %2125 = vmatpush.msra.mxu0 %v188
    %2126 = vmatpush.msra.mxu0 %v184
    %2127 = vmatpush.msra.mxu0 %v180
    %2128 = vmatpush.msra.mxu0 %v176
    %2129 = vmatmul.f32.gmra.mxu0 %v2051
    %v2130 = vpop.f32.mrf.mxu0
    %v2131 = vadd.f32 %v2048, %v2130
    %2132 = vdwg.mxu0
    %v2133 = vadd.f32 %v2071, %v265
    %v2134 = vadd.f32 %v2091, %v266
    %v2135 = vadd.f32 %v2111, %v267
    %v2136 = vadd.f32 %v2131, %v268
    %v2137 = vxor.u32 %v2133, 2147483648
    %v2138 = vmul.f32 %v2137, 1.442695
    %v2139 = vpow.pop %v2138
    %v2140 = vadd.f32 %v2139, 1.0
    %v2141 = vrcp.pop %v2140
    %v2142 = vmul.f32 %v2140, %v2141
    %v2143 = vsub.f32 1.0, %v2142
    %v2144 = vmul.f32 %v2141, %v2143
    %v2145 = vadd.f32 %v2141, %v2144
    %vm2146 = vweird.f32 %v2140
    %vm2147 = vweird.f32 %v2141
    %vm2148 = vmor %vm2146, %vm2147
    %v2149 = vsel %vm2148, %v2141, %v2145
    %v2150 = vand.u32 2147483647, %v2140
    %vm2151 = vcmp.eq.f32.partialorder %v2150, 8.507059e+37
    %v2152 = vand.u32 %v2140, 2147483648
    %v2153 = vor.u32 1.1754944e-38, %v2152
    %v2154 = vsel %vm2151, %v2153, %v2149
    %v2155 = vmul.f32 1.0, %v2154
    %v2156 = vxor.u32 %v2134, 2147483648
    %v2157 = vmul.f32 %v2156, 1.442695
    %v2158 = vpow.pop %v2157
    %v2159 = vadd.f32 %v2158, 1.0
    %v2160 = vrcp.pop %v2159
    %v2161 = vmul.f32 %v2159, %v2160
    %v2162 = vsub.f32 1.0, %v2161
    %v2163 = vmul.f32 %v2160, %v2162
    %v2164 = vadd.f32 %v2160, %v2163
    %vm2165 = vweird.f32 %v2159
    %vm2166 = vweird.f32 %v2160
    %vm2167 = vmor %vm2165, %vm2166
    %v2168 = vsel %vm2167, %v2160, %v2164
    %v2169 = vand.u32 2147483647, %v2159
    %vm2170 = vcmp.eq.f32.partialorder %v2169, 8.507059e+37
    %v2171 = vand.u32 %v2159, 2147483648
    %v2172 = vor.u32 1.1754944e-38, %v2171
    %v2173 = vsel %vm2170, %v2172, %v2168
    %v2174 = vmul.f32 1.0, %v2173
    %v2175 = vxor.u32 %v2135, 2147483648
    %v2176 = vmul.f32 %v2175, 1.442695
    %v2177 = vpow.pop %v2176
    %v2178 = vadd.f32 %v2177, 1.0
    %v2179 = vrcp.pop %v2178
    %v2180 = vmul.f32 %v2178, %v2179
    %v2181 = vsub.f32 1.0, %v2180
    %v2182 = vmul.f32 %v2179, %v2181
    %v2183 = vadd.f32 %v2179, %v2182
    %vm2184 = vweird.f32 %v2178
    %vm2185 = vweird.f32 %v2179
    %vm2186 = vmor %vm2184, %vm2185
    %v2187 = vsel %vm2186, %v2179, %v2183
    %v2188 = vand.u32 2147483647, %v2178
    %vm2189 = vcmp.eq.f32.partialorder %v2188, 8.507059e+37
    %v2190 = vand.u32 %v2178, 2147483648
    %v2191 = vor.u32 1.1754944e-38, %v2190
    %v2192 = vsel %vm2189, %v2191, %v2187
    %v2193 = vmul.f32 1.0, %v2192
    %v2194 = vtanh.pop %v2136
    %v2195 = vmul.f32 %v1723, %v2155
    %v2196 = vmul.f32 %v2174, %v2194
    %v2197 = vadd.f32 %v2195, %v2196
    %v2198 = vtanh.pop %v2197
    %v2199 = vmul.f32 %v2193, %v2198
    %vm2200 = vcmp.gt.f32.partialorder %v1969, 0.5
    %v2201 = vsel %vm2200, 1, 0
    %2202 = vset.pattern.permute.xlu0 0
    %2203 = vperm.xlu0 %2202, %v2201
    %v2204 = vpop.permute.xlu0 %2203
    %vm2205 = vcmp.eq.s32.totalorder %v2204, 1
    %v2206 = vsel %vm2205, %v2199, %v1722
    %v2207 = vsel %vm2205, %v2197, %v1723
    %2208 = vmatpush.msra.mxu0 %v169
    %2209 = vmatpush.msra.mxu0 %v165
    %2210 = vmatpush.msra.mxu0 %v161
    %2211 = vmatpush.msra.mxu0 %v157
    %2212 = vmatpush.msra.mxu0 %v153
    %2213 = vmatpush.msra.mxu0 %v149
    %2214 = vmatpush.msra.mxu0 %v145
    %2215 = vmatpush.msra.mxu0 %v141
    %2216 = vmatpush.msra.mxu0 %v137
    %2217 = vmatpush.msra.mxu0 %v133
    %2218 = vmatpush.msra.mxu0 %v129
    %2219 = vmatpush.msra.mxu0 %v125
    %2220 = vmatpush.msra.mxu0 %v121
    %2221 = vmatpush.msra.mxu0 %v117
    %2222 = vmatpush.msra.mxu0 %v113
    %2223 = vmatpush.msra.mxu0 %v109
    %2224 = vmatmul.f32.gmra.mxu0 %v1964
    %v2225 = vpop.f32.mrf.mxu0
    %v2226 = vadd.f32 0.0, %v2225
    %2227 = vdwg.mxu0
    %2228 = vmatpush.msra.mxu0 %v170
    %2229 = vmatpush.msra.mxu0 %v166
    %2230 = vmatpush.msra.mxu0 %v162
    %2231 = vmatpush.msra.mxu0 %v158
    %2232 = vmatpush.msra.mxu0 %v154
    %2233 = vmatpush.msra.mxu0 %v150
    %2234 = vmatpush.msra.mxu0 %v146
    %2235 = vmatpush.msra.mxu0 %v142
    %2236 = vmatpush.msra.mxu0 %v138
    %2237 = vmatpush.msra.mxu0 %v134
    %2238 = vmatpush.msra.mxu0 %v130
    %2239 = vmatpush.msra.mxu0 %v126
    %2240 = vmatpush.msra.mxu0 %v122
    %2241 = vmatpush.msra.mxu0 %v118
    %2242 = vmatpush.msra.mxu0 %v114
    %2243 = vmatpush.msra.mxu0 %v110
    %2244 = vmatmul.f32.gmra.mxu0 %v1964
    %v2245 = vpop.f32.mrf.mxu0
    %v2246 = vadd.f32 0.0, %v2245
    %2247 = vdwg.mxu0
    %2248 = vmatpush.msra.mxu0 %v171
    %2249 = vmatpush.msra.mxu0 %v167
    %2250 = vmatpush.msra.mxu0 %v163
    %2251 = vmatpush.msra.mxu0 %v159
    %2252 = vmatpush.msra.mxu0 %v155
    %2253 = vmatpush.msra.mxu0 %v151
    %2254 = vmatpush.msra.mxu0 %v147
    %2255 = vmatpush.msra.mxu0 %v143
    %2256 = vmatpush.msra.mxu0 %v139
    %2257 = vmatpush.msra.mxu0 %v135
    %2258 = vmatpush.msra.mxu0 %v131
    %2259 = vmatpush.msra.mxu0 %v127
    %2260 = vmatpush.msra.mxu0 %v123
    %2261 = vmatpush.msra.mxu0 %v119
    %2262 = vmatpush.msra.mxu0 %v115
    %2263 = vmatpush.msra.mxu0 %v111
    %2264 = vmatmul.f32.gmra.mxu0 %v1964
    %v2265 = vpop.f32.mrf.mxu0
    %v2266 = vadd.f32 0.0, %v2265
    %2267 = vdwg.mxu0
    %2268 = vmatpush.msra.mxu0 %v172
    %2269 = vmatpush.msra.mxu0 %v168
    %2270 = vmatpush.msra.mxu0 %v164
    %2271 = vmatpush.msra.mxu0 %v160
    %2272 = vmatpush.msra.mxu0 %v156
    %2273 = vmatpush.msra.mxu0 %v152
    %2274 = vmatpush.msra.mxu0 %v148
    %2275 = vmatpush.msra.mxu0 %v144
    %2276 = vmatpush.msra.mxu0 %v140
    %2277 = vmatpush.msra.mxu0 %v136
    %2278 = vmatpush.msra.mxu0 %v132
    %2279 = vmatpush.msra.mxu0 %v128
    %2280 = vmatpush.msra.mxu0 %v124
    %2281 = vmatpush.msra.mxu0 %v120
    %2282 = vmatpush.msra.mxu0 %v116
    %2283 = vmatpush.msra.mxu0 %v112
    %2284 = vmatmul.f32.gmra.mxu0 %v1964
    %v2285 = vpop.f32.mrf.mxu0
    %v2286 = vadd.f32 0.0, %v2285
    %2287 = vdwg.mxu0
    %2288 = vmatpush.msra.mxu0 0.0
    %2289 = vmatpush.msra.mxu0 0.0
    %2290 = vmatpush.msra.mxu0 0.0
    %2291 = vmatpush.msra.mxu0 0.0
    %2292 = vmatpush.msra.mxu0 0.0
    %2293 = vmatpush.msra.mxu0 0.0
    %2294 = vmatpush.msra.mxu0 0.0
    %2295 = vmatpush.msra.mxu0 0.0
    %2296 = vmatpush.msra.mxu0 0.0
    %2297 = vmatpush.msra.mxu0 0.0
    %2298 = vmatpush.msra.mxu0 0.0
    %2299 = vmatpush.msra.mxu0 0.0
    %2300 = vmatpush.msra.mxu0 %v105
    %2301 = vmatpush.msra.mxu0 %v101
    %2302 = vmatpush.msra.mxu0 %v97
    %2303 = vmatpush.msra.mxu0 %v93
    %2304 = vmatmul.f32.gmra.mxu0 %v2051
    %v2305 = vpop.f32.mrf.mxu0
    %v2306 = vadd.f32 %v2226, %v2305
    %2307 = vdwg.mxu0
    %2308 = vmatpush.msra.mxu0 0.0
    %2309 = vmatpush.msra.mxu0 0.0
    %2310 = vmatpush.msra.mxu0 0.0
    %2311 = vmatpush.msra.mxu0 0.0
    %2312 = vmatpush.msra.mxu0 0.0
    %2313 = vmatpush.msra.mxu0 0.0
    %2314 = vmatpush.msra.mxu0 0.0
    %2315 = vmatpush.msra.mxu0 0.0
    %2316 = vmatpush.msra.mxu0 0.0
    %2317 = vmatpush.msra.mxu0 0.0
    %2318 = vmatpush.msra.mxu0 0.0
    %2319 = vmatpush.msra.mxu0 0.0
    %2320 = vmatpush.msra.mxu0 %v106
    %2321 = vmatpush.msra.mxu0 %v102
    %2322 = vmatpush.msra.mxu0 %v98
    %2323 = vmatpush.msra.mxu0 %v94
    %2324 = vmatmul.f32.gmra.mxu0 %v2051
    %v2325 = vpop.f32.mrf.mxu0
    %v2326 = vadd.f32 %v2246, %v2325
    %2327 = vdwg.mxu0
    %2328 = vmatpush.msra.mxu0 0.0
    %2329 = vmatpush.msra.mxu0 0.0
    %2330 = vmatpush.msra.mxu0 0.0
    %2331 = vmatpush.msra.mxu0 0.0
    %2332 = vmatpush.msra.mxu0 0.0
    %2333 = vmatpush.msra.mxu0 0.0
    %2334 = vmatpush.msra.mxu0 0.0
    %2335 = vmatpush.msra.mxu0 0.0
    %2336 = vmatpush.msra.mxu0 0.0
    %2337 = vmatpush.msra.mxu0 0.0
    %2338 = vmatpush.msra.mxu0 0.0
    %2339 = vmatpush.msra.mxu0 0.0
    %2340 = vmatpush.msra.mxu0 %v107
    %2341 = vmatpush.msra.mxu0 %v103
    %2342 = vmatpush.msra.mxu0 %v99
    %2343 = vmatpush.msra.mxu0 %v95
    %2344 = vmatmul.f32.gmra.mxu0 %v2051
    %v2345 = vpop.f32.mrf.mxu0
    %v2346 = vadd.f32 %v2266, %v2345
    %2347 = vdwg.mxu0
    %2348 = vmatpush.msra.mxu0 0.0
    %2349 = vmatpush.msra.mxu0 0.0
    %2350 = vmatpush.msra.mxu0 0.0
    %2351 = vmatpush.msra.mxu0 0.0
    %2352 = vmatpush.msra.mxu0 0.0
    %2353 = vmatpush.msra.mxu0 0.0
    %2354 = vmatpush.msra.mxu0 0.0
    %2355 = vmatpush.msra.mxu0 0.0
    %2356 = vmatpush.msra.mxu0 0.0
    %2357 = vmatpush.msra.mxu0 0.0
    %2358 = vmatpush.msra.mxu0 0.0
    %2359 = vmatpush.msra.mxu0 0.0
    %2360 = vmatpush.msra.mxu0 %v108
    %2361 = vmatpush.msra.mxu0 %v104
    %2362 = vmatpush.msra.mxu0 %v100
    %2363 = vmatpush.msra.mxu0 %v96
    %2364 = vmatmul.f32.gmra.mxu0 %v2051
    %v2365 = vpop.f32.mrf.mxu0
    %v2366 = vadd.f32 %v2286, %v2365
    %2367 = vdwg.mxu0
    %v2368 = vadd.f32 %v2306, %v255
    %v2369 = vadd.f32 %v2326, %v256
    %v2370 = vadd.f32 %v2346, %v257
    %v2371 = vadd.f32 %v2366, %v258
    %v2372 = vxor.u32 %v2368, 2147483648
    %v2373 = vmul.f32 %v2372, 1.442695
    %v2374 = vpow.pop %v2373
    %v2375 = vadd.f32 %v2374, 1.0
    %v2376 = vrcp.pop %v2375
    %v2377 = vmul.f32 %v2375, %v2376
    %v2378 = vsub.f32 1.0, %v2377
    %v2379 = vmul.f32 %v2376, %v2378
    %v2380 = vadd.f32 %v2376, %v2379
    %vm2381 = vweird.f32 %v2375
    %vm2382 = vweird.f32 %v2376
    %vm2383 = vmor %vm2381, %vm2382
    %v2384 = vsel %vm2383, %v2376, %v2380
    %v2385 = vand.u32 2147483647, %v2375
    %vm2386 = vcmp.eq.f32.partialorder %v2385, 8.507059e+37
    %v2387 = vand.u32 %v2375, 2147483648
    %v2388 = vor.u32 1.1754944e-38, %v2387
    %v2389 = vsel %vm2386, %v2388, %v2384
    %v2390 = vmul.f32 1.0, %v2389
    %v2391 = vxor.u32 %v2369, 2147483648
    %v2392 = vmul.f32 %v2391, 1.442695
    %v2393 = vpow.pop %v2392
    %v2394 = vadd.f32 %v2393, 1.0
    %v2395 = vrcp.pop %v2394
    %v2396 = vmul.f32 %v2394, %v2395
    %v2397 = vsub.f32 1.0, %v2396
    %v2398 = vmul.f32 %v2395, %v2397
    %v2399 = vadd.f32 %v2395, %v2398
    %vm2400 = vweird.f32 %v2394
    %vm2401 = vweird.f32 %v2395
    %vm2402 = vmor %vm2400, %vm2401
    %v2403 = vsel %vm2402, %v2395, %v2399
    %v2404 = vand.u32 2147483647, %v2394
    %vm2405 = vcmp.eq.f32.partialorder %v2404, 8.507059e+37
    %v2406 = vand.u32 %v2394, 2147483648
    %v2407 = vor.u32 1.1754944e-38, %v2406
    %v2408 = vsel %vm2405, %v2407, %v2403
    %v2409 = vmul.f32 1.0, %v2408
    %v2410 = vxor.u32 %v2370, 2147483648
    %v2411 = vmul.f32 %v2410, 1.442695
    %v2412 = vpow.pop %v2411
    %v2413 = vadd.f32 %v2412, 1.0
    %v2414 = vrcp.pop %v2413
    %v2415 = vmul.f32 %v2413, %v2414
    %v2416 = vsub.f32 1.0, %v2415
    %v2417 = vmul.f32 %v2414, %v2416
    %v2418 = vadd.f32 %v2414, %v2417
    %vm2419 = vweird.f32 %v2413
    %vm2420 = vweird.f32 %v2414
    %vm2421 = vmor %vm2419, %vm2420
    %v2422 = vsel %vm2421, %v2414, %v2418
    %v2423 = vand.u32 2147483647, %v2413
    %vm2424 = vcmp.eq.f32.partialorder %v2423, 8.507059e+37
    %v2425 = vand.u32 %v2413, 2147483648
    %v2426 = vor.u32 1.1754944e-38, %v2425
    %v2427 = vsel %vm2424, %v2426, %v2422
    %v2428 = vmul.f32 1.0, %v2427
    %v2429 = vtanh.pop %v2371
    %v2430 = vmul.f32 %v1965, %v2390
    %v2431 = vmul.f32 %v2409, %v2429
    %v2432 = vadd.f32 %v2430, %v2431
    %v2433 = vtanh.pop %v2432
    %v2434 = vmul.f32 %v2428, %v2433
    %v2435 = vsel %vm2205, %v2434, %v1964
    %v2436 = vsel %vm2205, %v2432, %v1965
    %2437 = vmatpush.msra.mxu0 %v249
    %2438 = vmatpush.msra.mxu0 %v245
    %2439 = vmatpush.msra.mxu0 %v241
    %2440 = vmatpush.msra.mxu0 %v237
    %2441 = vmatpush.msra.mxu0 %v233
    %2442 = vmatpush.msra.mxu0 %v229
    %2443 = vmatpush.msra.mxu0 %v225
    %2444 = vmatpush.msra.mxu0 %v221
    %2445 = vmatpush.msra.mxu0 %v217
    %2446 = vmatpush.msra.mxu0 %v213
    %2447 = vmatpush.msra.mxu0 %v209
    %2448 = vmatpush.msra.mxu0 %v205
    %2449 = vmatpush.msra.mxu0 %v201
    %2450 = vmatpush.msra.mxu0 %v197
    %2451 = vmatpush.msra.mxu0 %v193
    %2452 = vmatpush.msra.mxu0 %v189
    %2453 = vmatmul.f32.gmra.mxu0 %v2206
    %v2454 = vpop.f32.mrf.mxu0
    %v2455 = vadd.f32 0.0, %v2454
    %2456 = vdwg.mxu0
    %2457 = vmatpush.msra.mxu0 %v250
    %2458 = vmatpush.msra.mxu0 %v246
    %2459 = vmatpush.msra.mxu0 %v242
    %2460 = vmatpush.msra.mxu0 %v238
    %2461 = vmatpush.msra.mxu0 %v234
    %2462 = vmatpush.msra.mxu0 %v230
    %2463 = vmatpush.msra.mxu0 %v226
    %2464 = vmatpush.msra.mxu0 %v222
    %2465 = vmatpush.msra.mxu0 %v218
    %2466 = vmatpush.msra.mxu0 %v214
    %2467 = vmatpush.msra.mxu0 %v210
    %2468 = vmatpush.msra.mxu0 %v206
    %2469 = vmatpush.msra.mxu0 %v202
    %2470 = vmatpush.msra.mxu0 %v198
    %2471 = vmatpush.msra.mxu0 %v194
    %2472 = vmatpush.msra.mxu0 %v190
    %2473 = vmatmul.f32.gmra.mxu0 %v2206
    %v2474 = vpop.f32.mrf.mxu0
    %v2475 = vadd.f32 0.0, %v2474
    %2476 = vdwg.mxu0
    %2477 = vmatpush.msra.mxu0 %v251
    %2478 = vmatpush.msra.mxu0 %v247
    %2479 = vmatpush.msra.mxu0 %v243
    %2480 = vmatpush.msra.mxu0 %v239
    %2481 = vmatpush.msra.mxu0 %v235
    %2482 = vmatpush.msra.mxu0 %v231
    %2483 = vmatpush.msra.mxu0 %v227
    %2484 = vmatpush.msra.mxu0 %v223
    %2485 = vmatpush.msra.mxu0 %v219
    %2486 = vmatpush.msra.mxu0 %v215
    %2487 = vmatpush.msra.mxu0 %v211
    %2488 = vmatpush.msra.mxu0 %v207
    %2489 = vmatpush.msra.mxu0 %v203
    %2490 = vmatpush.msra.mxu0 %v199
    %2491 = vmatpush.msra.mxu0 %v195
    %2492 = vmatpush.msra.mxu0 %v191
    %2493 = vmatmul.f32.gmra.mxu0 %v2206
    %v2494 = vpop.f32.mrf.mxu0
    %v2495 = vadd.f32 0.0, %v2494
    %2496 = vdwg.mxu0
    %2497 = vmatpush.msra.mxu0 %v252
    %2498 = vmatpush.msra.mxu0 %v248
    %2499 = vmatpush.msra.mxu0 %v244
    %2500 = vmatpush.msra.mxu0 %v240
    %2501 = vmatpush.msra.mxu0 %v236
    %2502 = vmatpush.msra.mxu0 %v232
    %2503 = vmatpush.msra.mxu0 %v228
    %2504 = vmatpush.msra.mxu0 %v224
    %2505 = vmatpush.msra.mxu0 %v220
    %2506 = vmatpush.msra.mxu0 %v216
    %2507 = vmatpush.msra.mxu0 %v212
    %2508 = vmatpush.msra.mxu0 %v208
    %2509 = vmatpush.msra.mxu0 %v204
    %2510 = vmatpush.msra.mxu0 %v200
    %2511 = vmatpush.msra.mxu0 %v196
    %2512 = vmatpush.msra.mxu0 %v192
    %2513 = vmatmul.f32.gmra.mxu0 %v2206
    %v2514 = vpop.f32.mrf.mxu0
    %v2515 = vadd.f32 0.0, %v2514
    %2516 = vdwg.mxu0
    %2517 = vmatpush.msra.mxu0 0.0
    %2518 = vmatpush.msra.mxu0 0.0
    %2519 = vmatpush.msra.mxu0 0.0
    %2520 = vmatpush.msra.mxu0 0.0
    %2521 = vmatpush.msra.mxu0 0.0
    %2522 = vmatpush.msra.mxu0 0.0
    %2523 = vmatpush.msra.mxu0 0.0
    %2524 = vmatpush.msra.mxu0 0.0
    %2525 = vmatpush.msra.mxu0 0.0
    %2526 = vmatpush.msra.mxu0 0.0
    %2527 = vmatpush.msra.mxu0 0.0
    %2528 = vmatpush.msra.mxu0 0.0
    %2529 = vmatpush.msra.mxu0 %v185
    %2530 = vmatpush.msra.mxu0 %v181
    %2531 = vmatpush.msra.mxu0 %v177
    %2532 = vmatpush.msra.mxu0 %v173
    %2533 = vmatmul.f32.gmra.mxu0 %v1809
    %v2534 = vpop.f32.mrf.mxu0
    %v2535 = vadd.f32 %v2455, %v2534
    %2536 = vdwg.mxu0
    %2537 = vmatpush.msra.mxu0 0.0
    %2538 = vmatpush.msra.mxu0 0.0
    %2539 = vmatpush.msra.mxu0 0.0
    %2540 = vmatpush.msra.mxu0 0.0
    %2541 = vmatpush.msra.mxu0 0.0
    %2542 = vmatpush.msra.mxu0 0.0
    %2543 = vmatpush.msra.mxu0 0.0
    %2544 = vmatpush.msra.mxu0 0.0
    %2545 = vmatpush.msra.mxu0 0.0
    %2546 = vmatpush.msra.mxu0 0.0
    %2547 = vmatpush.msra.mxu0 0.0
    %2548 = vmatpush.msra.mxu0 0.0
    %2549 = vmatpush.msra.mxu0 %v186
    %2550 = vmatpush.msra.mxu0 %v182
    %2551 = vmatpush.msra.mxu0 %v178
    %2552 = vmatpush.msra.mxu0 %v174
    %2553 = vmatmul.f32.gmra.mxu0 %v1809
    %v2554 = vpop.f32.mrf.mxu0
    %v2555 = vadd.f32 %v2475, %v2554
    %2556 = vdwg.mxu0
    %2557 = vmatpush.msra.mxu0 0.0
    %2558 = vmatpush.msra.mxu0 0.0
    %2559 = vmatpush.msra.mxu0 0.0
    %2560 = vmatpush.msra.mxu0 0.0
    %2561 = vmatpush.msra.mxu0 0.0
    %2562 = vmatpush.msra.mxu0 0.0
    %2563 = vmatpush.msra.mxu0 0.0
    %2564 = vmatpush.msra.mxu0 0.0
    %2565 = vmatpush.msra.mxu0 0.0
    %2566 = vmatpush.msra.mxu0 0.0
    %2567 = vmatpush.msra.mxu0 0.0
    %2568 = vmatpush.msra.mxu0 0.0
    %2569 = vmatpush.msra.mxu0 %v187
    %2570 = vmatpush.msra.mxu0 %v183
    %2571 = vmatpush.msra.mxu0 %v179
    %2572 = vmatpush.msra.mxu0 %v175
    %2573 = vmatmul.f32.gmra.mxu0 %v1809
    %v2574 = vpop.f32.mrf.mxu0
    %v2575 = vadd.f32 %v2495, %v2574
    %2576 = vdwg.mxu0
    %2577 = vmatpush.msra.mxu0 0.0
    %2578 = vmatpush.msra.mxu0 0.0
    %2579 = vmatpush.msra.mxu0 0.0
    %2580 = vmatpush.msra.mxu0 0.0
    %2581 = vmatpush.msra.mxu0 0.0
    %2582 = vmatpush.msra.mxu0 0.0
    %2583 = vmatpush.msra.mxu0 0.0
    %2584 = vmatpush.msra.mxu0 0.0
    %2585 = vmatpush.msra.mxu0 0.0
    %2586 = vmatpush.msra.mxu0 0.0
    %2587 = vmatpush.msra.mxu0 0.0
    %2588 = vmatpush.msra.mxu0 0.0
    %2589 = vmatpush.msra.mxu0 %v188
    %2590 = vmatpush.msra.mxu0 %v184
    %2591 = vmatpush.msra.mxu0 %v180
    %2592 = vmatpush.msra.mxu0 %v176
    %2593 = vmatmul.f32.gmra.mxu0 %v1809
    %v2594 = vpop.f32.mrf.mxu0
    %v2595 = vadd.f32 %v2515, %v2594
    %2596 = vdwg.mxu0
    %v2597 = vadd.f32 %v2535, %v265
    %v2598 = vadd.f32 %v2555, %v266
    %v2599 = vadd.f32 %v2575, %v267
    %v2600 = vadd.f32 %v2595, %v268
    %v2601 = vxor.u32 %v2597, 2147483648
    %v2602 = vmul.f32 %v2601, 1.442695
    %v2603 = vpow.pop %v2602
    %v2604 = vadd.f32 %v2603, 1.0
    %v2605 = vrcp.pop %v2604
    %v2606 = vmul.f32 %v2604, %v2605
    %v2607 = vsub.f32 1.0, %v2606
    %v2608 = vmul.f32 %v2605, %v2607
    %v2609 = vadd.f32 %v2605, %v2608
    %vm2610 = vweird.f32 %v2604
    %vm2611 = vweird.f32 %v2605
    %vm2612 = vmor %vm2610, %vm2611
    %v2613 = vsel %vm2612, %v2605, %v2609
    %v2614 = vand.u32 2147483647, %v2604
    %vm2615 = vcmp.eq.f32.partialorder %v2614, 8.507059e+37
    %v2616 = vand.u32 %v2604, 2147483648
    %v2617 = vor.u32 1.1754944e-38, %v2616
    %v2618 = vsel %vm2615, %v2617, %v2613
    %v2619 = vmul.f32 1.0, %v2618
    %v2620 = vxor.u32 %v2598, 2147483648
    %v2621 = vmul.f32 %v2620, 1.442695
    %v2622 = vpow.pop %v2621
    %v2623 = vadd.f32 %v2622, 1.0
    %v2624 = vrcp.pop %v2623
    %v2625 = vmul.f32 %v2623, %v2624
    %v2626 = vsub.f32 1.0, %v2625
    %v2627 = vmul.f32 %v2624, %v2626
    %v2628 = vadd.f32 %v2624, %v2627
    %vm2629 = vweird.f32 %v2623
    %vm2630 = vweird.f32 %v2624
    %vm2631 = vmor %vm2629, %vm2630
    %v2632 = vsel %vm2631, %v2624, %v2628
    %v2633 = vand.u32 2147483647, %v2623
    %vm2634 = vcmp.eq.f32.partialorder %v2633, 8.507059e+37
    %v2635 = vand.u32 %v2623, 2147483648
    %v2636 = vor.u32 1.1754944e-38, %v2635
    %v2637 = vsel %vm2634, %v2636, %v2632
    %v2638 = vmul.f32 1.0, %v2637
    %v2639 = vxor.u32 %v2599, 2147483648
    %v2640 = vmul.f32 %v2639, 1.442695
    %v2641 = vpow.pop %v2640
    %v2642 = vadd.f32 %v2641, 1.0
    %v2643 = vrcp.pop %v2642
    %v2644 = vmul.f32 %v2642, %v2643
    %v2645 = vsub.f32 1.0, %v2644
    %v2646 = vmul.f32 %v2643, %v2645
    %v2647 = vadd.f32 %v2643, %v2646
    %vm2648 = vweird.f32 %v2642
    %vm2649 = vweird.f32 %v2643
    %vm2650 = vmor %vm2648, %vm2649
    %v2651 = vsel %vm2650, %v2643, %v2647
    %v2652 = vand.u32 2147483647, %v2642
    %vm2653 = vcmp.eq.f32.partialorder %v2652, 8.507059e+37
    %v2654 = vand.u32 %v2642, 2147483648
    %v2655 = vor.u32 1.1754944e-38, %v2654
    %v2656 = vsel %vm2653, %v2655, %v2651
    %v2657 = vmul.f32 1.0, %v2656
    %v2658 = vtanh.pop %v2600
    %v2659 = vmul.f32 %v2207, %v2619
    %v2660 = vmul.f32 %v2638, %v2658
    %v2661 = vadd.f32 %v2659, %v2660
    %v2662 = vtanh.pop %v2661
    %v2663 = vmul.f32 %v2657, %v2662
    %v2664 = vsel %vm1963, %v2663, %v2206
    %v2665 = vsel %vm1963, %v2661, %v2207
    %2666 = vmatpush.msra.mxu0 %v169
    %2667 = vmatpush.msra.mxu0 %v165
    %2668 = vmatpush.msra.mxu0 %v161
    %2669 = vmatpush.msra.mxu0 %v157
    %2670 = vmatpush.msra.mxu0 %v153
    %2671 = vmatpush.msra.mxu0 %v149
    %2672 = vmatpush.msra.mxu0 %v145
    %2673 = vmatpush.msra.mxu0 %v141
    %2674 = vmatpush.msra.mxu0 %v137
    %2675 = vmatpush.msra.mxu0 %v133
    %2676 = vmatpush.msra.mxu0 %v129
    %2677 = vmatpush.msra.mxu0 %v125
    %2678 = vmatpush.msra.mxu0 %v121
    %2679 = vmatpush.msra.mxu0 %v117
    %2680 = vmatpush.msra.mxu0 %v113
    %2681 = vmatpush.msra.mxu0 %v109
    %2682 = vmatmul.f32.gmra.mxu0 %v2435
    %v2683 = vpop.f32.mrf.mxu0
    %v2684 = vadd.f32 0.0, %v2683
    %2685 = vdwg.mxu0
    %2686 = vmatpush.msra.mxu0 %v170
    %2687 = vmatpush.msra.mxu0 %v166
    %2688 = vmatpush.msra.mxu0 %v162
    %2689 = vmatpush.msra.mxu0 %v158
    %2690 = vmatpush.msra.mxu0 %v154
    %2691 = vmatpush.msra.mxu0 %v150
    %2692 = vmatpush.msra.mxu0 %v146
    %2693 = vmatpush.msra.mxu0 %v142
    %2694 = vmatpush.msra.mxu0 %v138
    %2695 = vmatpush.msra.mxu0 %v134
    %2696 = vmatpush.msra.mxu0 %v130
    %2697 = vmatpush.msra.mxu0 %v126
    %2698 = vmatpush.msra.mxu0 %v122
    %2699 = vmatpush.msra.mxu0 %v118
    %2700 = vmatpush.msra.mxu0 %v114
    %2701 = vmatpush.msra.mxu0 %v110
    %2702 = vmatmul.f32.gmra.mxu0 %v2435
    %v2703 = vpop.f32.mrf.mxu0
    %v2704 = vadd.f32 0.0, %v2703
    %2705 = vdwg.mxu0
    %2706 = vmatpush.msra.mxu0 %v171
    %2707 = vmatpush.msra.mxu0 %v167
    %2708 = vmatpush.msra.mxu0 %v163
    %2709 = vmatpush.msra.mxu0 %v159
    %2710 = vmatpush.msra.mxu0 %v155
    %2711 = vmatpush.msra.mxu0 %v151
    %2712 = vmatpush.msra.mxu0 %v147
    %2713 = vmatpush.msra.mxu0 %v143
    %2714 = vmatpush.msra.mxu0 %v139
    %2715 = vmatpush.msra.mxu0 %v135
    %2716 = vmatpush.msra.mxu0 %v131
    %2717 = vmatpush.msra.mxu0 %v127
    %2718 = vmatpush.msra.mxu0 %v123
    %2719 = vmatpush.msra.mxu0 %v119
    %2720 = vmatpush.msra.mxu0 %v115
    %2721 = vmatpush.msra.mxu0 %v111
    %2722 = vmatmul.f32.gmra.mxu0 %v2435
    %v2723 = vpop.f32.mrf.mxu0
    %v2724 = vadd.f32 0.0, %v2723
    %2725 = vdwg.mxu0
    %2726 = vmatpush.msra.mxu0 %v172
    %2727 = vmatpush.msra.mxu0 %v168
    %2728 = vmatpush.msra.mxu0 %v164
    %2729 = vmatpush.msra.mxu0 %v160
    %2730 = vmatpush.msra.mxu0 %v156
    %2731 = vmatpush.msra.mxu0 %v152
    %2732 = vmatpush.msra.mxu0 %v148
    %2733 = vmatpush.msra.mxu0 %v144
    %2734 = vmatpush.msra.mxu0 %v140
    %2735 = vmatpush.msra.mxu0 %v136
    %2736 = vmatpush.msra.mxu0 %v132
    %2737 = vmatpush.msra.mxu0 %v128
    %2738 = vmatpush.msra.mxu0 %v124
    %2739 = vmatpush.msra.mxu0 %v120
    %2740 = vmatpush.msra.mxu0 %v116
    %2741 = vmatpush.msra.mxu0 %v112
    %2742 = vmatmul.f32.gmra.mxu0 %v2435
    %v2743 = vpop.f32.mrf.mxu0
    %v2744 = vadd.f32 0.0, %v2743
    %2745 = vdwg.mxu0
    %2746 = vmatpush.msra.mxu0 0.0
    %2747 = vmatpush.msra.mxu0 0.0
    %2748 = vmatpush.msra.mxu0 0.0
    %2749 = vmatpush.msra.mxu0 0.0
    %2750 = vmatpush.msra.mxu0 0.0
    %2751 = vmatpush.msra.mxu0 0.0
    %2752 = vmatpush.msra.mxu0 0.0
    %2753 = vmatpush.msra.mxu0 0.0
    %2754 = vmatpush.msra.mxu0 0.0
    %2755 = vmatpush.msra.mxu0 0.0
    %2756 = vmatpush.msra.mxu0 0.0
    %2757 = vmatpush.msra.mxu0 0.0
    %2758 = vmatpush.msra.mxu0 %v105
    %2759 = vmatpush.msra.mxu0 %v101
    %2760 = vmatpush.msra.mxu0 %v97
    %2761 = vmatpush.msra.mxu0 %v93
    %2762 = vmatmul.f32.gmra.mxu0 %v1567
    %v2763 = vpop.f32.mrf.mxu0
    %v2764 = vadd.f32 %v2684, %v2763
    %2765 = vdwg.mxu0
    %2766 = vmatpush.msra.mxu0 0.0
    %2767 = vmatpush.msra.mxu0 0.0
    %2768 = vmatpush.msra.mxu0 0.0
    %2769 = vmatpush.msra.mxu0 0.0
    %2770 = vmatpush.msra.mxu0 0.0
    %2771 = vmatpush.msra.mxu0 0.0
    %2772 = vmatpush.msra.mxu0 0.0
    %2773 = vmatpush.msra.mxu0 0.0
    %2774 = vmatpush.msra.mxu0 0.0
    %2775 = vmatpush.msra.mxu0 0.0
    %2776 = vmatpush.msra.mxu0 0.0
    %2777 = vmatpush.msra.mxu0 0.0
    %2778 = vmatpush.msra.mxu0 %v106
    %2779 = vmatpush.msra.mxu0 %v102
    %2780 = vmatpush.msra.mxu0 %v98
    %2781 = vmatpush.msra.mxu0 %v94
    %2782 = vmatmul.f32.gmra.mxu0 %v1567
    %v2783 = vpop.f32.mrf.mxu0
    %v2784 = vadd.f32 %v2704, %v2783
    %2785 = vdwg.mxu0
    %2786 = vmatpush.msra.mxu0 0.0
    %2787 = vmatpush.msra.mxu0 0.0
    %2788 = vmatpush.msra.mxu0 0.0
    %2789 = vmatpush.msra.mxu0 0.0
    %2790 = vmatpush.msra.mxu0 0.0
    %2791 = vmatpush.msra.mxu0 0.0
    %2792 = vmatpush.msra.mxu0 0.0
    %2793 = vmatpush.msra.mxu0 0.0
    %2794 = vmatpush.msra.mxu0 0.0
    %2795 = vmatpush.msra.mxu0 0.0
    %2796 = vmatpush.msra.mxu0 0.0
    %2797 = vmatpush.msra.mxu0 0.0
    %2798 = vmatpush.msra.mxu0 %v107
    %2799 = vmatpush.msra.mxu0 %v103
    %2800 = vmatpush.msra.mxu0 %v99
    %2801 = vmatpush.msra.mxu0 %v95
    %2802 = vmatmul.f32.gmra.mxu0 %v1567
    %v2803 = vpop.f32.mrf.mxu0
    %v2804 = vadd.f32 %v2724, %v2803
    %2805 = vdwg.mxu0
    %2806 = vmatpush.msra.mxu0 0.0
    %2807 = vmatpush.msra.mxu0 0.0
    %2808 = vmatpush.msra.mxu0 0.0
    %2809 = vmatpush.msra.mxu0 0.0
    %2810 = vmatpush.msra.mxu0 0.0
    %2811 = vmatpush.msra.mxu0 0.0
    %2812 = vmatpush.msra.mxu0 0.0
    %2813 = vmatpush.msra.mxu0 0.0
    %2814 = vmatpush.msra.mxu0 0.0
    %2815 = vmatpush.msra.mxu0 0.0
    %2816 = vmatpush.msra.mxu0 0.0
    %2817 = vmatpush.msra.mxu0 0.0
    %2818 = vmatpush.msra.mxu0 %v108
    %2819 = vmatpush.msra.mxu0 %v104
    %2820 = vmatpush.msra.mxu0 %v100
    %2821 = vmatpush.msra.mxu0 %v96
    %2822 = vmatmul.f32.gmra.mxu0 %v1567
    %v2823 = vpop.f32.mrf.mxu0
    %v2824 = vadd.f32 %v2744, %v2823
    %2825 = vdwg.mxu0
    %v2826 = vadd.f32 %v2764, %v255
    %v2827 = vadd.f32 %v2784, %v256
    %v2828 = vadd.f32 %v2804, %v257
    %v2829 = vadd.f32 %v2824, %v258
    %v2830 = vxor.u32 %v2826, 2147483648
    %v2831 = vmul.f32 %v2830, 1.442695
    %v2832 = vpow.pop %v2831
    %v2833 = vadd.f32 %v2832, 1.0
    %v2834 = vrcp.pop %v2833
    %v2835 = vmul.f32 %v2833, %v2834
    %v2836 = vsub.f32 1.0, %v2835
    %v2837 = vmul.f32 %v2834, %v2836
    %v2838 = vadd.f32 %v2834, %v2837
    %vm2839 = vweird.f32 %v2833
    %vm2840 = vweird.f32 %v2834
    %vm2841 = vmor %vm2839, %vm2840
    %v2842 = vsel %vm2841, %v2834, %v2838
    %v2843 = vand.u32 2147483647, %v2833
    %vm2844 = vcmp.eq.f32.partialorder %v2843, 8.507059e+37
    %v2845 = vand.u32 %v2833, 2147483648
    %v2846 = vor.u32 1.1754944e-38, %v2845
    %v2847 = vsel %vm2844, %v2846, %v2842
    %v2848 = vmul.f32 1.0, %v2847
    %v2849 = vxor.u32 %v2827, 2147483648
    %v2850 = vmul.f32 %v2849, 1.442695
    %v2851 = vpow.pop %v2850
    %v2852 = vadd.f32 %v2851, 1.0
    %v2853 = vrcp.pop %v2852
    %v2854 = vmul.f32 %v2852, %v2853
    %v2855 = vsub.f32 1.0, %v2854
    %v2856 = vmul.f32 %v2853, %v2855
    %v2857 = vadd.f32 %v2853, %v2856
    %vm2858 = vweird.f32 %v2852
    %vm2859 = vweird.f32 %v2853
    %vm2860 = vmor %vm2858, %vm2859
    %v2861 = vsel %vm2860, %v2853, %v2857
    %v2862 = vand.u32 2147483647, %v2852
    %vm2863 = vcmp.eq.f32.partialorder %v2862, 8.507059e+37
    %v2864 = vand.u32 %v2852, 2147483648
    %v2865 = vor.u32 1.1754944e-38, %v2864
    %v2866 = vsel %vm2863, %v2865, %v2861
    %v2867 = vmul.f32 1.0, %v2866
    %v2868 = vxor.u32 %v2828, 2147483648
    %v2869 = vmul.f32 %v2868, 1.442695
    %v2870 = vpow.pop %v2869
    %v2871 = vadd.f32 %v2870, 1.0
    %v2872 = vrcp.pop %v2871
    %v2873 = vmul.f32 %v2871, %v2872
    %v2874 = vsub.f32 1.0, %v2873
    %v2875 = vmul.f32 %v2872, %v2874
    %v2876 = vadd.f32 %v2872, %v2875
    %vm2877 = vweird.f32 %v2871
    %vm2878 = vweird.f32 %v2872
    %vm2879 = vmor %vm2877, %vm2878
    %v2880 = vsel %vm2879, %v2872, %v2876
    %v2881 = vand.u32 2147483647, %v2871
    %vm2882 = vcmp.eq.f32.partialorder %v2881, 8.507059e+37
    %v2883 = vand.u32 %v2871, 2147483648
    %v2884 = vor.u32 1.1754944e-38, %v2883
    %v2885 = vsel %vm2882, %v2884, %v2880
    %v2886 = vmul.f32 1.0, %v2885
    %v2887 = vtanh.pop %v2829
    %v2888 = vmul.f32 %v2436, %v2848
    %v2889 = vmul.f32 %v2867, %v2887
    %v2890 = vadd.f32 %v2888, %v2889
    %v2891 = vtanh.pop %v2890
    %v2892 = vmul.f32 %v2886, %v2891
    %v2893 = vsel %vm1721, %v2892, %v2435
    %v2894 = vsel %vm1721, %v2890, %v2436
    %2895 = vmatpush.msra.mxu0 %v249
    %2896 = vmatpush.msra.mxu0 %v245
    %2897 = vmatpush.msra.mxu0 %v241
    %2898 = vmatpush.msra.mxu0 %v237
    %2899 = vmatpush.msra.mxu0 %v233
    %2900 = vmatpush.msra.mxu0 %v229
    %2901 = vmatpush.msra.mxu0 %v225
    %2902 = vmatpush.msra.mxu0 %v221
    %2903 = vmatpush.msra.mxu0 %v217
    %2904 = vmatpush.msra.mxu0 %v213
    %2905 = vmatpush.msra.mxu0 %v209
    %2906 = vmatpush.msra.mxu0 %v205
    %2907 = vmatpush.msra.mxu0 %v201
    %2908 = vmatpush.msra.mxu0 %v197
    %2909 = vmatpush.msra.mxu0 %v193
    %2910 = vmatpush.msra.mxu0 %v189
    %2911 = vmatmul.f32.gmra.mxu0 %v2664
    %v2912 = vpop.f32.mrf.mxu0
    %v2913 = vadd.f32 0.0, %v2912
    %2914 = vdwg.mxu0
    %2915 = vmatpush.msra.mxu0 %v250
    %2916 = vmatpush.msra.mxu0 %v246
    %2917 = vmatpush.msra.mxu0 %v242
    %2918 = vmatpush.msra.mxu0 %v238
    %2919 = vmatpush.msra.mxu0 %v234
    %2920 = vmatpush.msra.mxu0 %v230
    %2921 = vmatpush.msra.mxu0 %v226
    %2922 = vmatpush.msra.mxu0 %v222
    %2923 = vmatpush.msra.mxu0 %v218
    %2924 = vmatpush.msra.mxu0 %v214
    %2925 = vmatpush.msra.mxu0 %v210
    %2926 = vmatpush.msra.mxu0 %v206
    %2927 = vmatpush.msra.mxu0 %v202
    %2928 = vmatpush.msra.mxu0 %v198
    %2929 = vmatpush.msra.mxu0 %v194
    %2930 = vmatpush.msra.mxu0 %v190
    %2931 = vmatmul.f32.gmra.mxu0 %v2664
    %v2932 = vpop.f32.mrf.mxu0
    %v2933 = vadd.f32 0.0, %v2932
    %2934 = vdwg.mxu0
    %2935 = vmatpush.msra.mxu0 %v251
    %2936 = vmatpush.msra.mxu0 %v247
    %2937 = vmatpush.msra.mxu0 %v243
    %2938 = vmatpush.msra.mxu0 %v239
    %2939 = vmatpush.msra.mxu0 %v235
    %2940 = vmatpush.msra.mxu0 %v231
    %2941 = vmatpush.msra.mxu0 %v227
    %2942 = vmatpush.msra.mxu0 %v223
    %2943 = vmatpush.msra.mxu0 %v219
    %2944 = vmatpush.msra.mxu0 %v215
    %2945 = vmatpush.msra.mxu0 %v211
    %2946 = vmatpush.msra.mxu0 %v207
    %2947 = vmatpush.msra.mxu0 %v203
    %2948 = vmatpush.msra.mxu0 %v199
    %2949 = vmatpush.msra.mxu0 %v195
    %2950 = vmatpush.msra.mxu0 %v191
    %2951 = vmatmul.f32.gmra.mxu0 %v2664
    %v2952 = vpop.f32.mrf.mxu0
    %v2953 = vadd.f32 0.0, %v2952
    %2954 = vdwg.mxu0
    %2955 = vmatpush.msra.mxu0 %v252
    %2956 = vmatpush.msra.mxu0 %v248
    %2957 = vmatpush.msra.mxu0 %v244
    %2958 = vmatpush.msra.mxu0 %v240
    %2959 = vmatpush.msra.mxu0 %v236
    %2960 = vmatpush.msra.mxu0 %v232
    %2961 = vmatpush.msra.mxu0 %v228
    %2962 = vmatpush.msra.mxu0 %v224
    %2963 = vmatpush.msra.mxu0 %v220
    %2964 = vmatpush.msra.mxu0 %v216
    %2965 = vmatpush.msra.mxu0 %v212
    %2966 = vmatpush.msra.mxu0 %v208
    %2967 = vmatpush.msra.mxu0 %v204
    %2968 = vmatpush.msra.mxu0 %v200
    %2969 = vmatpush.msra.mxu0 %v196
    %2970 = vmatpush.msra.mxu0 %v192
    %2971 = vmatmul.f32.gmra.mxu0 %v2664
    %v2972 = vpop.f32.mrf.mxu0
    %v2973 = vadd.f32 0.0, %v2972
    %2974 = vdwg.mxu0
    %2975 = vmatpush.msra.mxu0 0.0
    %2976 = vmatpush.msra.mxu0 0.0
    %2977 = vmatpush.msra.mxu0 0.0
    %2978 = vmatpush.msra.mxu0 0.0
    %2979 = vmatpush.msra.mxu0 0.0
    %2980 = vmatpush.msra.mxu0 0.0
    %2981 = vmatpush.msra.mxu0 0.0
    %2982 = vmatpush.msra.mxu0 0.0
    %2983 = vmatpush.msra.mxu0 0.0
    %2984 = vmatpush.msra.mxu0 0.0
    %2985 = vmatpush.msra.mxu0 0.0
    %2986 = vmatpush.msra.mxu0 0.0
    %2987 = vmatpush.msra.mxu0 %v185
    %2988 = vmatpush.msra.mxu0 %v181
    %2989 = vmatpush.msra.mxu0 %v177
    %2990 = vmatpush.msra.mxu0 %v173
    %2991 = vmatmul.f32.gmra.mxu0 %v1325
    %v2992 = vpop.f32.mrf.mxu0
    %v2993 = vadd.f32 %v2913, %v2992
    %2994 = vdwg.mxu0
    %2995 = vmatpush.msra.mxu0 0.0
    %2996 = vmatpush.msra.mxu0 0.0
    %2997 = vmatpush.msra.mxu0 0.0
    %2998 = vmatpush.msra.mxu0 0.0
    %2999 = vmatpush.msra.mxu0 0.0
    %3000 = vmatpush.msra.mxu0 0.0
    %3001 = vmatpush.msra.mxu0 0.0
    %3002 = vmatpush.msra.mxu0 0.0
    %3003 = vmatpush.msra.mxu0 0.0
    %3004 = vmatpush.msra.mxu0 0.0
    %3005 = vmatpush.msra.mxu0 0.0
    %3006 = vmatpush.msra.mxu0 0.0
    %3007 = vmatpush.msra.mxu0 %v186
    %3008 = vmatpush.msra.mxu0 %v182
    %3009 = vmatpush.msra.mxu0 %v178
    %3010 = vmatpush.msra.mxu0 %v174
    %3011 = vmatmul.f32.gmra.mxu0 %v1325
    %v3012 = vpop.f32.mrf.mxu0
    %v3013 = vadd.f32 %v2933, %v3012
    %3014 = vdwg.mxu0
    %3015 = vmatpush.msra.mxu0 0.0
    %3016 = vmatpush.msra.mxu0 0.0
    %3017 = vmatpush.msra.mxu0 0.0
    %3018 = vmatpush.msra.mxu0 0.0
    %3019 = vmatpush.msra.mxu0 0.0
    %3020 = vmatpush.msra.mxu0 0.0
    %3021 = vmatpush.msra.mxu0 0.0
    %3022 = vmatpush.msra.mxu0 0.0
    %3023 = vmatpush.msra.mxu0 0.0
    %3024 = vmatpush.msra.mxu0 0.0
    %3025 = vmatpush.msra.mxu0 0.0
    %3026 = vmatpush.msra.mxu0 0.0
    %3027 = vmatpush.msra.mxu0 %v187
    %3028 = vmatpush.msra.mxu0 %v183
    %3029 = vmatpush.msra.mxu0 %v179
    %3030 = vmatpush.msra.mxu0 %v175
    %3031 = vmatmul.f32.gmra.mxu0 %v1325
    %v3032 = vpop.f32.mrf.mxu0
    %v3033 = vadd.f32 %v2953, %v3032
    %3034 = vdwg.mxu0
    %3035 = vmatpush.msra.mxu0 0.0
    %3036 = vmatpush.msra.mxu0 0.0
    %3037 = vmatpush.msra.mxu0 0.0
    %3038 = vmatpush.msra.mxu0 0.0
    %3039 = vmatpush.msra.mxu0 0.0
    %3040 = vmatpush.msra.mxu0 0.0
    %3041 = vmatpush.msra.mxu0 0.0
    %3042 = vmatpush.msra.mxu0 0.0
    %3043 = vmatpush.msra.mxu0 0.0
    %3044 = vmatpush.msra.mxu0 0.0
    %3045 = vmatpush.msra.mxu0 0.0
    %3046 = vmatpush.msra.mxu0 0.0
    %3047 = vmatpush.msra.mxu0 %v188
    %3048 = vmatpush.msra.mxu0 %v184
    %3049 = vmatpush.msra.mxu0 %v180
    %3050 = vmatpush.msra.mxu0 %v176
    %3051 = vmatmul.f32.gmra.mxu0 %v1325
    %v3052 = vpop.f32.mrf.mxu0
    %v3053 = vadd.f32 %v2973, %v3052
    %3054 = vdwg.mxu0
    %v3055 = vadd.f32 %v2993, %v265
    %v3056 = vadd.f32 %v3013, %v266
    %v3057 = vadd.f32 %v3033, %v267
    %v3058 = vadd.f32 %v3053, %v268
    %v3059 = vxor.u32 %v3055, 2147483648
    %v3060 = vmul.f32 %v3059, 1.442695
    %v3061 = vpow.pop %v3060
    %v3062 = vadd.f32 %v3061, 1.0
    %v3063 = vrcp.pop %v3062
    %v3064 = vmul.f32 %v3062, %v3063
    %v3065 = vsub.f32 1.0, %v3064
    %v3066 = vmul.f32 %v3063, %v3065
    %v3067 = vadd.f32 %v3063, %v3066
    %vm3068 = vweird.f32 %v3062
    %vm3069 = vweird.f32 %v3063
    %vm3070 = vmor %vm3068, %vm3069
    %v3071 = vsel %vm3070, %v3063, %v3067
    %v3072 = vand.u32 2147483647, %v3062
    %vm3073 = vcmp.eq.f32.partialorder %v3072, 8.507059e+37
    %v3074 = vand.u32 %v3062, 2147483648
    %v3075 = vor.u32 1.1754944e-38, %v3074
    %v3076 = vsel %vm3073, %v3075, %v3071
    %v3077 = vmul.f32 1.0, %v3076
    %v3078 = vxor.u32 %v3056, 2147483648
    %v3079 = vmul.f32 %v3078, 1.442695
    %v3080 = vpow.pop %v3079
    %v3081 = vadd.f32 %v3080, 1.0
    %v3082 = vrcp.pop %v3081
    %v3083 = vmul.f32 %v3081, %v3082
    %v3084 = vsub.f32 1.0, %v3083
    %v3085 = vmul.f32 %v3082, %v3084
    %v3086 = vadd.f32 %v3082, %v3085
    %vm3087 = vweird.f32 %v3081
    %vm3088 = vweird.f32 %v3082
    %vm3089 = vmor %vm3087, %vm3088
    %v3090 = vsel %vm3089, %v3082, %v3086
    %v3091 = vand.u32 2147483647, %v3081
    %vm3092 = vcmp.eq.f32.partialorder %v3091, 8.507059e+37
    %v3093 = vand.u32 %v3081, 2147483648
    %v3094 = vor.u32 1.1754944e-38, %v3093
    %v3095 = vsel %vm3092, %v3094, %v3090
    %v3096 = vmul.f32 1.0, %v3095
    %v3097 = vxor.u32 %v3057, 2147483648
    %v3098 = vmul.f32 %v3097, 1.442695
    %v3099 = vpow.pop %v3098
    %v3100 = vadd.f32 %v3099, 1.0
    %v3101 = vrcp.pop %v3100
    %v3102 = vmul.f32 %v3100, %v3101
    %v3103 = vsub.f32 1.0, %v3102
    %v3104 = vmul.f32 %v3101, %v3103
    %v3105 = vadd.f32 %v3101, %v3104
    %vm3106 = vweird.f32 %v3100
    %vm3107 = vweird.f32 %v3101
    %vm3108 = vmor %vm3106, %vm3107
    %v3109 = vsel %vm3108, %v3101, %v3105
    %v3110 = vand.u32 2147483647, %v3100
    %vm3111 = vcmp.eq.f32.partialorder %v3110, 8.507059e+37
    %v3112 = vand.u32 %v3100, 2147483648
    %v3113 = vor.u32 1.1754944e-38, %v3112
    %v3114 = vsel %vm3111, %v3113, %v3109
    %v3115 = vmul.f32 1.0, %v3114
    %v3116 = vtanh.pop %v3058
    %v3117 = vmul.f32 %v2665, %v3077
    %v3118 = vmul.f32 %v3096, %v3116
    %v3119 = vadd.f32 %v3117, %v3118
    %v3120 = vtanh.pop %v3119
    %v3121 = vmul.f32 %v3115, %v3120
    %v3122 = vsel %vm1479, %v3121, %v2664
    %v3123 = vsel %vm1479, %v3119, %v2665
    %3124 = vmatpush.msra.mxu0 %v169
    %3125 = vmatpush.msra.mxu0 %v165
    %3126 = vmatpush.msra.mxu0 %v161
    %3127 = vmatpush.msra.mxu0 %v157
    %3128 = vmatpush.msra.mxu0 %v153
    %3129 = vmatpush.msra.mxu0 %v149
    %3130 = vmatpush.msra.mxu0 %v145
    %3131 = vmatpush.msra.mxu0 %v141
    %3132 = vmatpush.msra.mxu0 %v137
    %3133 = vmatpush.msra.mxu0 %v133
    %3134 = vmatpush.msra.mxu0 %v129
    %3135 = vmatpush.msra.mxu0 %v125
    %3136 = vmatpush.msra.mxu0 %v121
    %3137 = vmatpush.msra.mxu0 %v117
    %3138 = vmatpush.msra.mxu0 %v113
    %3139 = vmatpush.msra.mxu0 %v109
    %3140 = vmatmul.f32.gmra.mxu0 %v2893
    %v3141 = vpop.f32.mrf.mxu0
    %v3142 = vadd.f32 0.0, %v3141
    %3143 = vdwg.mxu0
    %3144 = vmatpush.msra.mxu0 %v170
    %3145 = vmatpush.msra.mxu0 %v166
    %3146 = vmatpush.msra.mxu0 %v162
    %3147 = vmatpush.msra.mxu0 %v158
    %3148 = vmatpush.msra.mxu0 %v154
    %3149 = vmatpush.msra.mxu0 %v150
    %3150 = vmatpush.msra.mxu0 %v146
    %3151 = vmatpush.msra.mxu0 %v142
    %3152 = vmatpush.msra.mxu0 %v138
    %3153 = vmatpush.msra.mxu0 %v134
    %3154 = vmatpush.msra.mxu0 %v130
    %3155 = vmatpush.msra.mxu0 %v126
    %3156 = vmatpush.msra.mxu0 %v122
    %3157 = vmatpush.msra.mxu0 %v118
    %3158 = vmatpush.msra.mxu0 %v114
    %3159 = vmatpush.msra.mxu0 %v110
    %3160 = vmatmul.f32.gmra.mxu0 %v2893
    %v3161 = vpop.f32.mrf.mxu0
    %v3162 = vadd.f32 0.0, %v3161
    %3163 = vdwg.mxu0
    %3164 = vmatpush.msra.mxu0 %v171
    %3165 = vmatpush.msra.mxu0 %v167
    %3166 = vmatpush.msra.mxu0 %v163
    %3167 = vmatpush.msra.mxu0 %v159
    %3168 = vmatpush.msra.mxu0 %v155
    %3169 = vmatpush.msra.mxu0 %v151
    %3170 = vmatpush.msra.mxu0 %v147
    %3171 = vmatpush.msra.mxu0 %v143
    %3172 = vmatpush.msra.mxu0 %v139
    %3173 = vmatpush.msra.mxu0 %v135
    %3174 = vmatpush.msra.mxu0 %v131
    %3175 = vmatpush.msra.mxu0 %v127
    %3176 = vmatpush.msra.mxu0 %v123
    %3177 = vmatpush.msra.mxu0 %v119
    %3178 = vmatpush.msra.mxu0 %v115
    %3179 = vmatpush.msra.mxu0 %v111
    %3180 = vmatmul.f32.gmra.mxu0 %v2893
    %v3181 = vpop.f32.mrf.mxu0
    %v3182 = vadd.f32 0.0, %v3181
    %3183 = vdwg.mxu0
    %3184 = vmatpush.msra.mxu0 %v172
    %3185 = vmatpush.msra.mxu0 %v168
    %3186 = vmatpush.msra.mxu0 %v164
    %3187 = vmatpush.msra.mxu0 %v160
    %3188 = vmatpush.msra.mxu0 %v156
    %3189 = vmatpush.msra.mxu0 %v152
    %3190 = vmatpush.msra.mxu0 %v148
    %3191 = vmatpush.msra.mxu0 %v144
    %3192 = vmatpush.msra.mxu0 %v140
    %3193 = vmatpush.msra.mxu0 %v136
    %3194 = vmatpush.msra.mxu0 %v132
    %3195 = vmatpush.msra.mxu0 %v128
    %3196 = vmatpush.msra.mxu0 %v124
    %3197 = vmatpush.msra.mxu0 %v120
    %3198 = vmatpush.msra.mxu0 %v116
    %3199 = vmatpush.msra.mxu0 %v112
    %3200 = vmatmul.f32.gmra.mxu0 %v2893
    %v3201 = vpop.f32.mrf.mxu0
    %v3202 = vadd.f32 0.0, %v3201
    %3203 = vdwg.mxu0
    %3204 = vmatpush.msra.mxu0 0.0
    %3205 = vmatpush.msra.mxu0 0.0
    %3206 = vmatpush.msra.mxu0 0.0
    %3207 = vmatpush.msra.mxu0 0.0
    %3208 = vmatpush.msra.mxu0 0.0
    %3209 = vmatpush.msra.mxu0 0.0
    %3210 = vmatpush.msra.mxu0 0.0
    %3211 = vmatpush.msra.mxu0 0.0
    %3212 = vmatpush.msra.mxu0 0.0
    %3213 = vmatpush.msra.mxu0 0.0
    %3214 = vmatpush.msra.mxu0 0.0
    %3215 = vmatpush.msra.mxu0 0.0
    %3216 = vmatpush.msra.mxu0 %v105
    %3217 = vmatpush.msra.mxu0 %v101
    %3218 = vmatpush.msra.mxu0 %v97
    %3219 = vmatpush.msra.mxu0 %v93
    %3220 = vmatmul.f32.gmra.mxu0 %v1083
    %v3221 = vpop.f32.mrf.mxu0
    %v3222 = vadd.f32 %v3142, %v3221
    %3223 = vdwg.mxu0
    %3224 = vmatpush.msra.mxu0 0.0
    %3225 = vmatpush.msra.mxu0 0.0
    %3226 = vmatpush.msra.mxu0 0.0
    %3227 = vmatpush.msra.mxu0 0.0
    %3228 = vmatpush.msra.mxu0 0.0
    %3229 = vmatpush.msra.mxu0 0.0
    %3230 = vmatpush.msra.mxu0 0.0
    %3231 = vmatpush.msra.mxu0 0.0
    %3232 = vmatpush.msra.mxu0 0.0
    %3233 = vmatpush.msra.mxu0 0.0
    %3234 = vmatpush.msra.mxu0 0.0
    %3235 = vmatpush.msra.mxu0 0.0
    %3236 = vmatpush.msra.mxu0 %v106
    %3237 = vmatpush.msra.mxu0 %v102
    %3238 = vmatpush.msra.mxu0 %v98
    %3239 = vmatpush.msra.mxu0 %v94
    %3240 = vmatmul.f32.gmra.mxu0 %v1083
    %v3241 = vpop.f32.mrf.mxu0
    %v3242 = vadd.f32 %v3162, %v3241
    %3243 = vdwg.mxu0
    %3244 = vmatpush.msra.mxu0 0.0
    %3245 = vmatpush.msra.mxu0 0.0
    %3246 = vmatpush.msra.mxu0 0.0
    %3247 = vmatpush.msra.mxu0 0.0
    %3248 = vmatpush.msra.mxu0 0.0
    %3249 = vmatpush.msra.mxu0 0.0
    %3250 = vmatpush.msra.mxu0 0.0
    %3251 = vmatpush.msra.mxu0 0.0
    %3252 = vmatpush.msra.mxu0 0.0
    %3253 = vmatpush.msra.mxu0 0.0
    %3254 = vmatpush.msra.mxu0 0.0
    %3255 = vmatpush.msra.mxu0 0.0
    %3256 = vmatpush.msra.mxu0 %v107
    %3257 = vmatpush.msra.mxu0 %v103
    %3258 = vmatpush.msra.mxu0 %v99
    %3259 = vmatpush.msra.mxu0 %v95
    %3260 = vmatmul.f32.gmra.mxu0 %v1083
    %v3261 = vpop.f32.mrf.mxu0
    %v3262 = vadd.f32 %v3182, %v3261
    %3263 = vdwg.mxu0
    %3264 = vmatpush.msra.mxu0 0.0
    %3265 = vmatpush.msra.mxu0 0.0
    %3266 = vmatpush.msra.mxu0 0.0
    %3267 = vmatpush.msra.mxu0 0.0
    %3268 = vmatpush.msra.mxu0 0.0
    %3269 = vmatpush.msra.mxu0 0.0
    %3270 = vmatpush.msra.mxu0 0.0
    %3271 = vmatpush.msra.mxu0 0.0
    %3272 = vmatpush.msra.mxu0 0.0
    %3273 = vmatpush.msra.mxu0 0.0
    %3274 = vmatpush.msra.mxu0 0.0
    %3275 = vmatpush.msra.mxu0 0.0
    %3276 = vmatpush.msra.mxu0 %v108
    %3277 = vmatpush.msra.mxu0 %v104
    %3278 = vmatpush.msra.mxu0 %v100
    %3279 = vmatpush.msra.mxu0 %v96
    %3280 = vmatmul.f32.gmra.mxu0 %v1083
    %v3281 = vpop.f32.mrf.mxu0
    %v3282 = vadd.f32 %v3202, %v3281
    %3283 = vdwg.mxu0
    %v3284 = vadd.f32 %v3222, %v255
    %v3285 = vadd.f32 %v3242, %v256
    %v3286 = vadd.f32 %v3262, %v257
    %v3287 = vadd.f32 %v3282, %v258
    %v3288 = vxor.u32 %v3284, 2147483648
    %v3289 = vmul.f32 %v3288, 1.442695
    %v3290 = vpow.pop %v3289
    %v3291 = vadd.f32 %v3290, 1.0
    %v3292 = vrcp.pop %v3291
    %v3293 = vmul.f32 %v3291, %v3292
    %v3294 = vsub.f32 1.0, %v3293
    %v3295 = vmul.f32 %v3292, %v3294
    %v3296 = vadd.f32 %v3292, %v3295
    %vm3297 = vweird.f32 %v3291
    %vm3298 = vweird.f32 %v3292
    %vm3299 = vmor %vm3297, %vm3298
    %v3300 = vsel %vm3299, %v3292, %v3296
    %v3301 = vand.u32 2147483647, %v3291
    %vm3302 = vcmp.eq.f32.partialorder %v3301, 8.507059e+37
    %v3303 = vand.u32 %v3291, 2147483648
    %v3304 = vor.u32 1.1754944e-38, %v3303
    %v3305 = vsel %vm3302, %v3304, %v3300
    %v3306 = vmul.f32 1.0, %v3305
    %v3307 = vxor.u32 %v3285, 2147483648
    %v3308 = vmul.f32 %v3307, 1.442695
    %v3309 = vpow.pop %v3308
    %v3310 = vadd.f32 %v3309, 1.0
    %v3311 = vrcp.pop %v3310
    %v3312 = vmul.f32 %v3310, %v3311
    %v3313 = vsub.f32 1.0, %v3312
    %v3314 = vmul.f32 %v3311, %v3313
    %v3315 = vadd.f32 %v3311, %v3314
    %vm3316 = vweird.f32 %v3310
    %vm3317 = vweird.f32 %v3311
    %vm3318 = vmor %vm3316, %vm3317
    %v3319 = vsel %vm3318, %v3311, %v3315
    %v3320 = vand.u32 2147483647, %v3310
    %vm3321 = vcmp.eq.f32.partialorder %v3320, 8.507059e+37
    %v3322 = vand.u32 %v3310, 2147483648
    %v3323 = vor.u32 1.1754944e-38, %v3322
    %v3324 = vsel %vm3321, %v3323, %v3319
    %v3325 = vmul.f32 1.0, %v3324
    %v3326 = vxor.u32 %v3286, 2147483648
    %v3327 = vmul.f32 %v3326, 1.442695
    %v3328 = vpow.pop %v3327
    %v3329 = vadd.f32 %v3328, 1.0
    %v3330 = vrcp.pop %v3329
    %v3331 = vmul.f32 %v3329, %v3330
    %v3332 = vsub.f32 1.0, %v3331
    %v3333 = vmul.f32 %v3330, %v3332
    %v3334 = vadd.f32 %v3330, %v3333
    %vm3335 = vweird.f32 %v3329
    %vm3336 = vweird.f32 %v3330
    %vm3337 = vmor %vm3335, %vm3336
    %v3338 = vsel %vm3337, %v3330, %v3334
    %v3339 = vand.u32 2147483647, %v3329
    %vm3340 = vcmp.eq.f32.partialorder %v3339, 8.507059e+37
    %v3341 = vand.u32 %v3329, 2147483648
    %v3342 = vor.u32 1.1754944e-38, %v3341
    %v3343 = vsel %vm3340, %v3342, %v3338
    %v3344 = vmul.f32 1.0, %v3343
    %v3345 = vtanh.pop %v3287
    %v3346 = vmul.f32 %v2894, %v3306
    %v3347 = vmul.f32 %v3325, %v3345
    %v3348 = vadd.f32 %v3346, %v3347
    %v3349 = vtanh.pop %v3348
    %v3350 = vmul.f32 %v3344, %v3349
    %v3351 = vsel %vm1237, %v3350, %v2893
    %v3352 = vsel %vm1237, %v3348, %v2894
    %3353 = vmatpush.msra.mxu0 %v249
    %3354 = vmatpush.msra.mxu0 %v245
    %3355 = vmatpush.msra.mxu0 %v241
    %3356 = vmatpush.msra.mxu0 %v237
    %3357 = vmatpush.msra.mxu0 %v233
    %3358 = vmatpush.msra.mxu0 %v229
    %3359 = vmatpush.msra.mxu0 %v225
    %3360 = vmatpush.msra.mxu0 %v221
    %3361 = vmatpush.msra.mxu0 %v217
    %3362 = vmatpush.msra.mxu0 %v213
    %3363 = vmatpush.msra.mxu0 %v209
    %3364 = vmatpush.msra.mxu0 %v205
    %3365 = vmatpush.msra.mxu0 %v201
    %3366 = vmatpush.msra.mxu0 %v197
    %3367 = vmatpush.msra.mxu0 %v193
    %3368 = vmatpush.msra.mxu0 %v189
    %3369 = vmatmul.f32.gmra.mxu0 %v3122
    %v3370 = vpop.f32.mrf.mxu0
    %v3371 = vadd.f32 0.0, %v3370
    %3372 = vdwg.mxu0
    %3373 = vmatpush.msra.mxu0 %v250
    %3374 = vmatpush.msra.mxu0 %v246
    %3375 = vmatpush.msra.mxu0 %v242
    %3376 = vmatpush.msra.mxu0 %v238
    %3377 = vmatpush.msra.mxu0 %v234
    %3378 = vmatpush.msra.mxu0 %v230
    %3379 = vmatpush.msra.mxu0 %v226
    %3380 = vmatpush.msra.mxu0 %v222
    %3381 = vmatpush.msra.mxu0 %v218
    %3382 = vmatpush.msra.mxu0 %v214
    %3383 = vmatpush.msra.mxu0 %v210
    %3384 = vmatpush.msra.mxu0 %v206
    %3385 = vmatpush.msra.mxu0 %v202
    %3386 = vmatpush.msra.mxu0 %v198
    %3387 = vmatpush.msra.mxu0 %v194
    %3388 = vmatpush.msra.mxu0 %v190
    %3389 = vmatmul.f32.gmra.mxu0 %v3122
    %v3390 = vpop.f32.mrf.mxu0
    %v3391 = vadd.f32 0.0, %v3390
    %3392 = vdwg.mxu0
    %3393 = vmatpush.msra.mxu0 %v251
    %3394 = vmatpush.msra.mxu0 %v247
    %3395 = vmatpush.msra.mxu0 %v243
    %3396 = vmatpush.msra.mxu0 %v239
    %3397 = vmatpush.msra.mxu0 %v235
    %3398 = vmatpush.msra.mxu0 %v231
    %3399 = vmatpush.msra.mxu0 %v227
    %3400 = vmatpush.msra.mxu0 %v223
    %3401 = vmatpush.msra.mxu0 %v219
    %3402 = vmatpush.msra.mxu0 %v215
    %3403 = vmatpush.msra.mxu0 %v211
    %3404 = vmatpush.msra.mxu0 %v207
    %3405 = vmatpush.msra.mxu0 %v203
    %3406 = vmatpush.msra.mxu0 %v199
    %3407 = vmatpush.msra.mxu0 %v195
    %3408 = vmatpush.msra.mxu0 %v191
    %3409 = vmatmul.f32.gmra.mxu0 %v3122
    %v3410 = vpop.f32.mrf.mxu0
    %v3411 = vadd.f32 0.0, %v3410
    %3412 = vdwg.mxu0
    %3413 = vmatpush.msra.mxu0 %v252
    %3414 = vmatpush.msra.mxu0 %v248
    %3415 = vmatpush.msra.mxu0 %v244
    %3416 = vmatpush.msra.mxu0 %v240
    %3417 = vmatpush.msra.mxu0 %v236
    %3418 = vmatpush.msra.mxu0 %v232
    %3419 = vmatpush.msra.mxu0 %v228
    %3420 = vmatpush.msra.mxu0 %v224
    %3421 = vmatpush.msra.mxu0 %v220
    %3422 = vmatpush.msra.mxu0 %v216
    %3423 = vmatpush.msra.mxu0 %v212
    %3424 = vmatpush.msra.mxu0 %v208
    %3425 = vmatpush.msra.mxu0 %v204
    %3426 = vmatpush.msra.mxu0 %v200
    %3427 = vmatpush.msra.mxu0 %v196
    %3428 = vmatpush.msra.mxu0 %v192
    %3429 = vmatmul.f32.gmra.mxu0 %v3122
    %v3430 = vpop.f32.mrf.mxu0
    %v3431 = vadd.f32 0.0, %v3430
    %3432 = vdwg.mxu0
    %3433 = vmatpush.msra.mxu0 0.0
    %3434 = vmatpush.msra.mxu0 0.0
    %3435 = vmatpush.msra.mxu0 0.0
    %3436 = vmatpush.msra.mxu0 0.0
    %3437 = vmatpush.msra.mxu0 0.0
    %3438 = vmatpush.msra.mxu0 0.0
    %3439 = vmatpush.msra.mxu0 0.0
    %3440 = vmatpush.msra.mxu0 0.0
    %3441 = vmatpush.msra.mxu0 0.0
    %3442 = vmatpush.msra.mxu0 0.0
    %3443 = vmatpush.msra.mxu0 0.0
    %3444 = vmatpush.msra.mxu0 0.0
    %3445 = vmatpush.msra.mxu0 %v185
    %3446 = vmatpush.msra.mxu0 %v181
    %3447 = vmatpush.msra.mxu0 %v177
    %3448 = vmatpush.msra.mxu0 %v173
    %3449 = vmatmul.f32.gmra.mxu0 %v841
    %v3450 = vpop.f32.mrf.mxu0
    %v3451 = vadd.f32 %v3371, %v3450
    %3452 = vdwg.mxu0
    %3453 = vmatpush.msra.mxu0 0.0
    %3454 = vmatpush.msra.mxu0 0.0
    %3455 = vmatpush.msra.mxu0 0.0
    %3456 = vmatpush.msra.mxu0 0.0
    %3457 = vmatpush.msra.mxu0 0.0
    %3458 = vmatpush.msra.mxu0 0.0
    %3459 = vmatpush.msra.mxu0 0.0
    %3460 = vmatpush.msra.mxu0 0.0
    %3461 = vmatpush.msra.mxu0 0.0
    %3462 = vmatpush.msra.mxu0 0.0
    %3463 = vmatpush.msra.mxu0 0.0
    %3464 = vmatpush.msra.mxu0 0.0
    %3465 = vmatpush.msra.mxu0 %v186
    %3466 = vmatpush.msra.mxu0 %v182
    %3467 = vmatpush.msra.mxu0 %v178
    %3468 = vmatpush.msra.mxu0 %v174
    %3469 = vmatmul.f32.gmra.mxu0 %v841
    %v3470 = vpop.f32.mrf.mxu0
    %v3471 = vadd.f32 %v3391, %v3470
    %3472 = vdwg.mxu0
    %3473 = vmatpush.msra.mxu0 0.0
    %3474 = vmatpush.msra.mxu0 0.0
    %3475 = vmatpush.msra.mxu0 0.0
    %3476 = vmatpush.msra.mxu0 0.0
    %3477 = vmatpush.msra.mxu0 0.0
    %3478 = vmatpush.msra.mxu0 0.0
    %3479 = vmatpush.msra.mxu0 0.0
    %3480 = vmatpush.msra.mxu0 0.0
    %3481 = vmatpush.msra.mxu0 0.0
    %3482 = vmatpush.msra.mxu0 0.0
    %3483 = vmatpush.msra.mxu0 0.0
    %3484 = vmatpush.msra.mxu0 0.0
    %3485 = vmatpush.msra.mxu0 %v187
    %3486 = vmatpush.msra.mxu0 %v183
    %3487 = vmatpush.msra.mxu0 %v179
    %3488 = vmatpush.msra.mxu0 %v175
    %3489 = vmatmul.f32.gmra.mxu0 %v841
    %v3490 = vpop.f32.mrf.mxu0
    %v3491 = vadd.f32 %v3411, %v3490
    %3492 = vdwg.mxu0
    %3493 = vmatpush.msra.mxu0 0.0
    %3494 = vmatpush.msra.mxu0 0.0
    %3495 = vmatpush.msra.mxu0 0.0
    %3496 = vmatpush.msra.mxu0 0.0
    %3497 = vmatpush.msra.mxu0 0.0
    %3498 = vmatpush.msra.mxu0 0.0
    %3499 = vmatpush.msra.mxu0 0.0
    %3500 = vmatpush.msra.mxu0 0.0
    %3501 = vmatpush.msra.mxu0 0.0
    %3502 = vmatpush.msra.mxu0 0.0
    %3503 = vmatpush.msra.mxu0 0.0
    %3504 = vmatpush.msra.mxu0 0.0
    %3505 = vmatpush.msra.mxu0 %v188
    %3506 = vmatpush.msra.mxu0 %v184
    %3507 = vmatpush.msra.mxu0 %v180
    %3508 = vmatpush.msra.mxu0 %v176
    %3509 = vmatmul.f32.gmra.mxu0 %v841
    %v3510 = vpop.f32.mrf.mxu0
    %v3511 = vadd.f32 %v3431, %v3510
    %3512 = vdwg.mxu0
    %v3513 = vadd.f32 %v3451, %v265
    %v3514 = vadd.f32 %v3471, %v266
    %v3515 = vadd.f32 %v3491, %v267
    %v3516 = vadd.f32 %v3511, %v268
    %v3517 = vxor.u32 %v3513, 2147483648
    %v3518 = vmul.f32 %v3517, 1.442695
    %v3519 = vpow.pop %v3518
    %v3520 = vadd.f32 %v3519, 1.0
    %v3521 = vrcp.pop %v3520
    %v3522 = vmul.f32 %v3520, %v3521
    %v3523 = vsub.f32 1.0, %v3522
    %v3524 = vmul.f32 %v3521, %v3523
    %v3525 = vadd.f32 %v3521, %v3524
    %vm3526 = vweird.f32 %v3520
    %vm3527 = vweird.f32 %v3521
    %vm3528 = vmor %vm3526, %vm3527
    %v3529 = vsel %vm3528, %v3521, %v3525
    %v3530 = vand.u32 2147483647, %v3520
    %vm3531 = vcmp.eq.f32.partialorder %v3530, 8.507059e+37
    %v3532 = vand.u32 %v3520, 2147483648
    %v3533 = vor.u32 1.1754944e-38, %v3532
    %v3534 = vsel %vm3531, %v3533, %v3529
    %v3535 = vmul.f32 1.0, %v3534
    %v3536 = vxor.u32 %v3514, 2147483648
    %v3537 = vmul.f32 %v3536, 1.442695
    %v3538 = vpow.pop %v3537
    %v3539 = vadd.f32 %v3538, 1.0
    %v3540 = vrcp.pop %v3539
    %v3541 = vmul.f32 %v3539, %v3540
    %v3542 = vsub.f32 1.0, %v3541
    %v3543 = vmul.f32 %v3540, %v3542
    %v3544 = vadd.f32 %v3540, %v3543
    %vm3545 = vweird.f32 %v3539
    %vm3546 = vweird.f32 %v3540
    %vm3547 = vmor %vm3545, %vm3546
    %v3548 = vsel %vm3547, %v3540, %v3544
    %v3549 = vand.u32 2147483647, %v3539
    %vm3550 = vcmp.eq.f32.partialorder %v3549, 8.507059e+37
    %v3551 = vand.u32 %v3539, 2147483648
    %v3552 = vor.u32 1.1754944e-38, %v3551
    %v3553 = vsel %vm3550, %v3552, %v3548
    %v3554 = vmul.f32 1.0, %v3553
    %v3555 = vxor.u32 %v3515, 2147483648
    %v3556 = vmul.f32 %v3555, 1.442695
    %v3557 = vpow.pop %v3556
    %v3558 = vadd.f32 %v3557, 1.0
    %v3559 = vrcp.pop %v3558
    %v3560 = vmul.f32 %v3558, %v3559
    %v3561 = vsub.f32 1.0, %v3560
    %v3562 = vmul.f32 %v3559, %v3561
    %v3563 = vadd.f32 %v3559, %v3562
    %vm3564 = vweird.f32 %v3558
    %vm3565 = vweird.f32 %v3559
    %vm3566 = vmor %vm3564, %vm3565
    %v3567 = vsel %vm3566, %v3559, %v3563
    %v3568 = vand.u32 2147483647, %v3558
    %vm3569 = vcmp.eq.f32.partialorder %v3568, 8.507059e+37
    %v3570 = vand.u32 %v3558, 2147483648
    %v3571 = vor.u32 1.1754944e-38, %v3570
    %v3572 = vsel %vm3569, %v3571, %v3567
    %v3573 = vmul.f32 1.0, %v3572
    %v3574 = vtanh.pop %v3516
    %v3575 = vmul.f32 %v3123, %v3535
    %v3576 = vmul.f32 %v3554, %v3574
    %v3577 = vadd.f32 %v3575, %v3576
    %v3578 = vtanh.pop %v3577
    %v3579 = vmul.f32 %v3573, %v3578
    %v3580 = vsel %vm995, %v3579, %v3122
    %v3581 = vsel %vm995, %v3577, %v3123
    %3582 = vmatpush.msra.mxu0 %v169
    %3583 = vmatpush.msra.mxu0 %v165
    %3584 = vmatpush.msra.mxu0 %v161
    %3585 = vmatpush.msra.mxu0 %v157
    %3586 = vmatpush.msra.mxu0 %v153
    %3587 = vmatpush.msra.mxu0 %v149
    %3588 = vmatpush.msra.mxu0 %v145
    %3589 = vmatpush.msra.mxu0 %v141
    %3590 = vmatpush.msra.mxu0 %v137
    %3591 = vmatpush.msra.mxu0 %v133
    %3592 = vmatpush.msra.mxu0 %v129
    %3593 = vmatpush.msra.mxu0 %v125
    %3594 = vmatpush.msra.mxu0 %v121
    %3595 = vmatpush.msra.mxu0 %v117
    %3596 = vmatpush.msra.mxu0 %v113
    %3597 = vmatpush.msra.mxu0 %v109
    %3598 = vmatmul.f32.gmra.mxu0 %v3351
    %v3599 = vpop.f32.mrf.mxu0
    %v3600 = vadd.f32 0.0, %v3599
    %3601 = vdwg.mxu0
    %3602 = vmatpush.msra.mxu0 %v170
    %3603 = vmatpush.msra.mxu0 %v166
    %3604 = vmatpush.msra.mxu0 %v162
    %3605 = vmatpush.msra.mxu0 %v158
    %3606 = vmatpush.msra.mxu0 %v154
    %3607 = vmatpush.msra.mxu0 %v150
    %3608 = vmatpush.msra.mxu0 %v146
    %3609 = vmatpush.msra.mxu0 %v142
    %3610 = vmatpush.msra.mxu0 %v138
    %3611 = vmatpush.msra.mxu0 %v134
    %3612 = vmatpush.msra.mxu0 %v130
    %3613 = vmatpush.msra.mxu0 %v126
    %3614 = vmatpush.msra.mxu0 %v122
    %3615 = vmatpush.msra.mxu0 %v118
    %3616 = vmatpush.msra.mxu0 %v114
    %3617 = vmatpush.msra.mxu0 %v110
    %3618 = vmatmul.f32.gmra.mxu0 %v3351
    %v3619 = vpop.f32.mrf.mxu0
    %v3620 = vadd.f32 0.0, %v3619
    %3621 = vdwg.mxu0
    %3622 = vmatpush.msra.mxu0 %v171
    %3623 = vmatpush.msra.mxu0 %v167
    %3624 = vmatpush.msra.mxu0 %v163
    %3625 = vmatpush.msra.mxu0 %v159
    %3626 = vmatpush.msra.mxu0 %v155
    %3627 = vmatpush.msra.mxu0 %v151
    %3628 = vmatpush.msra.mxu0 %v147
    %3629 = vmatpush.msra.mxu0 %v143
    %3630 = vmatpush.msra.mxu0 %v139
    %3631 = vmatpush.msra.mxu0 %v135
    %3632 = vmatpush.msra.mxu0 %v131
    %3633 = vmatpush.msra.mxu0 %v127
    %3634 = vmatpush.msra.mxu0 %v123
    %3635 = vmatpush.msra.mxu0 %v119
    %3636 = vmatpush.msra.mxu0 %v115
    %3637 = vmatpush.msra.mxu0 %v111
    %3638 = vmatmul.f32.gmra.mxu0 %v3351
    %v3639 = vpop.f32.mrf.mxu0
    %v3640 = vadd.f32 0.0, %v3639
    %3641 = vdwg.mxu0
    %3642 = vmatpush.msra.mxu0 %v172
    %3643 = vmatpush.msra.mxu0 %v168
    %3644 = vmatpush.msra.mxu0 %v164
    %3645 = vmatpush.msra.mxu0 %v160
    %3646 = vmatpush.msra.mxu0 %v156
    %3647 = vmatpush.msra.mxu0 %v152
    %3648 = vmatpush.msra.mxu0 %v148
    %3649 = vmatpush.msra.mxu0 %v144
    %3650 = vmatpush.msra.mxu0 %v140
    %3651 = vmatpush.msra.mxu0 %v136
    %3652 = vmatpush.msra.mxu0 %v132
    %3653 = vmatpush.msra.mxu0 %v128
    %3654 = vmatpush.msra.mxu0 %v124
    %3655 = vmatpush.msra.mxu0 %v120
    %3656 = vmatpush.msra.mxu0 %v116
    %3657 = vmatpush.msra.mxu0 %v112
    %3658 = vmatmul.f32.gmra.mxu0 %v3351
    %v3659 = vpop.f32.mrf.mxu0
    %v3660 = vadd.f32 0.0, %v3659
    %3661 = vdwg.mxu0
    %3662 = vmatpush.msra.mxu0 0.0
    %3663 = vmatpush.msra.mxu0 0.0
    %3664 = vmatpush.msra.mxu0 0.0
    %3665 = vmatpush.msra.mxu0 0.0
    %3666 = vmatpush.msra.mxu0 0.0
    %3667 = vmatpush.msra.mxu0 0.0
    %3668 = vmatpush.msra.mxu0 0.0
    %3669 = vmatpush.msra.mxu0 0.0
    %3670 = vmatpush.msra.mxu0 0.0
    %3671 = vmatpush.msra.mxu0 0.0
    %3672 = vmatpush.msra.mxu0 0.0
    %3673 = vmatpush.msra.mxu0 0.0
    %3674 = vmatpush.msra.mxu0 %v105
    %3675 = vmatpush.msra.mxu0 %v101
    %3676 = vmatpush.msra.mxu0 %v97
    %3677 = vmatpush.msra.mxu0 %v93
    %3678 = vmatmul.f32.gmra.mxu0 %v599
    %v3679 = vpop.f32.mrf.mxu0
    %v3680 = vadd.f32 %v3600, %v3679
    %3681 = vdwg.mxu0
    %3682 = vmatpush.msra.mxu0 0.0
    %3683 = vmatpush.msra.mxu0 0.0
    %3684 = vmatpush.msra.mxu0 0.0
    %3685 = vmatpush.msra.mxu0 0.0
    %3686 = vmatpush.msra.mxu0 0.0
    %3687 = vmatpush.msra.mxu0 0.0
    %3688 = vmatpush.msra.mxu0 0.0
    %3689 = vmatpush.msra.mxu0 0.0
    %3690 = vmatpush.msra.mxu0 0.0
    %3691 = vmatpush.msra.mxu0 0.0
    %3692 = vmatpush.msra.mxu0 0.0
    %3693 = vmatpush.msra.mxu0 0.0
    %3694 = vmatpush.msra.mxu0 %v106
    %3695 = vmatpush.msra.mxu0 %v102
    %3696 = vmatpush.msra.mxu0 %v98
    %3697 = vmatpush.msra.mxu0 %v94
    %3698 = vmatmul.f32.gmra.mxu0 %v599
    %v3699 = vpop.f32.mrf.mxu0
    %v3700 = vadd.f32 %v3620, %v3699
    %3701 = vdwg.mxu0
    %3702 = vmatpush.msra.mxu0 0.0
    %3703 = vmatpush.msra.mxu0 0.0
    %3704 = vmatpush.msra.mxu0 0.0
    %3705 = vmatpush.msra.mxu0 0.0
    %3706 = vmatpush.msra.mxu0 0.0
    %3707 = vmatpush.msra.mxu0 0.0
    %3708 = vmatpush.msra.mxu0 0.0
    %3709 = vmatpush.msra.mxu0 0.0
    %3710 = vmatpush.msra.mxu0 0.0
    %3711 = vmatpush.msra.mxu0 0.0
    %3712 = vmatpush.msra.mxu0 0.0
    %3713 = vmatpush.msra.mxu0 0.0
    %3714 = vmatpush.msra.mxu0 %v107
    %3715 = vmatpush.msra.mxu0 %v103
    %3716 = vmatpush.msra.mxu0 %v99
    %3717 = vmatpush.msra.mxu0 %v95
    %3718 = vmatmul.f32.gmra.mxu0 %v599
    %v3719 = vpop.f32.mrf.mxu0
    %v3720 = vadd.f32 %v3640, %v3719
    %3721 = vdwg.mxu0
    %3722 = vmatpush.msra.mxu0 0.0
    %3723 = vmatpush.msra.mxu0 0.0
    %3724 = vmatpush.msra.mxu0 0.0
    %3725 = vmatpush.msra.mxu0 0.0
    %3726 = vmatpush.msra.mxu0 0.0
    %3727 = vmatpush.msra.mxu0 0.0
    %3728 = vmatpush.msra.mxu0 0.0
    %3729 = vmatpush.msra.mxu0 0.0
    %3730 = vmatpush.msra.mxu0 0.0
    %3731 = vmatpush.msra.mxu0 0.0
    %3732 = vmatpush.msra.mxu0 0.0
    %3733 = vmatpush.msra.mxu0 0.0
    %3734 = vmatpush.msra.mxu0 %v108
    %3735 = vmatpush.msra.mxu0 %v104
    %3736 = vmatpush.msra.mxu0 %v100
    %3737 = vmatpush.msra.mxu0 %v96
    %3738 = vmatmul.f32.gmra.mxu0 %v599
    %v3739 = vpop.f32.mrf.mxu0
    %v3740 = vadd.f32 %v3660, %v3739
    %3741 = vdwg.mxu0
    %v3742 = vadd.f32 %v3680, %v255
    %v3743 = vadd.f32 %v3700, %v256
    %v3744 = vadd.f32 %v3720, %v257
    %v3745 = vadd.f32 %v3740, %v258
    %v3746 = vxor.u32 %v3742, 2147483648
    %v3747 = vmul.f32 %v3746, 1.442695
    %v3748 = vpow.pop %v3747
    %v3749 = vadd.f32 %v3748, 1.0
    %v3750 = vrcp.pop %v3749
    %v3751 = vmul.f32 %v3749, %v3750
    %v3752 = vsub.f32 1.0, %v3751
    %v3753 = vmul.f32 %v3750, %v3752
    %v3754 = vadd.f32 %v3750, %v3753
    %vm3755 = vweird.f32 %v3749
    %vm3756 = vweird.f32 %v3750
    %vm3757 = vmor %vm3755, %vm3756
    %v3758 = vsel %vm3757, %v3750, %v3754
    %v3759 = vand.u32 2147483647, %v3749
    %vm3760 = vcmp.eq.f32.partialorder %v3759, 8.507059e+37
    %v3761 = vand.u32 %v3749, 2147483648
    %v3762 = vor.u32 1.1754944e-38, %v3761
    %v3763 = vsel %vm3760, %v3762, %v3758
    %v3764 = vmul.f32 1.0, %v3763
    %v3765 = vxor.u32 %v3743, 2147483648
    %v3766 = vmul.f32 %v3765, 1.442695
    %v3767 = vpow.pop %v3766
    %v3768 = vadd.f32 %v3767, 1.0
    %v3769 = vrcp.pop %v3768
    %v3770 = vmul.f32 %v3768, %v3769
    %v3771 = vsub.f32 1.0, %v3770
    %v3772 = vmul.f32 %v3769, %v3771
    %v3773 = vadd.f32 %v3769, %v3772
    %vm3774 = vweird.f32 %v3768
    %vm3775 = vweird.f32 %v3769
    %vm3776 = vmor %vm3774, %vm3775
    %v3777 = vsel %vm3776, %v3769, %v3773
    %v3778 = vand.u32 2147483647, %v3768
    %vm3779 = vcmp.eq.f32.partialorder %v3778, 8.507059e+37
    %v3780 = vand.u32 %v3768, 2147483648
    %v3781 = vor.u32 1.1754944e-38, %v3780
    %v3782 = vsel %vm3779, %v3781, %v3777
    %v3783 = vmul.f32 1.0, %v3782
    %v3784 = vxor.u32 %v3744, 2147483648
    %v3785 = vmul.f32 %v3784, 1.442695
    %v3786 = vpow.pop %v3785
    %v3787 = vadd.f32 %v3786, 1.0
    %v3788 = vrcp.pop %v3787
    %v3789 = vmul.f32 %v3787, %v3788
    %v3790 = vsub.f32 1.0, %v3789
    %v3791 = vmul.f32 %v3788, %v3790
    %v3792 = vadd.f32 %v3788, %v3791
    %vm3793 = vweird.f32 %v3787
    %vm3794 = vweird.f32 %v3788
    %vm3795 = vmor %vm3793, %vm3794
    %v3796 = vsel %vm3795, %v3788, %v3792
    %v3797 = vand.u32 2147483647, %v3787
    %vm3798 = vcmp.eq.f32.partialorder %v3797, 8.507059e+37
    %v3799 = vand.u32 %v3787, 2147483648
    %v3800 = vor.u32 1.1754944e-38, %v3799
    %v3801 = vsel %vm3798, %v3800, %v3796
    %v3802 = vmul.f32 1.0, %v3801
    %v3803 = vtanh.pop %v3745
    %v3804 = vmul.f32 %v3352, %v3764
    %v3805 = vmul.f32 %v3783, %v3803
    %v3806 = vadd.f32 %v3804, %v3805
    %v3807 = vtanh.pop %v3806
    %v3808 = vmul.f32 %v3802, %v3807
    %v3809 = vsel %vm753, %v3808, %v3351
    %3810 = vmatpush.msra.mxu0 %v249
    %3811 = vmatpush.msra.mxu0 %v245
    %3812 = vmatpush.msra.mxu0 %v241
    %3813 = vmatpush.msra.mxu0 %v237
    %3814 = vmatpush.msra.mxu0 %v233
    %3815 = vmatpush.msra.mxu0 %v229
    %3816 = vmatpush.msra.mxu0 %v225
    %3817 = vmatpush.msra.mxu0 %v221
    %3818 = vmatpush.msra.mxu0 %v217
    %3819 = vmatpush.msra.mxu0 %v213
    %3820 = vmatpush.msra.mxu0 %v209
    %3821 = vmatpush.msra.mxu0 %v205
    %3822 = vmatpush.msra.mxu0 %v201
    %3823 = vmatpush.msra.mxu0 %v197
    %3824 = vmatpush.msra.mxu0 %v193
    %3825 = vmatpush.msra.mxu0 %v189
    %3826 = vmatmul.f32.gmra.mxu0 %v3580
    %v3827 = vpop.f32.mrf.mxu0
    %v3828 = vadd.f32 0.0, %v3827
    %3829 = vdwg.mxu0
    %3830 = vmatpush.msra.mxu0 %v250
    %3831 = vmatpush.msra.mxu0 %v246
    %3832 = vmatpush.msra.mxu0 %v242
    %3833 = vmatpush.msra.mxu0 %v238
    %3834 = vmatpush.msra.mxu0 %v234
    %3835 = vmatpush.msra.mxu0 %v230
    %3836 = vmatpush.msra.mxu0 %v226
    %3837 = vmatpush.msra.mxu0 %v222
    %3838 = vmatpush.msra.mxu0 %v218
    %3839 = vmatpush.msra.mxu0 %v214
    %3840 = vmatpush.msra.mxu0 %v210
    %3841 = vmatpush.msra.mxu0 %v206
    %3842 = vmatpush.msra.mxu0 %v202
    %3843 = vmatpush.msra.mxu0 %v198
    %3844 = vmatpush.msra.mxu0 %v194
    %3845 = vmatpush.msra.mxu0 %v190
    %3846 = vmatmul.f32.gmra.mxu0 %v3580
    %v3847 = vpop.f32.mrf.mxu0
    %v3848 = vadd.f32 0.0, %v3847
    %3849 = vdwg.mxu0
    %3850 = vmatpush.msra.mxu0 %v251
    %3851 = vmatpush.msra.mxu0 %v247
    %3852 = vmatpush.msra.mxu0 %v243
    %3853 = vmatpush.msra.mxu0 %v239
    %3854 = vmatpush.msra.mxu0 %v235
    %3855 = vmatpush.msra.mxu0 %v231
    %3856 = vmatpush.msra.mxu0 %v227
    %3857 = vmatpush.msra.mxu0 %v223
    %3858 = vmatpush.msra.mxu0 %v219
    %3859 = vmatpush.msra.mxu0 %v215
    %3860 = vmatpush.msra.mxu0 %v211
    %3861 = vmatpush.msra.mxu0 %v207
    %3862 = vmatpush.msra.mxu0 %v203
    %3863 = vmatpush.msra.mxu0 %v199
    %3864 = vmatpush.msra.mxu0 %v195
    %3865 = vmatpush.msra.mxu0 %v191
    %3866 = vmatmul.f32.gmra.mxu0 %v3580
    %v3867 = vpop.f32.mrf.mxu0
    %v3868 = vadd.f32 0.0, %v3867
    %3869 = vdwg.mxu0
    %3870 = vmatpush.msra.mxu0 %v252
    %3871 = vmatpush.msra.mxu0 %v248
    %3872 = vmatpush.msra.mxu0 %v244
    %3873 = vmatpush.msra.mxu0 %v240
    %3874 = vmatpush.msra.mxu0 %v236
    %3875 = vmatpush.msra.mxu0 %v232
    %3876 = vmatpush.msra.mxu0 %v228
    %3877 = vmatpush.msra.mxu0 %v224
    %3878 = vmatpush.msra.mxu0 %v220
    %3879 = vmatpush.msra.mxu0 %v216
    %3880 = vmatpush.msra.mxu0 %v212
    %3881 = vmatpush.msra.mxu0 %v208
    %3882 = vmatpush.msra.mxu0 %v204
    %3883 = vmatpush.msra.mxu0 %v200
    %3884 = vmatpush.msra.mxu0 %v196
    %3885 = vmatpush.msra.mxu0 %v192
    %3886 = vmatmul.f32.gmra.mxu0 %v3580
    %v3887 = vpop.f32.mrf.mxu0
    %v3888 = vadd.f32 0.0, %v3887
    %3889 = vdwg.mxu0
    %3890 = vmatpush.msra.mxu0 0.0
    %3891 = vmatpush.msra.mxu0 0.0
    %3892 = vmatpush.msra.mxu0 0.0
    %3893 = vmatpush.msra.mxu0 0.0
    %3894 = vmatpush.msra.mxu0 0.0
    %3895 = vmatpush.msra.mxu0 0.0
    %3896 = vmatpush.msra.mxu0 0.0
    %3897 = vmatpush.msra.mxu0 0.0
    %3898 = vmatpush.msra.mxu0 0.0
    %3899 = vmatpush.msra.mxu0 0.0
    %3900 = vmatpush.msra.mxu0 0.0
    %3901 = vmatpush.msra.mxu0 0.0
    %3902 = vmatpush.msra.mxu0 %v185
    %3903 = vmatpush.msra.mxu0 %v181
    %3904 = vmatpush.msra.mxu0 %v177
    %3905 = vmatpush.msra.mxu0 %v173
    %3906 = vmatmul.f32.gmra.mxu0 %v357
    %v3907 = vpop.f32.mrf.mxu0
    %v3908 = vadd.f32 %v3828, %v3907
    %3909 = vdwg.mxu0
    %3910 = vmatpush.msra.mxu0 0.0
    %3911 = vmatpush.msra.mxu0 0.0
    %3912 = vmatpush.msra.mxu0 0.0
    %3913 = vmatpush.msra.mxu0 0.0
    %3914 = vmatpush.msra.mxu0 0.0
    %3915 = vmatpush.msra.mxu0 0.0
    %3916 = vmatpush.msra.mxu0 0.0
    %3917 = vmatpush.msra.mxu0 0.0
    %3918 = vmatpush.msra.mxu0 0.0
    %3919 = vmatpush.msra.mxu0 0.0
    %3920 = vmatpush.msra.mxu0 0.0
    %3921 = vmatpush.msra.mxu0 0.0
    %3922 = vmatpush.msra.mxu0 %v186
    %3923 = vmatpush.msra.mxu0 %v182
    %3924 = vmatpush.msra.mxu0 %v178
    %3925 = vmatpush.msra.mxu0 %v174
    %3926 = vmatmul.f32.gmra.mxu0 %v357
    %v3927 = vpop.f32.mrf.mxu0
    %v3928 = vadd.f32 %v3848, %v3927
    %3929 = vdwg.mxu0
    %3930 = vmatpush.msra.mxu0 0.0
    %3931 = vmatpush.msra.mxu0 0.0
    %3932 = vmatpush.msra.mxu0 0.0
    %3933 = vmatpush.msra.mxu0 0.0
    %3934 = vmatpush.msra.mxu0 0.0
    %3935 = vmatpush.msra.mxu0 0.0
    %3936 = vmatpush.msra.mxu0 0.0
    %3937 = vmatpush.msra.mxu0 0.0
    %3938 = vmatpush.msra.mxu0 0.0
    %3939 = vmatpush.msra.mxu0 0.0
    %3940 = vmatpush.msra.mxu0 0.0
    %3941 = vmatpush.msra.mxu0 0.0
    %3942 = vmatpush.msra.mxu0 %v187
    %3943 = vmatpush.msra.mxu0 %v183
    %3944 = vmatpush.msra.mxu0 %v179
    %3945 = vmatpush.msra.mxu0 %v175
    %3946 = vmatmul.f32.gmra.mxu0 %v357
    %v3947 = vpop.f32.mrf.mxu0
    %v3948 = vadd.f32 %v3868, %v3947
    %3949 = vdwg.mxu0
    %3950 = vmatpush.msra.mxu0 0.0
    %3951 = vmatpush.msra.mxu0 0.0
    %3952 = vmatpush.msra.mxu0 0.0
    %3953 = vmatpush.msra.mxu0 0.0
    %3954 = vmatpush.msra.mxu0 0.0
    %3955 = vmatpush.msra.mxu0 0.0
    %3956 = vmatpush.msra.mxu0 0.0
    %3957 = vmatpush.msra.mxu0 0.0
    %3958 = vmatpush.msra.mxu0 0.0
    %3959 = vmatpush.msra.mxu0 0.0
    %3960 = vmatpush.msra.mxu0 0.0
    %3961 = vmatpush.msra.mxu0 0.0
    %3962 = vmatpush.msra.mxu0 %v188
    %3963 = vmatpush.msra.mxu0 %v184
    %3964 = vmatpush.msra.mxu0 %v180
    %3965 = vmatpush.msra.mxu0 %v176
    %3966 = vmatmul.f32.gmra.mxu0 %v357
    %v3967 = vpop.f32.mrf.mxu0
    %v3968 = vadd.f32 %v3888, %v3967
    %3969 = vdwg.mxu0
    %v3970 = vadd.f32 %v3908, %v265
    %v3971 = vadd.f32 %v3928, %v266
    %v3972 = vadd.f32 %v3948, %v267
    %v3973 = vadd.f32 %v3968, %v268
    %v3974 = vxor.u32 %v3970, 2147483648
    %v3975 = vmul.f32 %v3974, 1.442695
    %v3976 = vpow.pop %v3975
    %v3977 = vadd.f32 %v3976, 1.0
    %v3978 = vrcp.pop %v3977
    %v3979 = vmul.f32 %v3977, %v3978
    %v3980 = vsub.f32 1.0, %v3979
    %v3981 = vmul.f32 %v3978, %v3980
    %v3982 = vadd.f32 %v3978, %v3981
    %vm3983 = vweird.f32 %v3977
    %vm3984 = vweird.f32 %v3978
    %vm3985 = vmor %vm3983, %vm3984
    %v3986 = vsel %vm3985, %v3978, %v3982
    %v3987 = vand.u32 2147483647, %v3977
    %vm3988 = vcmp.eq.f32.partialorder %v3987, 8.507059e+37
    %v3989 = vand.u32 %v3977, 2147483648
    %v3990 = vor.u32 1.1754944e-38, %v3989
    %v3991 = vsel %vm3988, %v3990, %v3986
    %v3992 = vmul.f32 1.0, %v3991
    %v3993 = vxor.u32 %v3971, 2147483648
    %v3994 = vmul.f32 %v3993, 1.442695
    %v3995 = vpow.pop %v3994
    %v3996 = vadd.f32 %v3995, 1.0
    %v3997 = vrcp.pop %v3996
    %v3998 = vmul.f32 %v3996, %v3997
    %v3999 = vsub.f32 1.0, %v3998
    %v4000 = vmul.f32 %v3997, %v3999
    %v4001 = vadd.f32 %v3997, %v4000
    %vm4002 = vweird.f32 %v3996
    %vm4003 = vweird.f32 %v3997
    %vm4004 = vmor %vm4002, %vm4003
    %v4005 = vsel %vm4004, %v3997, %v4001
    %v4006 = vand.u32 2147483647, %v3996
    %vm4007 = vcmp.eq.f32.partialorder %v4006, 8.507059e+37
    %v4008 = vand.u32 %v3996, 2147483648
    %v4009 = vor.u32 1.1754944e-38, %v4008
    %v4010 = vsel %vm4007, %v4009, %v4005
    %v4011 = vmul.f32 1.0, %v4010
    %v4012 = vxor.u32 %v3972, 2147483648
    %v4013 = vmul.f32 %v4012, 1.442695
    %v4014 = vpow.pop %v4013
    %v4015 = vadd.f32 %v4014, 1.0
    %v4016 = vrcp.pop %v4015
    %v4017 = vmul.f32 %v4015, %v4016
    %v4018 = vsub.f32 1.0, %v4017
    %v4019 = vmul.f32 %v4016, %v4018
    %v4020 = vadd.f32 %v4016, %v4019
    %vm4021 = vweird.f32 %v4015
    %vm4022 = vweird.f32 %v4016
    %vm4023 = vmor %vm4021, %vm4022
    %v4024 = vsel %vm4023, %v4016, %v4020
    %v4025 = vand.u32 2147483647, %v4015
    %vm4026 = vcmp.eq.f32.partialorder %v4025, 8.507059e+37
    %v4027 = vand.u32 %v4015, 2147483648
    %v4028 = vor.u32 1.1754944e-38, %v4027
    %v4029 = vsel %vm4026, %v4028, %v4024
    %v4030 = vmul.f32 1.0, %v4029
    %v4031 = vtanh.pop %v3973
    %v4032 = vmul.f32 %v3581, %v3992
    %v4033 = vmul.f32 %v4011, %v4031
    %v4034 = vadd.f32 %v4032, %v4033
    %v4035 = vtanh.pop %v4034
    %v4036 = vmul.f32 %v4030, %v4035
    %v4037 = vsel %vm511, %v4036, %v3580
    %4038 = vst [vmem:[#allocation10] sm:$0xff] %v3809
    %4039 = vst [vmem:[#allocation10 + $0x8] sm:$0xff] %v4037
    // Predicated region
    $region50: #{tpu_custom_call.1} parent=1 // pred_check
      _
    $region51: #{tpu_custom_call.1} parent=1 // pred_check_branch
      %4041 = sbr.rel (0) target = $region53
    $region52: #{tpu_custom_call.1} parent=1 // pred_region
      %4043 = vsyncadd [#allocation4], 0
      %s4045 = sshll.u32 [#allocation10], 4
      %s4046 = int_to_ptr.vmem [resolvable:$true] %s4045
      %s4047 = sshll.u32 %s8, 4
      %s4048 = int_to_ptr.hbm [resolvable:$true] %s4047
      %4050 = dma.vmem_to_hbm [thread:$0]  %s4046, 256, %s4048, [#allocation4]
    $region53: #{tpu_custom_call.1} parent=1 // pred_fallthru
      _
    // Predicated region
    $region54: #{tpu_custom_call.1} parent=1 // pred_check
      _
    $region55: #{tpu_custom_call.1} parent=1 // pred_check_branch
      %4052 = sbr.rel (0) target = $region57
    $region56: #{tpu_custom_call.1} parent=1 // pred_region
      %4054 = dma.done [#allocation4], 256
    $region57: #{tpu_custom_call.1} parent=1 // pred_fallthru
      _
    %4055 = vsyncpa [#allocation3], 1
    %4056 = vsyncpa [#allocation6], 1
    %4057 = vsyncpa [#allocation9], 1
    %4058 = vsyncpa [#allocation4], 1

</llo_original>
